<compile_context>
chip_gen: v7x
topology: tpu7x:2x2x1
jax: 0.10.0
libtpu: 0.0.40
codegen_flags: <defaults>
</compile_context>

<pallas_src>
import math

import jax
import jax.numpy as jnp
import numpy as np
from jax.experimental import pallas as pl
from jax.experimental.pallas import tpu as pltpu


# ---------------------------------------------------------------------------
# Pallas kernel (entire autoencoder forward pass)
# ---------------------------------------------------------------------------
def autoencoder_kernel(x_ref,
                       e0_wih, e0_whh, e0_b,
                       e1_wih, e1_whh, e1_b,
                       d0_wih, d0_whh, d0_b,
                       d1_wih, d1_whh, d1_b,
                       lin_w, lin_b,
                       out_ref,
                       enc0_seq, dec0_seq, dec1_seq):
    T, B, F = x_ref.shape
    H1 = e0_whh.shape[0]          # 128
    H0 = e1_whh.shape[0]          # 64 (embedding dim)
    bf = jnp.bfloat16

    # ---- Cast weights to bf16 ONCE (MXU-native); biases stay f32 -------------
    e0_wih_b, e0_whh_b = e0_wih[...].astype(bf), e0_whh[...].astype(bf)
    e1_wih_b, e1_whh_b = e1_wih[...].astype(bf), e1_whh[...].astype(bf)
    d0_wih_b, d0_whh_b = d0_wih[...].astype(bf), d0_whh[...].astype(bf)
    d1_wih_b, d1_whh_b = d1_wih[...].astype(bf), d1_whh[...].astype(bf)
    lin_w_b = lin_w[...].astype(bf)

    def zeros(h):
        return jnp.zeros((B, h), jnp.float32)

    def cell_step(gx_t, h, c, whh_b, H):
        """One LSTM cell update.  gx_t = x_t @ W_ih + b (precomputed, f32).
        Only the recurrent matmul h @ W_hh sits on the critical path."""
        gates = gx_t + jnp.dot(h.astype(bf), whh_b,
                               preferred_element_type=jnp.float32)   # (B, 4H)
        sig = jax.nn.sigmoid(gates[:, :3 * H])        # one EUP region: i | f | o
        i = sig[:, 0 * H:1 * H]
        f = sig[:, 1 * H:2 * H]
        o = sig[:, 2 * H:3 * H]
        g = jnp.tanh(gates[:, 3 * H:])                # one EUP region: g
        c_new = f * c + i * g
        h_new = o * jnp.tanh(c_new)
        return h_new, c_new

    # ======================= Encoder layer 0: LSTM(F -> H1) ===================
    # Batched input projection over all T (one MXU call, bias folded in).
    x_all = x_ref[...].reshape(T * B, F).astype(bf)
    gx0 = (jnp.dot(x_all, e0_wih_b, preferred_element_type=jnp.float32)
           + e0_b[...]).reshape(T, B, 4 * H1)
    h, c = zeros(H1), zeros(H1)
    for t in range(T):                    # T static & small -> fully unrolled
        h, c = cell_step(gx0[t], h, c, e0_whh_b, H1)
        enc0_seq[t] = h.astype(bf)        # feed next layer's batched projection

    # ======================= Encoder layer 1: LSTM(H1 -> H0) ==================
    gx1 = (jnp.dot(enc0_seq[...].reshape(T * B, H1), e1_wih_b,
                   preferred_element_type=jnp.float32)
           + e1_b[...]).reshape(T, B, 4 * H0)
    h, c = zeros(H0), zeros(H0)
    for t in range(T):
        h, c = cell_step(gx1[t], h, c, e1_whh_b, H0)
    emb = h                               # (B, H0) == hidden_n of last encoder LSTM

    # ======================= Decoder layer 0: LSTM(H0 -> H0) ==================
    # Input is the repeated embedding -> projection is constant over t: compute once.
    gx_d0 = (jnp.dot(emb.astype(bf), d0_wih_b, preferred_element_type=jnp.float32)
             + d0_b[...])                 # (B, 4H0), reused every step
    h, c = zeros(H0), zeros(H0)
    for t in range(T):
        h, c = cell_step(gx_d0, h, c, d0_whh_b, H0)
        dec0_seq[t] = h.astype(bf)

    # ======================= Decoder layer 1: LSTM(H0 -> H1) ==================
    gx_d1 = (jnp.dot(dec0_seq[...].reshape(T * B, H0), d1_wih_b,
                     preferred_element_type=jnp.float32)
             + d1_b[...]).reshape(T, B, 4 * H1)
    h, c = zeros(H1), zeros(H1)
    for t in range(T):
        h, c = cell_step(gx_d1[t], h, c, d1_whh_b, H1)
        dec1_seq[t] = h.astype(bf)

    # ======================= Linear(H1 -> F), off the recurrent chain =========
    y = (jnp.dot(dec1_seq[...].reshape(T * B, H1), lin_w_b,
                 preferred_element_type=jnp.float32)
         + lin_b[...]).reshape(T, B, F)
    out_ref[...] = y                      # single bulk store


# ---------------------------------------------------------------------------
# Wrapper
# ---------------------------------------------------------------------------
def lstm_autoencoder_forward(x, params):
    """x: (B, T, F) batch-first (PyTorch batch_first=True). Returns (B, T, F)."""
    B, T, F = x.shape
    H0 = params["enc1"][1].shape[0]       # 64
    H1 = params["enc0"][1].shape[0]       # 128
    x_tm = jnp.transpose(x, (1, 0, 2))    # time-major (T, B, F)

    operands = [x_tm]
    for name in ("enc0", "enc1", "dec0", "dec1"):
        operands.extend(params[name])
    operands.extend(params["lin"])

    vmem = pl.BlockSpec(memory_space=pltpu.MemorySpace.VMEM)
    y_tm = pl.pallas_call(
        autoencoder_kernel,
        out_shape=jax.ShapeDtypeStruct((T, B, F), jnp.float32),
        in_specs=[vmem] * len(operands),
        out_specs=vmem,
        scratch_shapes=[
            pltpu.VMEM((T, B, H1), jnp.bfloat16),   # encoder-0 h sequence
            pltpu.VMEM((T, B, H0), jnp.bfloat16),   # decoder-0 h sequence
            pltpu.VMEM((T, B, H1), jnp.bfloat16),   # decoder-1 h sequence
        ],
    )(*operands)
    return jnp.transpose(y_tm, (1, 0, 2))    # back to (B, T, F)


# ---------------------------------------------------------------------------
# Parameter initialization (PyTorch-style U(-1/sqrt(H), 1/sqrt(H)); gate layout [i,f,o,g])
# ---------------------------------------------------------------------------
def init_lstm_params(key, d_in, h):
    k = 1.0 / math.sqrt(h)
    k1, k2, k3, k4 = jax.random.split(key, 4)
    w_ih = jax.random.uniform(k1, (4 * h, d_in), jnp.float32, -k, k)
    w_hh = jax.random.uniform(k2, (4 * h, h), jnp.float32, -k, k)
    b_ih = jax.random.uniform(k3, (4 * h,), jnp.float32, -k, k)
    b_hh = jax.random.uniform(k4, (4 * h,), jnp.float32, -k, k)
    # transposed weights, fused bias; columns interpreted as [i, f, o, g]
    return (w_ih.T, w_hh.T, (b_ih + b_hh).reshape(1, 4 * h))


def init_linear_params(key, d_in, d_out):
    k = 1.0 / math.sqrt(d_in)
    k1, k2 = jax.random.split(key)
    w = jax.random.uniform(k1, (d_out, d_in), jnp.float32, -k, k)
    b = jax.random.uniform(k2, (d_out,), jnp.float32, -k, k)
    return w.T, b.reshape(1, d_out)


def init_autoencoder_params(key, n_features, embedding_dim=64, num_layers=2):
    num_neurons = [embedding_dim]
    hidden = embedding_dim
    for _ in range(num_layers - 1):
        hidden *= 2
        num_neurons.append(hidden)
    num_neurons.append(n_features)           # e.g. [64, 128, F]

    keys = jax.random.split(key, 5)
    params = {
        # Encoder: LSTM(F -> 128), LSTM(128 -> 64)
        "enc0": init_lstm_params(keys[0], num_neurons[2], num_neurons[1]),
        "enc1": init_lstm_params(keys[1], num_neurons[1], num_neurons[0]),
        # Decoder: LSTM(64 -> 64), LSTM(64 -> 128), Linear(128 -> F)
        "dec0": init_lstm_params(keys[2], num_neurons[0], num_neurons[0]),
        "dec1": init_lstm_params(keys[3], num_neurons[0], num_neurons[1]),
        "lin": init_linear_params(keys[4], num_neurons[1], num_neurons[2]),
    }
    return params, num_neurons


# ---------------------------------------------------------------------------
# Pure-JAX reference (same gate layout, full-precision f32 matmuls)
# ---------------------------------------------------------------------------
def _hdot(a, b):
    return jnp.dot(a, b, precision=jax.lax.Precision.HIGHEST)


def _ref_lstm(x_tm, w_ih_t, w_hh_t, bias):
    T, B, _ = x_tm.shape
    H = w_hh_t.shape[0]

    def step(carry, x_t):
        h, c = carry
        gates = _hdot(x_t, w_ih_t) + _hdot(h, w_hh_t) + bias
        i = jax.nn.sigmoid(gates[:, 0 * H:1 * H])
        f = jax.nn.sigmoid(gates[:, 1 * H:2 * H])
        o = jax.nn.sigmoid(gates[:, 2 * H:3 * H])
        g = jnp.tanh(gates[:, 3 * H:4 * H])
        c = f * c + i * g
        h = o * jnp.tanh(c)
        return (h, c), h

    init = (jnp.zeros((B, H), jnp.float32), jnp.zeros((B, H), jnp.float32))
    _, hs = jax.lax.scan(step, init, x_tm)
    return hs


def _ref_forward(x, params):
    B, T, F = x.shape
    x_tm = jnp.transpose(x, (1, 0, 2))
    h = _ref_lstm(x_tm, *params["enc0"])
    h = _ref_lstm(h, *params["enc1"])
    emb = jnp.tile(h[-1:], (T, 1, 1))
    d = _ref_lstm(emb, *params["dec0"])
    d = _ref_lstm(d, *params["dec1"])
    w_t, b = params["lin"]
    y = _hdot(d, w_t) + b
    return jnp.transpose(y, (1, 0, 2))


# ---------------------------------------------------------------------------
if __name__ == "__main__":
    B, T, F = 2, 8, 4            # batch, seq_len, n_features
    EMBED, NLAYERS = 64, 2

    key = jax.random.PRNGKey(0)
    kp, kx = jax.random.split(key)
    params, num_neurons = init_autoencoder_params(kp, F, EMBED, NLAYERS)

    x = jax.random.normal(kx, (B, T, F), dtype=jnp.float32)

    y = jax.block_until_ready(lstm_autoencoder_forward(x, params))
    assert y.shape == (B, T, F) and y.dtype == jnp.float32

    y_ref = jax.block_until_ready(_ref_forward(x, params))
    # bf16 MXU operands (f32 accumulation / state math) vs full-f32 reference
    np.testing.assert_allclose(np.asarray(y), np.asarray(y_ref),
                               rtol=2e-2, atol=2e-2)

    print("KERNEL_OK")
</pallas_src>

<mosaic_0001>
module attributes {stable_mosaic.version = 11 : i64} {
  func.func @autoencoder_kernel(%arg0: memref<8x2x4xf32, #tpu.memory_space<vmem>>, %arg1: memref<4x512xf32, #tpu.memory_space<vmem>>, %arg2: memref<128x512xf32, #tpu.memory_space<vmem>>, %arg3: memref<1x512xf32, #tpu.memory_space<vmem>>, %arg4: memref<128x256xf32, #tpu.memory_space<vmem>>, %arg5: memref<64x256xf32, #tpu.memory_space<vmem>>, %arg6: memref<1x256xf32, #tpu.memory_space<vmem>>, %arg7: memref<64x256xf32, #tpu.memory_space<vmem>>, %arg8: memref<64x256xf32, #tpu.memory_space<vmem>>, %arg9: memref<1x256xf32, #tpu.memory_space<vmem>>, %arg10: memref<64x512xf32, #tpu.memory_space<vmem>>, %arg11: memref<128x512xf32, #tpu.memory_space<vmem>>, %arg12: memref<1x512xf32, #tpu.memory_space<vmem>>, %arg13: memref<128x4xf32, #tpu.memory_space<vmem>>, %arg14: memref<1x4xf32, #tpu.memory_space<vmem>>, %arg15: memref<8x2x4xf32, #tpu.memory_space<vmem>>, %arg16: memref<8x2x128xbf16, #tpu.memory_space<vmem>>, %arg17: memref<8x2x64xbf16, #tpu.memory_space<vmem>>, %arg18: memref<8x2x128xbf16, #tpu.memory_space<vmem>>) attributes {dimension_semantics = [], scalar_prefetch = 0 : i64, scratch_operands = 3 : i64, tpu.core_type = #tpu.core_type<tc>} {
    %c0 = arith.constant 0 : index
    %c0_0 = arith.constant 0 : index
    %0 = vector.load %arg1[%c0, %c0_0] : memref<4x512xf32, #tpu.memory_space<vmem>>, vector<4x512xf32>
    %1 = arith.truncf %0 : vector<4x512xf32> to vector<4x512xbf16>
    %c0_1 = arith.constant 0 : index
    %c0_2 = arith.constant 0 : index
    %2 = vector.load %arg2[%c0_1, %c0_2] : memref<128x512xf32, #tpu.memory_space<vmem>>, vector<128x512xf32>
    %3 = arith.truncf %2 : vector<128x512xf32> to vector<128x512xbf16>
    %c0_3 = arith.constant 0 : index
    %c0_4 = arith.constant 0 : index
    %4 = vector.load %arg4[%c0_3, %c0_4] : memref<128x256xf32, #tpu.memory_space<vmem>>, vector<128x256xf32>
    %5 = arith.truncf %4 : vector<128x256xf32> to vector<128x256xbf16>
    %c0_5 = arith.constant 0 : index
    %c0_6 = arith.constant 0 : index
    %6 = vector.load %arg5[%c0_5, %c0_6] : memref<64x256xf32, #tpu.memory_space<vmem>>, vector<64x256xf32>
    %7 = arith.truncf %6 : vector<64x256xf32> to vector<64x256xbf16>
    %c0_7 = arith.constant 0 : index
    %c0_8 = arith.constant 0 : index
    %8 = vector.load %arg7[%c0_7, %c0_8] : memref<64x256xf32, #tpu.memory_space<vmem>>, vector<64x256xf32>
    %9 = arith.truncf %8 : vector<64x256xf32> to vector<64x256xbf16>
    %c0_9 = arith.constant 0 : index
    %c0_10 = arith.constant 0 : index
    %10 = vector.load %arg8[%c0_9, %c0_10] : memref<64x256xf32, #tpu.memory_space<vmem>>, vector<64x256xf32>
    %11 = arith.truncf %10 : vector<64x256xf32> to vector<64x256xbf16>
    %c0_11 = arith.constant 0 : index
    %c0_12 = arith.constant 0 : index
    %12 = vector.load %arg10[%c0_11, %c0_12] : memref<64x512xf32, #tpu.memory_space<vmem>>, vector<64x512xf32>
    %13 = arith.truncf %12 : vector<64x512xf32> to vector<64x512xbf16>
    %c0_13 = arith.constant 0 : index
    %c0_14 = arith.constant 0 : index
    %14 = vector.load %arg11[%c0_13, %c0_14] : memref<128x512xf32, #tpu.memory_space<vmem>>, vector<128x512xf32>
    %15 = arith.truncf %14 : vector<128x512xf32> to vector<128x512xbf16>
    %c0_15 = arith.constant 0 : index
    %c0_16 = arith.constant 0 : index
    %16 = vector.load %arg13[%c0_15, %c0_16] : memref<128x4xf32, #tpu.memory_space<vmem>>, vector<128x4xf32>
    %17 = arith.truncf %16 : vector<128x4xf32> to vector<128x4xbf16>
    %c0_17 = arith.constant 0 : index
    %c0_18 = arith.constant 0 : index
    %c0_19 = arith.constant 0 : index
    %18 = vector.load %arg0[%c0_17, %c0_18, %c0_19] : memref<8x2x4xf32, #tpu.memory_space<vmem>>, vector<8x2x4xf32>
    %19 = vector.shape_cast %18 : vector<8x2x4xf32> to vector<16x4xf32>
    %20 = arith.truncf %19 : vector<16x4xf32> to vector<16x4xbf16>
    %cst = arith.constant dense<0.000000e+00> : vector<16x512xf32>
    %21 = tpu.matmul %20, %1, %cst {dimension_numbers = #tpu.dot_dimension_numbers<[1], [0], [0], [1], [0, 0, 1, 1], [], []>} : vector<16x4xbf16>, vector<4x512xbf16>, vector<16x512xf32> -> vector<16x512xf32>
    %c0_20 = arith.constant 0 : index
    %c0_21 = arith.constant 0 : index
    %22 = vector.load %arg3[%c0_20, %c0_21] : memref<1x512xf32, #tpu.memory_space<vmem>>, vector<1x512xf32>
    %23 = vector.broadcast %22 : vector<1x512xf32> to vector<16x512xf32>
    %24 = arith.addf %21, %23 : vector<16x512xf32>
    %25 = vector.shape_cast %24 : vector<16x512xf32> to vector<8x2x512xf32>
    %cst_22 = arith.constant 0.000000e+00 : f32
    %26 = vector.broadcast %cst_22 : f32 to vector<2x128xf32>
    %cst_23 = arith.constant 0.000000e+00 : f32
    %27 = vector.broadcast %cst_23 : f32 to vector<2x128xf32>
    %28 = vector.extract_strided_slice %25 {offsets = [0, 0, 0], sizes = [1, 2, 512], strides = [1, 1, 1]} : vector<8x2x512xf32> to vector<1x2x512xf32>
    %29 = vector.shape_cast %28 : vector<1x2x512xf32> to vector<2x512xf32>
    %30 = arith.truncf %26 : vector<2x128xf32> to vector<2x128xbf16>
    %cst_24 = arith.constant dense<0.000000e+00> : vector<2x512xf32>
    %31 = tpu.matmul %30, %3, %cst_24 {dimension_numbers = #tpu.dot_dimension_numbers<[1], [0], [0], [1], [0, 0, 1, 1], [], []>} : vector<2x128xbf16>, vector<128x512xbf16>, vector<2x512xf32> -> vector<2x512xf32>
    %32 = arith.addf %29, %31 : vector<2x512xf32>
    %33 = vector.extract_strided_slice %32 {offsets = [0, 0], sizes = [2, 384], strides = [1, 1]} : vector<2x512xf32> to vector<2x384xf32>
    %34 = arith.negf %33 : vector<2x384xf32>
    %35 = math.exp %34 : vector<2x384xf32>
    %cst_25 = arith.constant 1.000000e+00 : f32
    %36 = vector.broadcast %cst_25 : f32 to vector<2x384xf32>
    %37 = arith.addf %36, %35 : vector<2x384xf32>
    %38 = arith.divf %36, %37 : vector<2x384xf32>
    %39 = vector.extract_strided_slice %38 {offsets = [0, 0], sizes = [2, 128], strides = [1, 1]} : vector<2x384xf32> to vector<2x128xf32>
    %40 = vector.extract_strided_slice %38 {offsets = [0, 128], sizes = [2, 128], strides = [1, 1]} : vector<2x384xf32> to vector<2x128xf32>
    %41 = vector.extract_strided_slice %38 {offsets = [0, 256], sizes = [2, 128], strides = [1, 1]} : vector<2x384xf32> to vector<2x128xf32>
    %42 = vector.extract_strided_slice %32 {offsets = [0, 384], sizes = [2, 128], strides = [1, 1]} : vector<2x512xf32> to vector<2x128xf32>
    %43 = math.tanh %42 : vector<2x128xf32>
    %44 = arith.mulf %40, %27 : vector<2x128xf32>
    %45 = arith.mulf %39, %43 : vector<2x128xf32>
    %46 = arith.addf %44, %45 : vector<2x128xf32>
    %47 = math.tanh %46 : vector<2x128xf32>
    %48 = arith.mulf %41, %47 : vector<2x128xf32>
    %49 = arith.truncf %48 : vector<2x128xf32> to vector<2x128xbf16>
    %c0_26 = arith.constant 0 : index
    %c0_27 = arith.constant 0 : index
    %c0_28 = arith.constant 0 : index
    %50 = vector.load %arg16[%c0_26, %c0_27, %c0_28] : memref<8x2x128xbf16, #tpu.memory_space<vmem>>, vector<1x2x128xbf16>
    %51 = vector.shape_cast %50 : vector<1x2x128xbf16> to vector<2x128xbf16>
    %52 = vector.shape_cast %49 : vector<2x128xbf16> to vector<1x2x128xbf16>
    tpu.vector_store %arg16[%c0_26, %c0_27, %c0_28], %52 {strides = array<i32>} : memref<8x2x128xbf16, #tpu.memory_space<vmem>>, vector<1x2x128xbf16>,
    %53 = vector.extract_strided_slice %25 {offsets = [1, 0, 0], sizes = [1, 2, 512], strides = [1, 1, 1]} : vector<8x2x512xf32> to vector<1x2x512xf32>
    %54 = vector.shape_cast %53 : vector<1x2x512xf32> to vector<2x512xf32>
    %55 = arith.truncf %48 : vector<2x128xf32> to vector<2x128xbf16>
    %cst_29 = arith.constant dense<0.000000e+00> : vector<2x512xf32>
    %56 = tpu.matmul %55, %3, %cst_29 {dimension_numbers = #tpu.dot_dimension_numbers<[1], [0], [0], [1], [0, 0, 1, 1], [], []>} : vector<2x128xbf16>, vector<128x512xbf16>, vector<2x512xf32> -> vector<2x512xf32>
    %57 = arith.addf %54, %56 : vector<2x512xf32>
    %58 = vector.extract_strided_slice %57 {offsets = [0, 0], sizes = [2, 384], strides = [1, 1]} : vector<2x512xf32> to vector<2x384xf32>
    %59 = arith.negf %58 : vector<2x384xf32>
    %60 = math.exp %59 : vector<2x384xf32>
    %cst_30 = arith.constant 1.000000e+00 : f32
    %61 = vector.broadcast %cst_30 : f32 to vector<2x384xf32>
    %62 = arith.addf %61, %60 : vector<2x384xf32>
    %63 = arith.divf %61, %62 : vector<2x384xf32>
    %64 = vector.extract_strided_slice %63 {offsets = [0, 0], sizes = [2, 128], strides = [1, 1]} : vector<2x384xf32> to vector<2x128xf32>
    %65 = vector.extract_strided_slice %63 {offsets = [0, 128], sizes = [2, 128], strides = [1, 1]} : vector<2x384xf32> to vector<2x128xf32>
    %66 = vector.extract_strided_slice %63 {offsets = [0, 256], sizes = [2, 128], strides = [1, 1]} : vector<2x384xf32> to vector<2x128xf32>
    %67 = vector.extract_strided_slice %57 {offsets = [0, 384], sizes = [2, 128], strides = [1, 1]} : vector<2x512xf32> to vector<2x128xf32>
    %68 = math.tanh %67 : vector<2x128xf32>
    %69 = arith.mulf %65, %46 : vector<2x128xf32>
    %70 = arith.mulf %64, %68 : vector<2x128xf32>
    %71 = arith.addf %69, %70 : vector<2x128xf32>
    %72 = math.tanh %71 : vector<2x128xf32>
    %73 = arith.mulf %66, %72 : vector<2x128xf32>
    %74 = arith.truncf %73 : vector<2x128xf32> to vector<2x128xbf16>
    %c1 = arith.constant 1 : index
    %c0_31 = arith.constant 0 : index
    %c0_32 = arith.constant 0 : index
    %75 = vector.load %arg16[%c1, %c0_31, %c0_32] : memref<8x2x128xbf16, #tpu.memory_space<vmem>>, vector<1x2x128xbf16>
    %76 = vector.shape_cast %75 : vector<1x2x128xbf16> to vector<2x128xbf16>
    %77 = vector.shape_cast %74 : vector<2x128xbf16> to vector<1x2x128xbf16>
    tpu.vector_store %arg16[%c1, %c0_31, %c0_32], %77 {strides = array<i32>} : memref<8x2x128xbf16, #tpu.memory_space<vmem>>, vector<1x2x128xbf16>,
    %78 = vector.extract_strided_slice %25 {offsets = [2, 0, 0], sizes = [1, 2, 512], strides = [1, 1, 1]} : vector<8x2x512xf32> to vector<1x2x512xf32>
    %79 = vector.shape_cast %78 : vector<1x2x512xf32> to vector<2x512xf32>
    %80 = arith.truncf %73 : vector<2x128xf32> to vector<2x128xbf16>
    %cst_33 = arith.constant dense<0.000000e+00> : vector<2x512xf32>
    %81 = tpu.matmul %80, %3, %cst_33 {dimension_numbers = #tpu.dot_dimension_numbers<[1], [0], [0], [1], [0, 0, 1, 1], [], []>} : vector<2x128xbf16>, vector<128x512xbf16>, vector<2x512xf32> -> vector<2x512xf32>
    %82 = arith.addf %79, %81 : vector<2x512xf32>
    %83 = vector.extract_strided_slice %82 {offsets = [0, 0], sizes = [2, 384], strides = [1, 1]} : vector<2x512xf32> to vector<2x384xf32>
    %84 = arith.negf %83 : vector<2x384xf32>
    %85 = math.exp %84 : vector<2x384xf32>
    %cst_34 = arith.constant 1.000000e+00 : f32
    %86 = vector.broadcast %cst_34 : f32 to vector<2x384xf32>
    %87 = arith.addf %86, %85 : vector<2x384xf32>
    %88 = arith.divf %86, %87 : vector<2x384xf32>
    %89 = vector.extract_strided_slice %88 {offsets = [0, 0], sizes = [2, 128], strides = [1, 1]} : vector<2x384xf32> to vector<2x128xf32>
    %90 = vector.extract_strided_slice %88 {offsets = [0, 128], sizes = [2, 128], strides = [1, 1]} : vector<2x384xf32> to vector<2x128xf32>
    %91 = vector.extract_strided_slice %88 {offsets = [0, 256], sizes = [2, 128], strides = [1, 1]} : vector<2x384xf32> to vector<2x128xf32>
    %92 = vector.extract_strided_slice %82 {offsets = [0, 384], sizes = [2, 128], strides = [1, 1]} : vector<2x512xf32> to vector<2x128xf32>
    %93 = math.tanh %92 : vector<2x128xf32>
    %94 = arith.mulf %90, %71 : vector<2x128xf32>
    %95 = arith.mulf %89, %93 : vector<2x128xf32>
    %96 = arith.addf %94, %95 : vector<2x128xf32>
    %97 = math.tanh %96 : vector<2x128xf32>
    %98 = arith.mulf %91, %97 : vector<2x128xf32>
    %99 = arith.truncf %98 : vector<2x128xf32> to vector<2x128xbf16>
    %c2 = arith.constant 2 : index
    %c0_35 = arith.constant 0 : index
    %c0_36 = arith.constant 0 : index
    %100 = vector.load %arg16[%c2, %c0_35, %c0_36] : memref<8x2x128xbf16, #tpu.memory_space<vmem>>, vector<1x2x128xbf16>
    %101 = vector.shape_cast %100 : vector<1x2x128xbf16> to vector<2x128xbf16>
    %102 = vector.shape_cast %99 : vector<2x128xbf16> to vector<1x2x128xbf16>
    tpu.vector_store %arg16[%c2, %c0_35, %c0_36], %102 {strides = array<i32>} : memref<8x2x128xbf16, #tpu.memory_space<vmem>>, vector<1x2x128xbf16>,
    %103 = vector.extract_strided_slice %25 {offsets = [3, 0, 0], sizes = [1, 2, 512], strides = [1, 1, 1]} : vector<8x2x512xf32> to vector<1x2x512xf32>
    %104 = vector.shape_cast %103 : vector<1x2x512xf32> to vector<2x512xf32>
    %105 = arith.truncf %98 : vector<2x128xf32> to vector<2x128xbf16>
    %cst_37 = arith.constant dense<0.000000e+00> : vector<2x512xf32>
    %106 = tpu.matmul %105, %3, %cst_37 {dimension_numbers = #tpu.dot_dimension_numbers<[1], [0], [0], [1], [0, 0, 1, 1], [], []>} : vector<2x128xbf16>, vector<128x512xbf16>, vector<2x512xf32> -> vector<2x512xf32>
    %107 = arith.addf %104, %106 : vector<2x512xf32>
    %108 = vector.extract_strided_slice %107 {offsets = [0, 0], sizes = [2, 384], strides = [1, 1]} : vector<2x512xf32> to vector<2x384xf32>
    %109 = arith.negf %108 : vector<2x384xf32>
    %110 = math.exp %109 : vector<2x384xf32>
    %cst_38 = arith.constant 1.000000e+00 : f32
    %111 = vector.broadcast %cst_38 : f32 to vector<2x384xf32>
    %112 = arith.addf %111, %110 : vector<2x384xf32>
    %113 = arith.divf %111, %112 : vector<2x384xf32>
    %114 = vector.extract_strided_slice %113 {offsets = [0, 0], sizes = [2, 128], strides = [1, 1]} : vector<2x384xf32> to vector<2x128xf32>
    %115 = vector.extract_strided_slice %113 {offsets = [0, 128], sizes = [2, 128], strides = [1, 1]} : vector<2x384xf32> to vector<2x128xf32>
    %116 = vector.extract_strided_slice %113 {offsets = [0, 256], sizes = [2, 128], strides = [1, 1]} : vector<2x384xf32> to vector<2x128xf32>
    %117 = vector.extract_strided_slice %107 {offsets = [0, 384], sizes = [2, 128], strides = [1, 1]} : vector<2x512xf32> to vector<2x128xf32>
    %118 = math.tanh %117 : vector<2x128xf32>
    %119 = arith.mulf %115, %96 : vector<2x128xf32>
    %120 = arith.mulf %114, %118 : vector<2x128xf32>
    %121 = arith.addf %119, %120 : vector<2x128xf32>
    %122 = math.tanh %121 : vector<2x128xf32>
    %123 = arith.mulf %116, %122 : vector<2x128xf32>
    %124 = arith.truncf %123 : vector<2x128xf32> to vector<2x128xbf16>
    %c3 = arith.constant 3 : index
    %c0_39 = arith.constant 0 : index
    %c0_40 = arith.constant 0 : index
    %125 = vector.load %arg16[%c3, %c0_39, %c0_40] : memref<8x2x128xbf16, #tpu.memory_space<vmem>>, vector<1x2x128xbf16>
    %126 = vector.shape_cast %125 : vector<1x2x128xbf16> to vector<2x128xbf16>
    %127 = vector.shape_cast %124 : vector<2x128xbf16> to vector<1x2x128xbf16>
    tpu.vector_store %arg16[%c3, %c0_39, %c0_40], %127 {strides = array<i32>} : memref<8x2x128xbf16, #tpu.memory_space<vmem>>, vector<1x2x128xbf16>,
    %128 = vector.extract_strided_slice %25 {offsets = [4, 0, 0], sizes = [1, 2, 512], strides = [1, 1, 1]} : vector<8x2x512xf32> to vector<1x2x512xf32>
    %129 = vector.shape_cast %128 : vector<1x2x512xf32> to vector<2x512xf32>
    %130 = arith.truncf %123 : vector<2x128xf32> to vector<2x128xbf16>
    %cst_41 = arith.constant dense<0.000000e+00> : vector<2x512xf32>
    %131 = tpu.matmul %130, %3, %cst_41 {dimension_numbers = #tpu.dot_dimension_numbers<[1], [0], [0], [1], [0, 0, 1, 1], [], []>} : vector<2x128xbf16>, vector<128x512xbf16>, vector<2x512xf32> -> vector<2x512xf32>
    %132 = arith.addf %129, %131 : vector<2x512xf32>
    %133 = vector.extract_strided_slice %132 {offsets = [0, 0], sizes = [2, 384], strides = [1, 1]} : vector<2x512xf32> to vector<2x384xf32>
    %134 = arith.negf %133 : vector<2x384xf32>
    %135 = math.exp %134 : vector<2x384xf32>
    %cst_42 = arith.constant 1.000000e+00 : f32
    %136 = vector.broadcast %cst_42 : f32 to vector<2x384xf32>
    %137 = arith.addf %136, %135 : vector<2x384xf32>
    %138 = arith.divf %136, %137 : vector<2x384xf32>
    %139 = vector.extract_strided_slice %138 {offsets = [0, 0], sizes = [2, 128], strides = [1, 1]} : vector<2x384xf32> to vector<2x128xf32>
    %140 = vector.extract_strided_slice %138 {offsets = [0, 128], sizes = [2, 128], strides = [1, 1]} : vector<2x384xf32> to vector<2x128xf32>
    %141 = vector.extract_strided_slice %138 {offsets = [0, 256], sizes = [2, 128], strides = [1, 1]} : vector<2x384xf32> to vector<2x128xf32>
    %142 = vector.extract_strided_slice %132 {offsets = [0, 384], sizes = [2, 128], strides = [1, 1]} : vector<2x512xf32> to vector<2x128xf32>
    %143 = math.tanh %142 : vector<2x128xf32>
    %144 = arith.mulf %140, %121 : vector<2x128xf32>
    %145 = arith.mulf %139, %143 : vector<2x128xf32>
    %146 = arith.addf %144, %145 : vector<2x128xf32>
    %147 = math.tanh %146 : vector<2x128xf32>
    %148 = arith.mulf %141, %147 : vector<2x128xf32>
    %149 = arith.truncf %148 : vector<2x128xf32> to vector<2x128xbf16>
    %c4 = arith.constant 4 : index
    %c0_43 = arith.constant 0 : index
    %c0_44 = arith.constant 0 : index
    %150 = vector.load %arg16[%c4, %c0_43, %c0_44] : memref<8x2x128xbf16, #tpu.memory_space<vmem>>, vector<1x2x128xbf16>
    %151 = vector.shape_cast %150 : vector<1x2x128xbf16> to vector<2x128xbf16>
    %152 = vector.shape_cast %149 : vector<2x128xbf16> to vector<1x2x128xbf16>
    tpu.vector_store %arg16[%c4, %c0_43, %c0_44], %152 {strides = array<i32>} : memref<8x2x128xbf16, #tpu.memory_space<vmem>>, vector<1x2x128xbf16>,
    %153 = vector.extract_strided_slice %25 {offsets = [5, 0, 0], sizes = [1, 2, 512], strides = [1, 1, 1]} : vector<8x2x512xf32> to vector<1x2x512xf32>
    %154 = vector.shape_cast %153 : vector<1x2x512xf32> to vector<2x512xf32>
    %155 = arith.truncf %148 : vector<2x128xf32> to vector<2x128xbf16>
    %cst_45 = arith.constant dense<0.000000e+00> : vector<2x512xf32>
    %156 = tpu.matmul %155, %3, %cst_45 {dimension_numbers = #tpu.dot_dimension_numbers<[1], [0], [0], [1], [0, 0, 1, 1], [], []>} : vector<2x128xbf16>, vector<128x512xbf16>, vector<2x512xf32> -> vector<2x512xf32>
    %157 = arith.addf %154, %156 : vector<2x512xf32>
    %158 = vector.extract_strided_slice %157 {offsets = [0, 0], sizes = [2, 384], strides = [1, 1]} : vector<2x512xf32> to vector<2x384xf32>
    %159 = arith.negf %158 : vector<2x384xf32>
    %160 = math.exp %159 : vector<2x384xf32>
    %cst_46 = arith.constant 1.000000e+00 : f32
    %161 = vector.broadcast %cst_46 : f32 to vector<2x384xf32>
    %162 = arith.addf %161, %160 : vector<2x384xf32>
    %163 = arith.divf %161, %162 : vector<2x384xf32>
    %164 = vector.extract_strided_slice %163 {offsets = [0, 0], sizes = [2, 128], strides = [1, 1]} : vector<2x384xf32> to vector<2x128xf32>
    %165 = vector.extract_strided_slice %163 {offsets = [0, 128], sizes = [2, 128], strides = [1, 1]} : vector<2x384xf32> to vector<2x128xf32>
    %166 = vector.extract_strided_slice %163 {offsets = [0, 256], sizes = [2, 128], strides = [1, 1]} : vector<2x384xf32> to vector<2x128xf32>
    %167 = vector.extract_strided_slice %157 {offsets = [0, 384], sizes = [2, 128], strides = [1, 1]} : vector<2x512xf32> to vector<2x128xf32>
    %168 = math.tanh %167 : vector<2x128xf32>
    %169 = arith.mulf %165, %146 : vector<2x128xf32>
    %170 = arith.mulf %164, %168 : vector<2x128xf32>
    %171 = arith.addf %169, %170 : vector<2x128xf32>
    %172 = math.tanh %171 : vector<2x128xf32>
    %173 = arith.mulf %166, %172 : vector<2x128xf32>
    %174 = arith.truncf %173 : vector<2x128xf32> to vector<2x128xbf16>
    %c5 = arith.constant 5 : index
    %c0_47 = arith.constant 0 : index
    %c0_48 = arith.constant 0 : index
    %175 = vector.load %arg16[%c5, %c0_47, %c0_48] : memref<8x2x128xbf16, #tpu.memory_space<vmem>>, vector<1x2x128xbf16>
    %176 = vector.shape_cast %175 : vector<1x2x128xbf16> to vector<2x128xbf16>
    %177 = vector.shape_cast %174 : vector<2x128xbf16> to vector<1x2x128xbf16>
    tpu.vector_store %arg16[%c5, %c0_47, %c0_48], %177 {strides = array<i32>} : memref<8x2x128xbf16, #tpu.memory_space<vmem>>, vector<1x2x128xbf16>,
    %178 = vector.extract_strided_slice %25 {offsets = [6, 0, 0], sizes = [1, 2, 512], strides = [1, 1, 1]} : vector<8x2x512xf32> to vector<1x2x512xf32>
    %179 = vector.shape_cast %178 : vector<1x2x512xf32> to vector<2x512xf32>
    %180 = arith.truncf %173 : vector<2x128xf32> to vector<2x128xbf16>
    %cst_49 = arith.constant dense<0.000000e+00> : vector<2x512xf32>
    %181 = tpu.matmul %180, %3, %cst_49 {dimension_numbers = #tpu.dot_dimension_numbers<[1], [0], [0], [1], [0, 0, 1, 1], [], []>} : vector<2x128xbf16>, vector<128x512xbf16>, vector<2x512xf32> -> vector<2x512xf32>
    %182 = arith.addf %179, %181 : vector<2x512xf32>
    %183 = vector.extract_strided_slice %182 {offsets = [0, 0], sizes = [2, 384], strides = [1, 1]} : vector<2x512xf32> to vector<2x384xf32>
    %184 = arith.negf %183 : vector<2x384xf32>
    %185 = math.exp %184 : vector<2x384xf32>
    %cst_50 = arith.constant 1.000000e+00 : f32
    %186 = vector.broadcast %cst_50 : f32 to vector<2x384xf32>
    %187 = arith.addf %186, %185 : vector<2x384xf32>
    %188 = arith.divf %186, %187 : vector<2x384xf32>
    %189 = vector.extract_strided_slice %188 {offsets = [0, 0], sizes = [2, 128], strides = [1, 1]} : vector<2x384xf32> to vector<2x128xf32>
    %190 = vector.extract_strided_slice %188 {offsets = [0, 128], sizes = [2, 128], strides = [1, 1]} : vector<2x384xf32> to vector<2x128xf32>
    %191 = vector.extract_strided_slice %188 {offsets = [0, 256], sizes = [2, 128], strides = [1, 1]} : vector<2x384xf32> to vector<2x128xf32>
    %192 = vector.extract_strided_slice %182 {offsets = [0, 384], sizes = [2, 128], strides = [1, 1]} : vector<2x512xf32> to vector<2x128xf32>
    %193 = math.tanh %192 : vector<2x128xf32>
    %194 = arith.mulf %190, %171 : vector<2x128xf32>
    %195 = arith.mulf %189, %193 : vector<2x128xf32>
    %196 = arith.addf %194, %195 : vector<2x128xf32>
    %197 = math.tanh %196 : vector<2x128xf32>
    %198 = arith.mulf %191, %197 : vector<2x128xf32>
    %199 = arith.truncf %198 : vector<2x128xf32> to vector<2x128xbf16>
    %c6 = arith.constant 6 : index
    %c0_51 = arith.constant 0 : index
    %c0_52 = arith.constant 0 : index
    %200 = vector.load %arg16[%c6, %c0_51, %c0_52] : memref<8x2x128xbf16, #tpu.memory_space<vmem>>, vector<1x2x128xbf16>
    %201 = vector.shape_cast %200 : vector<1x2x128xbf16> to vector<2x128xbf16>
    %202 = vector.shape_cast %199 : vector<2x128xbf16> to vector<1x2x128xbf16>
    tpu.vector_store %arg16[%c6, %c0_51, %c0_52], %202 {strides = array<i32>} : memref<8x2x128xbf16, #tpu.memory_space<vmem>>, vector<1x2x128xbf16>,
    %203 = vector.extract_strided_slice %25 {offsets = [7, 0, 0], sizes = [1, 2, 512], strides = [1, 1, 1]} : vector<8x2x512xf32> to vector<1x2x512xf32>
    %204 = vector.shape_cast %203 : vector<1x2x512xf32> to vector<2x512xf32>
    %205 = arith.truncf %198 : vector<2x128xf32> to vector<2x128xbf16>
    %cst_53 = arith.constant dense<0.000000e+00> : vector<2x512xf32>
    %206 = tpu.matmul %205, %3, %cst_53 {dimension_numbers = #tpu.dot_dimension_numbers<[1], [0], [0], [1], [0, 0, 1, 1], [], []>} : vector<2x128xbf16>, vector<128x512xbf16>, vector<2x512xf32> -> vector<2x512xf32>
    %207 = arith.addf %204, %206 : vector<2x512xf32>
    %208 = vector.extract_strided_slice %207 {offsets = [0, 0], sizes = [2, 384], strides = [1, 1]} : vector<2x512xf32> to vector<2x384xf32>
    %209 = arith.negf %208 : vector<2x384xf32>
    %210 = math.exp %209 : vector<2x384xf32>
    %cst_54 = arith.constant 1.000000e+00 : f32
    %211 = vector.broadcast %cst_54 : f32 to vector<2x384xf32>
    %212 = arith.addf %211, %210 : vector<2x384xf32>
    %213 = arith.divf %211, %212 : vector<2x384xf32>
    %214 = vector.extract_strided_slice %213 {offsets = [0, 0], sizes = [2, 128], strides = [1, 1]} : vector<2x384xf32> to vector<2x128xf32>
    %215 = vector.extract_strided_slice %213 {offsets = [0, 128], sizes = [2, 128], strides = [1, 1]} : vector<2x384xf32> to vector<2x128xf32>
    %216 = vector.extract_strided_slice %213 {offsets = [0, 256], sizes = [2, 128], strides = [1, 1]} : vector<2x384xf32> to vector<2x128xf32>
    %217 = vector.extract_strided_slice %207 {offsets = [0, 384], sizes = [2, 128], strides = [1, 1]} : vector<2x512xf32> to vector<2x128xf32>
    %218 = math.tanh %217 : vector<2x128xf32>
    %219 = arith.mulf %215, %196 : vector<2x128xf32>
    %220 = arith.mulf %214, %218 : vector<2x128xf32>
    %221 = arith.addf %219, %220 : vector<2x128xf32>
    %222 = math.tanh %221 : vector<2x128xf32>
    %223 = arith.mulf %216, %222 : vector<2x128xf32>
    %224 = arith.truncf %223 : vector<2x128xf32> to vector<2x128xbf16>
    %c7 = arith.constant 7 : index
    %c0_55 = arith.constant 0 : index
    %c0_56 = arith.constant 0 : index
    %225 = vector.load %arg16[%c7, %c0_55, %c0_56] : memref<8x2x128xbf16, #tpu.memory_space<vmem>>, vector<1x2x128xbf16>
    %226 = vector.shape_cast %225 : vector<1x2x128xbf16> to vector<2x128xbf16>
    %227 = vector.shape_cast %224 : vector<2x128xbf16> to vector<1x2x128xbf16>
    tpu.vector_store %arg16[%c7, %c0_55, %c0_56], %227 {strides = array<i32>} : memref<8x2x128xbf16, #tpu.memory_space<vmem>>, vector<1x2x128xbf16>,
    %c0_57 = arith.constant 0 : index
    %c0_58 = arith.constant 0 : index
    %c0_59 = arith.constant 0 : index
    %228 = vector.load %arg16[%c0_57, %c0_58, %c0_59] : memref<8x2x128xbf16, #tpu.memory_space<vmem>>, vector<8x2x128xbf16>
    %229 = vector.shape_cast %228 : vector<8x2x128xbf16> to vector<16x128xbf16>
    %cst_60 = arith.constant dense<0.000000e+00> : vector<16x256xf32>
    %230 = tpu.matmul %229, %5, %cst_60 {dimension_numbers = #tpu.dot_dimension_numbers<[1], [0], [0], [1], [0, 0, 1, 1], [], []>} : vector<16x128xbf16>, vector<128x256xbf16>, vector<16x256xf32> -> vector<16x256xf32>
    %c0_61 = arith.constant 0 : index
    %c0_62 = arith.constant 0 : index
    %231 = vector.load %arg6[%c0_61, %c0_62] : memref<1x256xf32, #tpu.memory_space<vmem>>, vector<1x256xf32>
    %232 = vector.broadcast %231 : vector<1x256xf32> to vector<16x256xf32>
    %233 = arith.addf %230, %232 : vector<16x256xf32>
    %234 = vector.shape_cast %233 : vector<16x256xf32> to vector<8x2x256xf32>
    %cst_63 = arith.constant 0.000000e+00 : f32
    %235 = vector.broadcast %cst_63 : f32 to vector<2x64xf32>
    %cst_64 = arith.constant 0.000000e+00 : f32
    %236 = vector.broadcast %cst_64 : f32 to vector<2x64xf32>
    %237 = vector.extract_strided_slice %234 {offsets = [0, 0, 0], sizes = [1, 2, 256], strides = [1, 1, 1]} : vector<8x2x256xf32> to vector<1x2x256xf32>
    %238 = vector.shape_cast %237 : vector<1x2x256xf32> to vector<2x256xf32>
    %239 = arith.truncf %235 : vector<2x64xf32> to vector<2x64xbf16>
    %cst_65 = arith.constant dense<0.000000e+00> : vector<2x256xf32>
    %240 = tpu.matmul %239, %7, %cst_65 {dimension_numbers = #tpu.dot_dimension_numbers<[1], [0], [0], [1], [0, 0, 1, 1], [], []>} : vector<2x64xbf16>, vector<64x256xbf16>, vector<2x256xf32> -> vector<2x256xf32>
    %241 = arith.addf %238, %240 : vector<2x256xf32>
    %242 = vector.extract_strided_slice %241 {offsets = [0, 0], sizes = [2, 192], strides = [1, 1]} : vector<2x256xf32> to vector<2x192xf32>
    %243 = arith.negf %242 : vector<2x192xf32>
    %244 = math.exp %243 : vector<2x192xf32>
    %cst_66 = arith.constant 1.000000e+00 : f32
    %245 = vector.broadcast %cst_66 : f32 to vector<2x192xf32>
    %246 = arith.addf %245, %244 : vector<2x192xf32>
    %247 = arith.divf %245, %246 : vector<2x192xf32>
    %248 = vector.extract_strided_slice %247 {offsets = [0, 0], sizes = [2, 64], strides = [1, 1]} : vector<2x192xf32> to vector<2x64xf32>
    %249 = vector.extract_strided_slice %247 {offsets = [0, 64], sizes = [2, 64], strides = [1, 1]} : vector<2x192xf32> to vector<2x64xf32>
    %250 = vector.extract_strided_slice %247 {offsets = [0, 128], sizes = [2, 64], strides = [1, 1]} : vector<2x192xf32> to vector<2x64xf32>
    %251 = vector.extract_strided_slice %241 {offsets = [0, 192], sizes = [2, 64], strides = [1, 1]} : vector<2x256xf32> to vector<2x64xf32>
    %252 = math.tanh %251 : vector<2x64xf32>
    %253 = arith.mulf %249, %236 : vector<2x64xf32>
    %254 = arith.mulf %248, %252 : vector<2x64xf32>
    %255 = arith.addf %253, %254 : vector<2x64xf32>
    %256 = math.tanh %255 : vector<2x64xf32>
    %257 = arith.mulf %250, %256 : vector<2x64xf32>
    %258 = vector.extract_strided_slice %234 {offsets = [1, 0, 0], sizes = [1, 2, 256], strides = [1, 1, 1]} : vector<8x2x256xf32> to vector<1x2x256xf32>
    %259 = vector.shape_cast %258 : vector<1x2x256xf32> to vector<2x256xf32>
    %260 = arith.truncf %257 : vector<2x64xf32> to vector<2x64xbf16>
    %cst_67 = arith.constant dense<0.000000e+00> : vector<2x256xf32>
    %261 = tpu.matmul %260, %7, %cst_67 {dimension_numbers = #tpu.dot_dimension_numbers<[1], [0], [0], [1], [0, 0, 1, 1], [], []>} : vector<2x64xbf16>, vector<64x256xbf16>, vector<2x256xf32> -> vector<2x256xf32>
    %262 = arith.addf %259, %261 : vector<2x256xf32>
    %263 = vector.extract_strided_slice %262 {offsets = [0, 0], sizes = [2, 192], strides = [1, 1]} : vector<2x256xf32> to vector<2x192xf32>
    %264 = arith.negf %263 : vector<2x192xf32>
    %265 = math.exp %264 : vector<2x192xf32>
    %cst_68 = arith.constant 1.000000e+00 : f32
    %266 = vector.broadcast %cst_68 : f32 to vector<2x192xf32>
    %267 = arith.addf %266, %265 : vector<2x192xf32>
    %268 = arith.divf %266, %267 : vector<2x192xf32>
    %269 = vector.extract_strided_slice %268 {offsets = [0, 0], sizes = [2, 64], strides = [1, 1]} : vector<2x192xf32> to vector<2x64xf32>
    %270 = vector.extract_strided_slice %268 {offsets = [0, 64], sizes = [2, 64], strides = [1, 1]} : vector<2x192xf32> to vector<2x64xf32>
    %271 = vector.extract_strided_slice %268 {offsets = [0, 128], sizes = [2, 64], strides = [1, 1]} : vector<2x192xf32> to vector<2x64xf32>
    %272 = vector.extract_strided_slice %262 {offsets = [0, 192], sizes = [2, 64], strides = [1, 1]} : vector<2x256xf32> to vector<2x64xf32>
    %273 = math.tanh %272 : vector<2x64xf32>
    %274 = arith.mulf %270, %255 : vector<2x64xf32>
    %275 = arith.mulf %269, %273 : vector<2x64xf32>
    %276 = arith.addf %274, %275 : vector<2x64xf32>
    %277 = math.tanh %276 : vector<2x64xf32>
    %278 = arith.mulf %271, %277 : vector<2x64xf32>
    %279 = vector.extract_strided_slice %234 {offsets = [2, 0, 0], sizes = [1, 2, 256], strides = [1, 1, 1]} : vector<8x2x256xf32> to vector<1x2x256xf32>
    %280 = vector.shape_cast %279 : vector<1x2x256xf32> to vector<2x256xf32>
    %281 = arith.truncf %278 : vector<2x64xf32> to vector<2x64xbf16>
    %cst_69 = arith.constant dense<0.000000e+00> : vector<2x256xf32>
    %282 = tpu.matmul %281, %7, %cst_69 {dimension_numbers = #tpu.dot_dimension_numbers<[1], [0], [0], [1], [0, 0, 1, 1], [], []>} : vector<2x64xbf16>, vector<64x256xbf16>, vector<2x256xf32> -> vector<2x256xf32>
    %283 = arith.addf %280, %282 : vector<2x256xf32>
    %284 = vector.extract_strided_slice %283 {offsets = [0, 0], sizes = [2, 192], strides = [1, 1]} : vector<2x256xf32> to vector<2x192xf32>
    %285 = arith.negf %284 : vector<2x192xf32>
    %286 = math.exp %285 : vector<2x192xf32>
    %cst_70 = arith.constant 1.000000e+00 : f32
    %287 = vector.broadcast %cst_70 : f32 to vector<2x192xf32>
    %288 = arith.addf %287, %286 : vector<2x192xf32>
    %289 = arith.divf %287, %288 : vector<2x192xf32>
    %290 = vector.extract_strided_slice %289 {offsets = [0, 0], sizes = [2, 64], strides = [1, 1]} : vector<2x192xf32> to vector<2x64xf32>
    %291 = vector.extract_strided_slice %289 {offsets = [0, 64], sizes = [2, 64], strides = [1, 1]} : vector<2x192xf32> to vector<2x64xf32>
    %292 = vector.extract_strided_slice %289 {offsets = [0, 128], sizes = [2, 64], strides = [1, 1]} : vector<2x192xf32> to vector<2x64xf32>
    %293 = vector.extract_strided_slice %283 {offsets = [0, 192], sizes = [2, 64], strides = [1, 1]} : vector<2x256xf32> to vector<2x64xf32>
    %294 = math.tanh %293 : vector<2x64xf32>
    %295 = arith.mulf %291, %276 : vector<2x64xf32>
    %296 = arith.mulf %290, %294 : vector<2x64xf32>
    %297 = arith.addf %295, %296 : vector<2x64xf32>
    %298 = math.tanh %297 : vector<2x64xf32>
    %299 = arith.mulf %292, %298 : vector<2x64xf32>
    %300 = vector.extract_strided_slice %234 {offsets = [3, 0, 0], sizes = [1, 2, 256], strides = [1, 1, 1]} : vector<8x2x256xf32> to vector<1x2x256xf32>
    %301 = vector.shape_cast %300 : vector<1x2x256xf32> to vector<2x256xf32>
    %302 = arith.truncf %299 : vector<2x64xf32> to vector<2x64xbf16>
    %cst_71 = arith.constant dense<0.000000e+00> : vector<2x256xf32>
    %303 = tpu.matmul %302, %7, %cst_71 {dimension_numbers = #tpu.dot_dimension_numbers<[1], [0], [0], [1], [0, 0, 1, 1], [], []>} : vector<2x64xbf16>, vector<64x256xbf16>, vector<2x256xf32> -> vector<2x256xf32>
    %304 = arith.addf %301, %303 : vector<2x256xf32>
    %305 = vector.extract_strided_slice %304 {offsets = [0, 0], sizes = [2, 192], strides = [1, 1]} : vector<2x256xf32> to vector<2x192xf32>
    %306 = arith.negf %305 : vector<2x192xf32>
    %307 = math.exp %306 : vector<2x192xf32>
    %cst_72 = arith.constant 1.000000e+00 : f32
    %308 = vector.broadcast %cst_72 : f32 to vector<2x192xf32>
    %309 = arith.addf %308, %307 : vector<2x192xf32>
    %310 = arith.divf %308, %309 : vector<2x192xf32>
    %311 = vector.extract_strided_slice %310 {offsets = [0, 0], sizes = [2, 64], strides = [1, 1]} : vector<2x192xf32> to vector<2x64xf32>
    %312 = vector.extract_strided_slice %310 {offsets = [0, 64], sizes = [2, 64], strides = [1, 1]} : vector<2x192xf32> to vector<2x64xf32>
    %313 = vector.extract_strided_slice %310 {offsets = [0, 128], sizes = [2, 64], strides = [1, 1]} : vector<2x192xf32> to vector<2x64xf32>
    %314 = vector.extract_strided_slice %304 {offsets = [0, 192], sizes = [2, 64], strides = [1, 1]} : vector<2x256xf32> to vector<2x64xf32>
    %315 = math.tanh %314 : vector<2x64xf32>
    %316 = arith.mulf %312, %297 : vector<2x64xf32>
    %317 = arith.mulf %311, %315 : vector<2x64xf32>
    %318 = arith.addf %316, %317 : vector<2x64xf32>
    %319 = math.tanh %318 : vector<2x64xf32>
    %320 = arith.mulf %313, %319 : vector<2x64xf32>
    %321 = vector.extract_strided_slice %234 {offsets = [4, 0, 0], sizes = [1, 2, 256], strides = [1, 1, 1]} : vector<8x2x256xf32> to vector<1x2x256xf32>
    %322 = vector.shape_cast %321 : vector<1x2x256xf32> to vector<2x256xf32>
    %323 = arith.truncf %320 : vector<2x64xf32> to vector<2x64xbf16>
    %cst_73 = arith.constant dense<0.000000e+00> : vector<2x256xf32>
    %324 = tpu.matmul %323, %7, %cst_73 {dimension_numbers = #tpu.dot_dimension_numbers<[1], [0], [0], [1], [0, 0, 1, 1], [], []>} : vector<2x64xbf16>, vector<64x256xbf16>, vector<2x256xf32> -> vector<2x256xf32>
    %325 = arith.addf %322, %324 : vector<2x256xf32>
    %326 = vector.extract_strided_slice %325 {offsets = [0, 0], sizes = [2, 192], strides = [1, 1]} : vector<2x256xf32> to vector<2x192xf32>
    %327 = arith.negf %326 : vector<2x192xf32>
    %328 = math.exp %327 : vector<2x192xf32>
    %cst_74 = arith.constant 1.000000e+00 : f32
    %329 = vector.broadcast %cst_74 : f32 to vector<2x192xf32>
    %330 = arith.addf %329, %328 : vector<2x192xf32>
    %331 = arith.divf %329, %330 : vector<2x192xf32>
    %332 = vector.extract_strided_slice %331 {offsets = [0, 0], sizes = [2, 64], strides = [1, 1]} : vector<2x192xf32> to vector<2x64xf32>
    %333 = vector.extract_strided_slice %331 {offsets = [0, 64], sizes = [2, 64], strides = [1, 1]} : vector<2x192xf32> to vector<2x64xf32>
    %334 = vector.extract_strided_slice %331 {offsets = [0, 128], sizes = [2, 64], strides = [1, 1]} : vector<2x192xf32> to vector<2x64xf32>
    %335 = vector.extract_strided_slice %325 {offsets = [0, 192], sizes = [2, 64], strides = [1, 1]} : vector<2x256xf32> to vector<2x64xf32>
    %336 = math.tanh %335 : vector<2x64xf32>
    %337 = arith.mulf %333, %318 : vector<2x64xf32>
    %338 = arith.mulf %332, %336 : vector<2x64xf32>
    %339 = arith.addf %337, %338 : vector<2x64xf32>
    %340 = math.tanh %339 : vector<2x64xf32>
    %341 = arith.mulf %334, %340 : vector<2x64xf32>
    %342 = vector.extract_strided_slice %234 {offsets = [5, 0, 0], sizes = [1, 2, 256], strides = [1, 1, 1]} : vector<8x2x256xf32> to vector<1x2x256xf32>
    %343 = vector.shape_cast %342 : vector<1x2x256xf32> to vector<2x256xf32>
    %344 = arith.truncf %341 : vector<2x64xf32> to vector<2x64xbf16>
    %cst_75 = arith.constant dense<0.000000e+00> : vector<2x256xf32>
    %345 = tpu.matmul %344, %7, %cst_75 {dimension_numbers = #tpu.dot_dimension_numbers<[1], [0], [0], [1], [0, 0, 1, 1], [], []>} : vector<2x64xbf16>, vector<64x256xbf16>, vector<2x256xf32> -> vector<2x256xf32>
    %346 = arith.addf %343, %345 : vector<2x256xf32>
    %347 = vector.extract_strided_slice %346 {offsets = [0, 0], sizes = [2, 192], strides = [1, 1]} : vector<2x256xf32> to vector<2x192xf32>
    %348 = arith.negf %347 : vector<2x192xf32>
    %349 = math.exp %348 : vector<2x192xf32>
    %cst_76 = arith.constant 1.000000e+00 : f32
    %350 = vector.broadcast %cst_76 : f32 to vector<2x192xf32>
    %351 = arith.addf %350, %349 : vector<2x192xf32>
    %352 = arith.divf %350, %351 : vector<2x192xf32>
    %353 = vector.extract_strided_slice %352 {offsets = [0, 0], sizes = [2, 64], strides = [1, 1]} : vector<2x192xf32> to vector<2x64xf32>
    %354 = vector.extract_strided_slice %352 {offsets = [0, 64], sizes = [2, 64], strides = [1, 1]} : vector<2x192xf32> to vector<2x64xf32>
    %355 = vector.extract_strided_slice %352 {offsets = [0, 128], sizes = [2, 64], strides = [1, 1]} : vector<2x192xf32> to vector<2x64xf32>
    %356 = vector.extract_strided_slice %346 {offsets = [0, 192], sizes = [2, 64], strides = [1, 1]} : vector<2x256xf32> to vector<2x64xf32>
    %357 = math.tanh %356 : vector<2x64xf32>
    %358 = arith.mulf %354, %339 : vector<2x64xf32>
    %359 = arith.mulf %353, %357 : vector<2x64xf32>
    %360 = arith.addf %358, %359 : vector<2x64xf32>
    %361 = math.tanh %360 : vector<2x64xf32>
    %362 = arith.mulf %355, %361 : vector<2x64xf32>
    %363 = vector.extract_strided_slice %234 {offsets = [6, 0, 0], sizes = [1, 2, 256], strides = [1, 1, 1]} : vector<8x2x256xf32> to vector<1x2x256xf32>
    %364 = vector.shape_cast %363 : vector<1x2x256xf32> to vector<2x256xf32>
    %365 = arith.truncf %362 : vector<2x64xf32> to vector<2x64xbf16>
    %cst_77 = arith.constant dense<0.000000e+00> : vector<2x256xf32>
    %366 = tpu.matmul %365, %7, %cst_77 {dimension_numbers = #tpu.dot_dimension_numbers<[1], [0], [0], [1], [0, 0, 1, 1], [], []>} : vector<2x64xbf16>, vector<64x256xbf16>, vector<2x256xf32> -> vector<2x256xf32>
    %367 = arith.addf %364, %366 : vector<2x256xf32>
    %368 = vector.extract_strided_slice %367 {offsets = [0, 0], sizes = [2, 192], strides = [1, 1]} : vector<2x256xf32> to vector<2x192xf32>
    %369 = arith.negf %368 : vector<2x192xf32>
    %370 = math.exp %369 : vector<2x192xf32>
    %cst_78 = arith.constant 1.000000e+00 : f32
    %371 = vector.broadcast %cst_78 : f32 to vector<2x192xf32>
    %372 = arith.addf %371, %370 : vector<2x192xf32>
    %373 = arith.divf %371, %372 : vector<2x192xf32>
    %374 = vector.extract_strided_slice %373 {offsets = [0, 0], sizes = [2, 64], strides = [1, 1]} : vector<2x192xf32> to vector<2x64xf32>
    %375 = vector.extract_strided_slice %373 {offsets = [0, 64], sizes = [2, 64], strides = [1, 1]} : vector<2x192xf32> to vector<2x64xf32>
    %376 = vector.extract_strided_slice %373 {offsets = [0, 128], sizes = [2, 64], strides = [1, 1]} : vector<2x192xf32> to vector<2x64xf32>
    %377 = vector.extract_strided_slice %367 {offsets = [0, 192], sizes = [2, 64], strides = [1, 1]} : vector<2x256xf32> to vector<2x64xf32>
    %378 = math.tanh %377 : vector<2x64xf32>
    %379 = arith.mulf %375, %360 : vector<2x64xf32>
    %380 = arith.mulf %374, %378 : vector<2x64xf32>
    %381 = arith.addf %379, %380 : vector<2x64xf32>
    %382 = math.tanh %381 : vector<2x64xf32>
    %383 = arith.mulf %376, %382 : vector<2x64xf32>
    %384 = vector.extract_strided_slice %234 {offsets = [7, 0, 0], sizes = [1, 2, 256], strides = [1, 1, 1]} : vector<8x2x256xf32> to vector<1x2x256xf32>
    %385 = vector.shape_cast %384 : vector<1x2x256xf32> to vector<2x256xf32>
    %386 = arith.truncf %383 : vector<2x64xf32> to vector<2x64xbf16>
    %cst_79 = arith.constant dense<0.000000e+00> : vector<2x256xf32>
    %387 = tpu.matmul %386, %7, %cst_79 {dimension_numbers = #tpu.dot_dimension_numbers<[1], [0], [0], [1], [0, 0, 1, 1], [], []>} : vector<2x64xbf16>, vector<64x256xbf16>, vector<2x256xf32> -> vector<2x256xf32>
    %388 = arith.addf %385, %387 : vector<2x256xf32>
    %389 = vector.extract_strided_slice %388 {offsets = [0, 0], sizes = [2, 192], strides = [1, 1]} : vector<2x256xf32> to vector<2x192xf32>
    %390 = arith.negf %389 : vector<2x192xf32>
    %391 = math.exp %390 : vector<2x192xf32>
    %cst_80 = arith.constant 1.000000e+00 : f32
    %392 = vector.broadcast %cst_80 : f32 to vector<2x192xf32>
    %393 = arith.addf %392, %391 : vector<2x192xf32>
    %394 = arith.divf %392, %393 : vector<2x192xf32>
    %395 = vector.extract_strided_slice %394 {offsets = [0, 0], sizes = [2, 64], strides = [1, 1]} : vector<2x192xf32> to vector<2x64xf32>
    %396 = vector.extract_strided_slice %394 {offsets = [0, 64], sizes = [2, 64], strides = [1, 1]} : vector<2x192xf32> to vector<2x64xf32>
    %397 = vector.extract_strided_slice %394 {offsets = [0, 128], sizes = [2, 64], strides = [1, 1]} : vector<2x192xf32> to vector<2x64xf32>
    %398 = vector.extract_strided_slice %388 {offsets = [0, 192], sizes = [2, 64], strides = [1, 1]} : vector<2x256xf32> to vector<2x64xf32>
    %399 = math.tanh %398 : vector<2x64xf32>
    %400 = arith.mulf %396, %381 : vector<2x64xf32>
    %401 = arith.mulf %395, %399 : vector<2x64xf32>
    %402 = arith.addf %400, %401 : vector<2x64xf32>
    %403 = math.tanh %402 : vector<2x64xf32>
    %404 = arith.mulf %397, %403 : vector<2x64xf32>
    %405 = arith.truncf %404 : vector<2x64xf32> to vector<2x64xbf16>
    %cst_81 = arith.constant dense<0.000000e+00> : vector<2x256xf32>
    %406 = tpu.matmul %405, %9, %cst_81 {dimension_numbers = #tpu.dot_dimension_numbers<[1], [0], [0], [1], [0, 0, 1, 1], [], []>} : vector<2x64xbf16>, vector<64x256xbf16>, vector<2x256xf32> -> vector<2x256xf32>
    %c0_82 = arith.constant 0 : index
    %c0_83 = arith.constant 0 : index
    %407 = vector.load %arg9[%c0_82, %c0_83] : memref<1x256xf32, #tpu.memory_space<vmem>>, vector<1x256xf32>
    %408 = vector.broadcast %407 : vector<1x256xf32> to vector<2x256xf32>
    %409 = arith.addf %406, %408 : vector<2x256xf32>
    %cst_84 = arith.constant 0.000000e+00 : f32
    %410 = vector.broadcast %cst_84 : f32 to vector<2x64xf32>
    %cst_85 = arith.constant 0.000000e+00 : f32
    %411 = vector.broadcast %cst_85 : f32 to vector<2x64xf32>
    %412 = arith.truncf %410 : vector<2x64xf32> to vector<2x64xbf16>
    %cst_86 = arith.constant dense<0.000000e+00> : vector<2x256xf32>
    %413 = tpu.matmul %412, %11, %cst_86 {dimension_numbers = #tpu.dot_dimension_numbers<[1], [0], [0], [1], [0, 0, 1, 1], [], []>} : vector<2x64xbf16>, vector<64x256xbf16>, vector<2x256xf32> -> vector<2x256xf32>
    %414 = arith.addf %409, %413 : vector<2x256xf32>
    %415 = vector.extract_strided_slice %414 {offsets = [0, 0], sizes = [2, 192], strides = [1, 1]} : vector<2x256xf32> to vector<2x192xf32>
    %416 = arith.negf %415 : vector<2x192xf32>
    %417 = math.exp %416 : vector<2x192xf32>
    %cst_87 = arith.constant 1.000000e+00 : f32
    %418 = vector.broadcast %cst_87 : f32 to vector<2x192xf32>
    %419 = arith.addf %418, %417 : vector<2x192xf32>
    %420 = arith.divf %418, %419 : vector<2x192xf32>
    %421 = vector.extract_strided_slice %420 {offsets = [0, 0], sizes = [2, 64], strides = [1, 1]} : vector<2x192xf32> to vector<2x64xf32>
    %422 = vector.extract_strided_slice %420 {offsets = [0, 64], sizes = [2, 64], strides = [1, 1]} : vector<2x192xf32> to vector<2x64xf32>
    %423 = vector.extract_strided_slice %420 {offsets = [0, 128], sizes = [2, 64], strides = [1, 1]} : vector<2x192xf32> to vector<2x64xf32>
    %424 = vector.extract_strided_slice %414 {offsets = [0, 192], sizes = [2, 64], strides = [1, 1]} : vector<2x256xf32> to vector<2x64xf32>
    %425 = math.tanh %424 : vector<2x64xf32>
    %426 = arith.mulf %422, %411 : vector<2x64xf32>
    %427 = arith.mulf %421, %425 : vector<2x64xf32>
    %428 = arith.addf %426, %427 : vector<2x64xf32>
    %429 = math.tanh %428 : vector<2x64xf32>
    %430 = arith.mulf %423, %429 : vector<2x64xf32>
    %431 = arith.truncf %430 : vector<2x64xf32> to vector<2x64xbf16>
    %c0_88 = arith.constant 0 : index
    %c0_89 = arith.constant 0 : index
    %c0_90 = arith.constant 0 : index
    %432 = vector.load %arg17[%c0_88, %c0_89, %c0_90] : memref<8x2x64xbf16, #tpu.memory_space<vmem>>, vector<1x2x64xbf16>
    %433 = vector.shape_cast %432 : vector<1x2x64xbf16> to vector<2x64xbf16>
    %434 = vector.shape_cast %431 : vector<2x64xbf16> to vector<1x2x64xbf16>
    tpu.vector_store %arg17[%c0_88, %c0_89, %c0_90], %434 {strides = array<i32>} : memref<8x2x64xbf16, #tpu.memory_space<vmem>>, vector<1x2x64xbf16>,
    %435 = arith.truncf %430 : vector<2x64xf32> to vector<2x64xbf16>
    %cst_91 = arith.constant dense<0.000000e+00> : vector<2x256xf32>
    %436 = tpu.matmul %435, %11, %cst_91 {dimension_numbers = #tpu.dot_dimension_numbers<[1], [0], [0], [1], [0, 0, 1, 1], [], []>} : vector<2x64xbf16>, vector<64x256xbf16>, vector<2x256xf32> -> vector<2x256xf32>
    %437 = arith.addf %409, %436 : vector<2x256xf32>
    %438 = vector.extract_strided_slice %437 {offsets = [0, 0], sizes = [2, 192], strides = [1, 1]} : vector<2x256xf32> to vector<2x192xf32>
    %439 = arith.negf %438 : vector<2x192xf32>
    %440 = math.exp %439 : vector<2x192xf32>
    %cst_92 = arith.constant 1.000000e+00 : f32
    %441 = vector.broadcast %cst_92 : f32 to vector<2x192xf32>
    %442 = arith.addf %441, %440 : vector<2x192xf32>
    %443 = arith.divf %441, %442 : vector<2x192xf32>
    %444 = vector.extract_strided_slice %443 {offsets = [0, 0], sizes = [2, 64], strides = [1, 1]} : vector<2x192xf32> to vector<2x64xf32>
    %445 = vector.extract_strided_slice %443 {offsets = [0, 64], sizes = [2, 64], strides = [1, 1]} : vector<2x192xf32> to vector<2x64xf32>
    %446 = vector.extract_strided_slice %443 {offsets = [0, 128], sizes = [2, 64], strides = [1, 1]} : vector<2x192xf32> to vector<2x64xf32>
    %447 = vector.extract_strided_slice %437 {offsets = [0, 192], sizes = [2, 64], strides = [1, 1]} : vector<2x256xf32> to vector<2x64xf32>
    %448 = math.tanh %447 : vector<2x64xf32>
    %449 = arith.mulf %445, %428 : vector<2x64xf32>
    %450 = arith.mulf %444, %448 : vector<2x64xf32>
    %451 = arith.addf %449, %450 : vector<2x64xf32>
    %452 = math.tanh %451 : vector<2x64xf32>
    %453 = arith.mulf %446, %452 : vector<2x64xf32>
    %454 = arith.truncf %453 : vector<2x64xf32> to vector<2x64xbf16>
    %c1_93 = arith.constant 1 : index
    %c0_94 = arith.constant 0 : index
    %c0_95 = arith.constant 0 : index
    %455 = vector.load %arg17[%c1_93, %c0_94, %c0_95] : memref<8x2x64xbf16, #tpu.memory_space<vmem>>, vector<1x2x64xbf16>
    %456 = vector.shape_cast %455 : vector<1x2x64xbf16> to vector<2x64xbf16>
    %457 = vector.shape_cast %454 : vector<2x64xbf16> to vector<1x2x64xbf16>
    tpu.vector_store %arg17[%c1_93, %c0_94, %c0_95], %457 {strides = array<i32>} : memref<8x2x64xbf16, #tpu.memory_space<vmem>>, vector<1x2x64xbf16>,
    %458 = arith.truncf %453 : vector<2x64xf32> to vector<2x64xbf16>
    %cst_96 = arith.constant dense<0.000000e+00> : vector<2x256xf32>
    %459 = tpu.matmul %458, %11, %cst_96 {dimension_numbers = #tpu.dot_dimension_numbers<[1], [0], [0], [1], [0, 0, 1, 1], [], []>} : vector<2x64xbf16>, vector<64x256xbf16>, vector<2x256xf32> -> vector<2x256xf32>
    %460 = arith.addf %409, %459 : vector<2x256xf32>
    %461 = vector.extract_strided_slice %460 {offsets = [0, 0], sizes = [2, 192], strides = [1, 1]} : vector<2x256xf32> to vector<2x192xf32>
    %462 = arith.negf %461 : vector<2x192xf32>
    %463 = math.exp %462 : vector<2x192xf32>
    %cst_97 = arith.constant 1.000000e+00 : f32
    %464 = vector.broadcast %cst_97 : f32 to vector<2x192xf32>
    %465 = arith.addf %464, %463 : vector<2x192xf32>
    %466 = arith.divf %464, %465 : vector<2x192xf32>
    %467 = vector.extract_strided_slice %466 {offsets = [0, 0], sizes = [2, 64], strides = [1, 1]} : vector<2x192xf32> to vector<2x64xf32>
    %468 = vector.extract_strided_slice %466 {offsets = [0, 64], sizes = [2, 64], strides = [1, 1]} : vector<2x192xf32> to vector<2x64xf32>
    %469 = vector.extract_strided_slice %466 {offsets = [0, 128], sizes = [2, 64], strides = [1, 1]} : vector<2x192xf32> to vector<2x64xf32>
    %470 = vector.extract_strided_slice %460 {offsets = [0, 192], sizes = [2, 64], strides = [1, 1]} : vector<2x256xf32> to vector<2x64xf32>
    %471 = math.tanh %470 : vector<2x64xf32>
    %472 = arith.mulf %468, %451 : vector<2x64xf32>
    %473 = arith.mulf %467, %471 : vector<2x64xf32>
    %474 = arith.addf %472, %473 : vector<2x64xf32>
    %475 = math.tanh %474 : vector<2x64xf32>
    %476 = arith.mulf %469, %475 : vector<2x64xf32>
    %477 = arith.truncf %476 : vector<2x64xf32> to vector<2x64xbf16>
    %c2_98 = arith.constant 2 : index
    %c0_99 = arith.constant 0 : index
    %c0_100 = arith.constant 0 : index
    %478 = vector.load %arg17[%c2_98, %c0_99, %c0_100] : memref<8x2x64xbf16, #tpu.memory_space<vmem>>, vector<1x2x64xbf16>
    %479 = vector.shape_cast %478 : vector<1x2x64xbf16> to vector<2x64xbf16>
    %480 = vector.shape_cast %477 : vector<2x64xbf16> to vector<1x2x64xbf16>
    tpu.vector_store %arg17[%c2_98, %c0_99, %c0_100], %480 {strides = array<i32>} : memref<8x2x64xbf16, #tpu.memory_space<vmem>>, vector<1x2x64xbf16>,
    %481 = arith.truncf %476 : vector<2x64xf32> to vector<2x64xbf16>
    %cst_101 = arith.constant dense<0.000000e+00> : vector<2x256xf32>
    %482 = tpu.matmul %481, %11, %cst_101 {dimension_numbers = #tpu.dot_dimension_numbers<[1], [0], [0], [1], [0, 0, 1, 1], [], []>} : vector<2x64xbf16>, vector<64x256xbf16>, vector<2x256xf32> -> vector<2x256xf32>
    %483 = arith.addf %409, %482 : vector<2x256xf32>
    %484 = vector.extract_strided_slice %483 {offsets = [0, 0], sizes = [2, 192], strides = [1, 1]} : vector<2x256xf32> to vector<2x192xf32>
    %485 = arith.negf %484 : vector<2x192xf32>
    %486 = math.exp %485 : vector<2x192xf32>
    %cst_102 = arith.constant 1.000000e+00 : f32
    %487 = vector.broadcast %cst_102 : f32 to vector<2x192xf32>
    %488 = arith.addf %487, %486 : vector<2x192xf32>
    %489 = arith.divf %487, %488 : vector<2x192xf32>
    %490 = vector.extract_strided_slice %489 {offsets = [0, 0], sizes = [2, 64], strides = [1, 1]} : vector<2x192xf32> to vector<2x64xf32>
    %491 = vector.extract_strided_slice %489 {offsets = [0, 64], sizes = [2, 64], strides = [1, 1]} : vector<2x192xf32> to vector<2x64xf32>
    %492 = vector.extract_strided_slice %489 {offsets = [0, 128], sizes = [2, 64], strides = [1, 1]} : vector<2x192xf32> to vector<2x64xf32>
    %493 = vector.extract_strided_slice %483 {offsets = [0, 192], sizes = [2, 64], strides = [1, 1]} : vector<2x256xf32> to vector<2x64xf32>
    %494 = math.tanh %493 : vector<2x64xf32>
    %495 = arith.mulf %491, %474 : vector<2x64xf32>
    %496 = arith.mulf %490, %494 : vector<2x64xf32>
    %497 = arith.addf %495, %496 : vector<2x64xf32>
    %498 = math.tanh %497 : vector<2x64xf32>
    %499 = arith.mulf %492, %498 : vector<2x64xf32>
    %500 = arith.truncf %499 : vector<2x64xf32> to vector<2x64xbf16>
    %c3_103 = arith.constant 3 : index
    %c0_104 = arith.constant 0 : index
    %c0_105 = arith.constant 0 : index
    %501 = vector.load %arg17[%c3_103, %c0_104, %c0_105] : memref<8x2x64xbf16, #tpu.memory_space<vmem>>, vector<1x2x64xbf16>
    %502 = vector.shape_cast %501 : vector<1x2x64xbf16> to vector<2x64xbf16>
    %503 = vector.shape_cast %500 : vector<2x64xbf16> to vector<1x2x64xbf16>
    tpu.vector_store %arg17[%c3_103, %c0_104, %c0_105], %503 {strides = array<i32>} : memref<8x2x64xbf16, #tpu.memory_space<vmem>>, vector<1x2x64xbf16>,
    %504 = arith.truncf %499 : vector<2x64xf32> to vector<2x64xbf16>
    %cst_106 = arith.constant dense<0.000000e+00> : vector<2x256xf32>
    %505 = tpu.matmul %504, %11, %cst_106 {dimension_numbers = #tpu.dot_dimension_numbers<[1], [0], [0], [1], [0, 0, 1, 1], [], []>} : vector<2x64xbf16>, vector<64x256xbf16>, vector<2x256xf32> -> vector<2x256xf32>
    %506 = arith.addf %409, %505 : vector<2x256xf32>
    %507 = vector.extract_strided_slice %506 {offsets = [0, 0], sizes = [2, 192], strides = [1, 1]} : vector<2x256xf32> to vector<2x192xf32>
    %508 = arith.negf %507 : vector<2x192xf32>
    %509 = math.exp %508 : vector<2x192xf32>
    %cst_107 = arith.constant 1.000000e+00 : f32
    %510 = vector.broadcast %cst_107 : f32 to vector<2x192xf32>
    %511 = arith.addf %510, %509 : vector<2x192xf32>
    %512 = arith.divf %510, %511 : vector<2x192xf32>
    %513 = vector.extract_strided_slice %512 {offsets = [0, 0], sizes = [2, 64], strides = [1, 1]} : vector<2x192xf32> to vector<2x64xf32>
    %514 = vector.extract_strided_slice %512 {offsets = [0, 64], sizes = [2, 64], strides = [1, 1]} : vector<2x192xf32> to vector<2x64xf32>
    %515 = vector.extract_strided_slice %512 {offsets = [0, 128], sizes = [2, 64], strides = [1, 1]} : vector<2x192xf32> to vector<2x64xf32>
    %516 = vector.extract_strided_slice %506 {offsets = [0, 192], sizes = [2, 64], strides = [1, 1]} : vector<2x256xf32> to vector<2x64xf32>
    %517 = math.tanh %516 : vector<2x64xf32>
    %518 = arith.mulf %514, %497 : vector<2x64xf32>
    %519 = arith.mulf %513, %517 : vector<2x64xf32>
    %520 = arith.addf %518, %519 : vector<2x64xf32>
    %521 = math.tanh %520 : vector<2x64xf32>
    %522 = arith.mulf %515, %521 : vector<2x64xf32>
    %523 = arith.truncf %522 : vector<2x64xf32> to vector<2x64xbf16>
    %c4_108 = arith.constant 4 : index
    %c0_109 = arith.constant 0 : index
    %c0_110 = arith.constant 0 : index
    %524 = vector.load %arg17[%c4_108, %c0_109, %c0_110] : memref<8x2x64xbf16, #tpu.memory_space<vmem>>, vector<1x2x64xbf16>
    %525 = vector.shape_cast %524 : vector<1x2x64xbf16> to vector<2x64xbf16>
    %526 = vector.shape_cast %523 : vector<2x64xbf16> to vector<1x2x64xbf16>
    tpu.vector_store %arg17[%c4_108, %c0_109, %c0_110], %526 {strides = array<i32>} : memref<8x2x64xbf16, #tpu.memory_space<vmem>>, vector<1x2x64xbf16>,
    %527 = arith.truncf %522 : vector<2x64xf32> to vector<2x64xbf16>
    %cst_111 = arith.constant dense<0.000000e+00> : vector<2x256xf32>
    %528 = tpu.matmul %527, %11, %cst_111 {dimension_numbers = #tpu.dot_dimension_numbers<[1], [0], [0], [1], [0, 0, 1, 1], [], []>} : vector<2x64xbf16>, vector<64x256xbf16>, vector<2x256xf32> -> vector<2x256xf32>
    %529 = arith.addf %409, %528 : vector<2x256xf32>
    %530 = vector.extract_strided_slice %529 {offsets = [0, 0], sizes = [2, 192], strides = [1, 1]} : vector<2x256xf32> to vector<2x192xf32>
    %531 = arith.negf %530 : vector<2x192xf32>
    %532 = math.exp %531 : vector<2x192xf32>
    %cst_112 = arith.constant 1.000000e+00 : f32
    %533 = vector.broadcast %cst_112 : f32 to vector<2x192xf32>
    %534 = arith.addf %533, %532 : vector<2x192xf32>
    %535 = arith.divf %533, %534 : vector<2x192xf32>
    %536 = vector.extract_strided_slice %535 {offsets = [0, 0], sizes = [2, 64], strides = [1, 1]} : vector<2x192xf32> to vector<2x64xf32>
    %537 = vector.extract_strided_slice %535 {offsets = [0, 64], sizes = [2, 64], strides = [1, 1]} : vector<2x192xf32> to vector<2x64xf32>
    %538 = vector.extract_strided_slice %535 {offsets = [0, 128], sizes = [2, 64], strides = [1, 1]} : vector<2x192xf32> to vector<2x64xf32>
    %539 = vector.extract_strided_slice %529 {offsets = [0, 192], sizes = [2, 64], strides = [1, 1]} : vector<2x256xf32> to vector<2x64xf32>
    %540 = math.tanh %539 : vector<2x64xf32>
    %541 = arith.mulf %537, %520 : vector<2x64xf32>
    %542 = arith.mulf %536, %540 : vector<2x64xf32>
    %543 = arith.addf %541, %542 : vector<2x64xf32>
    %544 = math.tanh %543 : vector<2x64xf32>
    %545 = arith.mulf %538, %544 : vector<2x64xf32>
    %546 = arith.truncf %545 : vector<2x64xf32> to vector<2x64xbf16>
    %c5_113 = arith.constant 5 : index
    %c0_114 = arith.constant 0 : index
    %c0_115 = arith.constant 0 : index
    %547 = vector.load %arg17[%c5_113, %c0_114, %c0_115] : memref<8x2x64xbf16, #tpu.memory_space<vmem>>, vector<1x2x64xbf16>
    %548 = vector.shape_cast %547 : vector<1x2x64xbf16> to vector<2x64xbf16>
    %549 = vector.shape_cast %546 : vector<2x64xbf16> to vector<1x2x64xbf16>
    tpu.vector_store %arg17[%c5_113, %c0_114, %c0_115], %549 {strides = array<i32>} : memref<8x2x64xbf16, #tpu.memory_space<vmem>>, vector<1x2x64xbf16>,
    %550 = arith.truncf %545 : vector<2x64xf32> to vector<2x64xbf16>
    %cst_116 = arith.constant dense<0.000000e+00> : vector<2x256xf32>
    %551 = tpu.matmul %550, %11, %cst_116 {dimension_numbers = #tpu.dot_dimension_numbers<[1], [0], [0], [1], [0, 0, 1, 1], [], []>} : vector<2x64xbf16>, vector<64x256xbf16>, vector<2x256xf32> -> vector<2x256xf32>
    %552 = arith.addf %409, %551 : vector<2x256xf32>
    %553 = vector.extract_strided_slice %552 {offsets = [0, 0], sizes = [2, 192], strides = [1, 1]} : vector<2x256xf32> to vector<2x192xf32>
    %554 = arith.negf %553 : vector<2x192xf32>
    %555 = math.exp %554 : vector<2x192xf32>
    %cst_117 = arith.constant 1.000000e+00 : f32
    %556 = vector.broadcast %cst_117 : f32 to vector<2x192xf32>
    %557 = arith.addf %556, %555 : vector<2x192xf32>
    %558 = arith.divf %556, %557 : vector<2x192xf32>
    %559 = vector.extract_strided_slice %558 {offsets = [0, 0], sizes = [2, 64], strides = [1, 1]} : vector<2x192xf32> to vector<2x64xf32>
    %560 = vector.extract_strided_slice %558 {offsets = [0, 64], sizes = [2, 64], strides = [1, 1]} : vector<2x192xf32> to vector<2x64xf32>
    %561 = vector.extract_strided_slice %558 {offsets = [0, 128], sizes = [2, 64], strides = [1, 1]} : vector<2x192xf32> to vector<2x64xf32>
    %562 = vector.extract_strided_slice %552 {offsets = [0, 192], sizes = [2, 64], strides = [1, 1]} : vector<2x256xf32> to vector<2x64xf32>
    %563 = math.tanh %562 : vector<2x64xf32>
    %564 = arith.mulf %560, %543 : vector<2x64xf32>
    %565 = arith.mulf %559, %563 : vector<2x64xf32>
    %566 = arith.addf %564, %565 : vector<2x64xf32>
    %567 = math.tanh %566 : vector<2x64xf32>
    %568 = arith.mulf %561, %567 : vector<2x64xf32>
    %569 = arith.truncf %568 : vector<2x64xf32> to vector<2x64xbf16>
    %c6_118 = arith.constant 6 : index
    %c0_119 = arith.constant 0 : index
    %c0_120 = arith.constant 0 : index
    %570 = vector.load %arg17[%c6_118, %c0_119, %c0_120] : memref<8x2x64xbf16, #tpu.memory_space<vmem>>, vector<1x2x64xbf16>
    %571 = vector.shape_cast %570 : vector<1x2x64xbf16> to vector<2x64xbf16>
    %572 = vector.shape_cast %569 : vector<2x64xbf16> to vector<1x2x64xbf16>
    tpu.vector_store %arg17[%c6_118, %c0_119, %c0_120], %572 {strides = array<i32>} : memref<8x2x64xbf16, #tpu.memory_space<vmem>>, vector<1x2x64xbf16>,
    %573 = arith.truncf %568 : vector<2x64xf32> to vector<2x64xbf16>
    %cst_121 = arith.constant dense<0.000000e+00> : vector<2x256xf32>
    %574 = tpu.matmul %573, %11, %cst_121 {dimension_numbers = #tpu.dot_dimension_numbers<[1], [0], [0], [1], [0, 0, 1, 1], [], []>} : vector<2x64xbf16>, vector<64x256xbf16>, vector<2x256xf32> -> vector<2x256xf32>
    %575 = arith.addf %409, %574 : vector<2x256xf32>
    %576 = vector.extract_strided_slice %575 {offsets = [0, 0], sizes = [2, 192], strides = [1, 1]} : vector<2x256xf32> to vector<2x192xf32>
    %577 = arith.negf %576 : vector<2x192xf32>
    %578 = math.exp %577 : vector<2x192xf32>
    %cst_122 = arith.constant 1.000000e+00 : f32
    %579 = vector.broadcast %cst_122 : f32 to vector<2x192xf32>
    %580 = arith.addf %579, %578 : vector<2x192xf32>
    %581 = arith.divf %579, %580 : vector<2x192xf32>
    %582 = vector.extract_strided_slice %581 {offsets = [0, 0], sizes = [2, 64], strides = [1, 1]} : vector<2x192xf32> to vector<2x64xf32>
    %583 = vector.extract_strided_slice %581 {offsets = [0, 64], sizes = [2, 64], strides = [1, 1]} : vector<2x192xf32> to vector<2x64xf32>
    %584 = vector.extract_strided_slice %581 {offsets = [0, 128], sizes = [2, 64], strides = [1, 1]} : vector<2x192xf32> to vector<2x64xf32>
    %585 = vector.extract_strided_slice %575 {offsets = [0, 192], sizes = [2, 64], strides = [1, 1]} : vector<2x256xf32> to vector<2x64xf32>
    %586 = math.tanh %585 : vector<2x64xf32>
    %587 = arith.mulf %583, %566 : vector<2x64xf32>
    %588 = arith.mulf %582, %586 : vector<2x64xf32>
    %589 = arith.addf %587, %588 : vector<2x64xf32>
    %590 = math.tanh %589 : vector<2x64xf32>
    %591 = arith.mulf %584, %590 : vector<2x64xf32>
    %592 = arith.truncf %591 : vector<2x64xf32> to vector<2x64xbf16>
    %c7_123 = arith.constant 7 : index
    %c0_124 = arith.constant 0 : index
    %c0_125 = arith.constant 0 : index
    %593 = vector.load %arg17[%c7_123, %c0_124, %c0_125] : memref<8x2x64xbf16, #tpu.memory_space<vmem>>, vector<1x2x64xbf16>
    %594 = vector.shape_cast %593 : vector<1x2x64xbf16> to vector<2x64xbf16>
    %595 = vector.shape_cast %592 : vector<2x64xbf16> to vector<1x2x64xbf16>
    tpu.vector_store %arg17[%c7_123, %c0_124, %c0_125], %595 {strides = array<i32>} : memref<8x2x64xbf16, #tpu.memory_space<vmem>>, vector<1x2x64xbf16>,
    %c0_126 = arith.constant 0 : index
    %c0_127 = arith.constant 0 : index
    %c0_128 = arith.constant 0 : index
    %596 = vector.load %arg17[%c0_126, %c0_127, %c0_128] : memref<8x2x64xbf16, #tpu.memory_space<vmem>>, vector<8x2x64xbf16>
    %597 = vector.shape_cast %596 : vector<8x2x64xbf16> to vector<16x64xbf16>
    %cst_129 = arith.constant dense<0.000000e+00> : vector<16x512xf32>
    %598 = tpu.matmul %597, %13, %cst_129 {dimension_numbers = #tpu.dot_dimension_numbers<[1], [0], [0], [1], [0, 0, 1, 1], [], []>} : vector<16x64xbf16>, vector<64x512xbf16>, vector<16x512xf32> -> vector<16x512xf32>
    %c0_130 = arith.constant 0 : index
    %c0_131 = arith.constant 0 : index
    %599 = vector.load %arg12[%c0_130, %c0_131] : memref<1x512xf32, #tpu.memory_space<vmem>>, vector<1x512xf32>
    %600 = vector.broadcast %599 : vector<1x512xf32> to vector<16x512xf32>
    %601 = arith.addf %598, %600 : vector<16x512xf32>
    %602 = vector.shape_cast %601 : vector<16x512xf32> to vector<8x2x512xf32>
    %cst_132 = arith.constant 0.000000e+00 : f32
    %603 = vector.broadcast %cst_132 : f32 to vector<2x128xf32>
    %cst_133 = arith.constant 0.000000e+00 : f32
    %604 = vector.broadcast %cst_133 : f32 to vector<2x128xf32>
    %605 = vector.extract_strided_slice %602 {offsets = [0, 0, 0], sizes = [1, 2, 512], strides = [1, 1, 1]} : vector<8x2x512xf32> to vector<1x2x512xf32>
    %606 = vector.shape_cast %605 : vector<1x2x512xf32> to vector<2x512xf32>
    %607 = arith.truncf %603 : vector<2x128xf32> to vector<2x128xbf16>
    %cst_134 = arith.constant dense<0.000000e+00> : vector<2x512xf32>
    %608 = tpu.matmul %607, %15, %cst_134 {dimension_numbers = #tpu.dot_dimension_numbers<[1], [0], [0], [1], [0, 0, 1, 1], [], []>} : vector<2x128xbf16>, vector<128x512xbf16>, vector<2x512xf32> -> vector<2x512xf32>
    %609 = arith.addf %606, %608 : vector<2x512xf32>
    %610 = vector.extract_strided_slice %609 {offsets = [0, 0], sizes = [2, 384], strides = [1, 1]} : vector<2x512xf32> to vector<2x384xf32>
    %611 = arith.negf %610 : vector<2x384xf32>
    %612 = math.exp %611 : vector<2x384xf32>
    %cst_135 = arith.constant 1.000000e+00 : f32
    %613 = vector.broadcast %cst_135 : f32 to vector<2x384xf32>
    %614 = arith.addf %613, %612 : vector<2x384xf32>
    %615 = arith.divf %613, %614 : vector<2x384xf32>
    %616 = vector.extract_strided_slice %615 {offsets = [0, 0], sizes = [2, 128], strides = [1, 1]} : vector<2x384xf32> to vector<2x128xf32>
    %617 = vector.extract_strided_slice %615 {offsets = [0, 128], sizes = [2, 128], strides = [1, 1]} : vector<2x384xf32> to vector<2x128xf32>
    %618 = vector.extract_strided_slice %615 {offsets = [0, 256], sizes = [2, 128], strides = [1, 1]} : vector<2x384xf32> to vector<2x128xf32>
    %619 = vector.extract_strided_slice %609 {offsets = [0, 384], sizes = [2, 128], strides = [1, 1]} : vector<2x512xf32> to vector<2x128xf32>
    %620 = math.tanh %619 : vector<2x128xf32>
    %621 = arith.mulf %617, %604 : vector<2x128xf32>
    %622 = arith.mulf %616, %620 : vector<2x128xf32>
    %623 = arith.addf %621, %622 : vector<2x128xf32>
    %624 = math.tanh %623 : vector<2x128xf32>
    %625 = arith.mulf %618, %624 : vector<2x128xf32>
    %626 = arith.truncf %625 : vector<2x128xf32> to vector<2x128xbf16>
    %c0_136 = arith.constant 0 : index
    %c0_137 = arith.constant 0 : index
    %c0_138 = arith.constant 0 : index
    %627 = vector.load %arg18[%c0_136, %c0_137, %c0_138] : memref<8x2x128xbf16, #tpu.memory_space<vmem>>, vector<1x2x128xbf16>
    %628 = vector.shape_cast %627 : vector<1x2x128xbf16> to vector<2x128xbf16>
    %629 = vector.shape_cast %626 : vector<2x128xbf16> to vector<1x2x128xbf16>
    tpu.vector_store %arg18[%c0_136, %c0_137, %c0_138], %629 {strides = array<i32>} : memref<8x2x128xbf16, #tpu.memory_space<vmem>>, vector<1x2x128xbf16>,
    %630 = vector.extract_strided_slice %602 {offsets = [1, 0, 0], sizes = [1, 2, 512], strides = [1, 1, 1]} : vector<8x2x512xf32> to vector<1x2x512xf32>
    %631 = vector.shape_cast %630 : vector<1x2x512xf32> to vector<2x512xf32>
    %632 = arith.truncf %625 : vector<2x128xf32> to vector<2x128xbf16>
    %cst_139 = arith.constant dense<0.000000e+00> : vector<2x512xf32>
    %633 = tpu.matmul %632, %15, %cst_139 {dimension_numbers = #tpu.dot_dimension_numbers<[1], [0], [0], [1], [0, 0, 1, 1], [], []>} : vector<2x128xbf16>, vector<128x512xbf16>, vector<2x512xf32> -> vector<2x512xf32>
    %634 = arith.addf %631, %633 : vector<2x512xf32>
    %635 = vector.extract_strided_slice %634 {offsets = [0, 0], sizes = [2, 384], strides = [1, 1]} : vector<2x512xf32> to vector<2x384xf32>
    %636 = arith.negf %635 : vector<2x384xf32>
    %637 = math.exp %636 : vector<2x384xf32>
    %cst_140 = arith.constant 1.000000e+00 : f32
    %638 = vector.broadcast %cst_140 : f32 to vector<2x384xf32>
    %639 = arith.addf %638, %637 : vector<2x384xf32>
    %640 = arith.divf %638, %639 : vector<2x384xf32>
    %641 = vector.extract_strided_slice %640 {offsets = [0, 0], sizes = [2, 128], strides = [1, 1]} : vector<2x384xf32> to vector<2x128xf32>
    %642 = vector.extract_strided_slice %640 {offsets = [0, 128], sizes = [2, 128], strides = [1, 1]} : vector<2x384xf32> to vector<2x128xf32>
    %643 = vector.extract_strided_slice %640 {offsets = [0, 256], sizes = [2, 128], strides = [1, 1]} : vector<2x384xf32> to vector<2x128xf32>
    %644 = vector.extract_strided_slice %634 {offsets = [0, 384], sizes = [2, 128], strides = [1, 1]} : vector<2x512xf32> to vector<2x128xf32>
    %645 = math.tanh %644 : vector<2x128xf32>
    %646 = arith.mulf %642, %623 : vector<2x128xf32>
    %647 = arith.mulf %641, %645 : vector<2x128xf32>
    %648 = arith.addf %646, %647 : vector<2x128xf32>
    %649 = math.tanh %648 : vector<2x128xf32>
    %650 = arith.mulf %643, %649 : vector<2x128xf32>
    %651 = arith.truncf %650 : vector<2x128xf32> to vector<2x128xbf16>
    %c1_141 = arith.constant 1 : index
    %c0_142 = arith.constant 0 : index
    %c0_143 = arith.constant 0 : index
    %652 = vector.load %arg18[%c1_141, %c0_142, %c0_143] : memref<8x2x128xbf16, #tpu.memory_space<vmem>>, vector<1x2x128xbf16>
    %653 = vector.shape_cast %652 : vector<1x2x128xbf16> to vector<2x128xbf16>
    %654 = vector.shape_cast %651 : vector<2x128xbf16> to vector<1x2x128xbf16>
    tpu.vector_store %arg18[%c1_141, %c0_142, %c0_143], %654 {strides = array<i32>} : memref<8x2x128xbf16, #tpu.memory_space<vmem>>, vector<1x2x128xbf16>,
    %655 = vector.extract_strided_slice %602 {offsets = [2, 0, 0], sizes = [1, 2, 512], strides = [1, 1, 1]} : vector<8x2x512xf32> to vector<1x2x512xf32>
    %656 = vector.shape_cast %655 : vector<1x2x512xf32> to vector<2x512xf32>
    %657 = arith.truncf %650 : vector<2x128xf32> to vector<2x128xbf16>
    %cst_144 = arith.constant dense<0.000000e+00> : vector<2x512xf32>
    %658 = tpu.matmul %657, %15, %cst_144 {dimension_numbers = #tpu.dot_dimension_numbers<[1], [0], [0], [1], [0, 0, 1, 1], [], []>} : vector<2x128xbf16>, vector<128x512xbf16>, vector<2x512xf32> -> vector<2x512xf32>
    %659 = arith.addf %656, %658 : vector<2x512xf32>
    %660 = vector.extract_strided_slice %659 {offsets = [0, 0], sizes = [2, 384], strides = [1, 1]} : vector<2x512xf32> to vector<2x384xf32>
    %661 = arith.negf %660 : vector<2x384xf32>
    %662 = math.exp %661 : vector<2x384xf32>
    %cst_145 = arith.constant 1.000000e+00 : f32
    %663 = vector.broadcast %cst_145 : f32 to vector<2x384xf32>
    %664 = arith.addf %663, %662 : vector<2x384xf32>
    %665 = arith.divf %663, %664 : vector<2x384xf32>
    %666 = vector.extract_strided_slice %665 {offsets = [0, 0], sizes = [2, 128], strides = [1, 1]} : vector<2x384xf32> to vector<2x128xf32>
    %667 = vector.extract_strided_slice %665 {offsets = [0, 128], sizes = [2, 128], strides = [1, 1]} : vector<2x384xf32> to vector<2x128xf32>
    %668 = vector.extract_strided_slice %665 {offsets = [0, 256], sizes = [2, 128], strides = [1, 1]} : vector<2x384xf32> to vector<2x128xf32>
    %669 = vector.extract_strided_slice %659 {offsets = [0, 384], sizes = [2, 128], strides = [1, 1]} : vector<2x512xf32> to vector<2x128xf32>
    %670 = math.tanh %669 : vector<2x128xf32>
    %671 = arith.mulf %667, %648 : vector<2x128xf32>
    %672 = arith.mulf %666, %670 : vector<2x128xf32>
    %673 = arith.addf %671, %672 : vector<2x128xf32>
    %674 = math.tanh %673 : vector<2x128xf32>
    %675 = arith.mulf %668, %674 : vector<2x128xf32>
    %676 = arith.truncf %675 : vector<2x128xf32> to vector<2x128xbf16>
    %c2_146 = arith.constant 2 : index
    %c0_147 = arith.constant 0 : index
    %c0_148 = arith.constant 0 : index
    %677 = vector.load %arg18[%c2_146, %c0_147, %c0_148] : memref<8x2x128xbf16, #tpu.memory_space<vmem>>, vector<1x2x128xbf16>
    %678 = vector.shape_cast %677 : vector<1x2x128xbf16> to vector<2x128xbf16>
    %679 = vector.shape_cast %676 : vector<2x128xbf16> to vector<1x2x128xbf16>
    tpu.vector_store %arg18[%c2_146, %c0_147, %c0_148], %679 {strides = array<i32>} : memref<8x2x128xbf16, #tpu.memory_space<vmem>>, vector<1x2x128xbf16>,
    %680 = vector.extract_strided_slice %602 {offsets = [3, 0, 0], sizes = [1, 2, 512], strides = [1, 1, 1]} : vector<8x2x512xf32> to vector<1x2x512xf32>
    %681 = vector.shape_cast %680 : vector<1x2x512xf32> to vector<2x512xf32>
    %682 = arith.truncf %675 : vector<2x128xf32> to vector<2x128xbf16>
    %cst_149 = arith.constant dense<0.000000e+00> : vector<2x512xf32>
    %683 = tpu.matmul %682, %15, %cst_149 {dimension_numbers = #tpu.dot_dimension_numbers<[1], [0], [0], [1], [0, 0, 1, 1], [], []>} : vector<2x128xbf16>, vector<128x512xbf16>, vector<2x512xf32> -> vector<2x512xf32>
    %684 = arith.addf %681, %683 : vector<2x512xf32>
    %685 = vector.extract_strided_slice %684 {offsets = [0, 0], sizes = [2, 384], strides = [1, 1]} : vector<2x512xf32> to vector<2x384xf32>
    %686 = arith.negf %685 : vector<2x384xf32>
    %687 = math.exp %686 : vector<2x384xf32>
    %cst_150 = arith.constant 1.000000e+00 : f32
    %688 = vector.broadcast %cst_150 : f32 to vector<2x384xf32>
    %689 = arith.addf %688, %687 : vector<2x384xf32>
    %690 = arith.divf %688, %689 : vector<2x384xf32>
    %691 = vector.extract_strided_slice %690 {offsets = [0, 0], sizes = [2, 128], strides = [1, 1]} : vector<2x384xf32> to vector<2x128xf32>
    %692 = vector.extract_strided_slice %690 {offsets = [0, 128], sizes = [2, 128], strides = [1, 1]} : vector<2x384xf32> to vector<2x128xf32>
    %693 = vector.extract_strided_slice %690 {offsets = [0, 256], sizes = [2, 128], strides = [1, 1]} : vector<2x384xf32> to vector<2x128xf32>
    %694 = vector.extract_strided_slice %684 {offsets = [0, 384], sizes = [2, 128], strides = [1, 1]} : vector<2x512xf32> to vector<2x128xf32>
    %695 = math.tanh %694 : vector<2x128xf32>
    %696 = arith.mulf %692, %673 : vector<2x128xf32>
    %697 = arith.mulf %691, %695 : vector<2x128xf32>
    %698 = arith.addf %696, %697 : vector<2x128xf32>
    %699 = math.tanh %698 : vector<2x128xf32>
    %700 = arith.mulf %693, %699 : vector<2x128xf32>
    %701 = arith.truncf %700 : vector<2x128xf32> to vector<2x128xbf16>
    %c3_151 = arith.constant 3 : index
    %c0_152 = arith.constant 0 : index
    %c0_153 = arith.constant 0 : index
    %702 = vector.load %arg18[%c3_151, %c0_152, %c0_153] : memref<8x2x128xbf16, #tpu.memory_space<vmem>>, vector<1x2x128xbf16>
    %703 = vector.shape_cast %702 : vector<1x2x128xbf16> to vector<2x128xbf16>
    %704 = vector.shape_cast %701 : vector<2x128xbf16> to vector<1x2x128xbf16>
    tpu.vector_store %arg18[%c3_151, %c0_152, %c0_153], %704 {strides = array<i32>} : memref<8x2x128xbf16, #tpu.memory_space<vmem>>, vector<1x2x128xbf16>,
    %705 = vector.extract_strided_slice %602 {offsets = [4, 0, 0], sizes = [1, 2, 512], strides = [1, 1, 1]} : vector<8x2x512xf32> to vector<1x2x512xf32>
    %706 = vector.shape_cast %705 : vector<1x2x512xf32> to vector<2x512xf32>
    %707 = arith.truncf %700 : vector<2x128xf32> to vector<2x128xbf16>
    %cst_154 = arith.constant dense<0.000000e+00> : vector<2x512xf32>
    %708 = tpu.matmul %707, %15, %cst_154 {dimension_numbers = #tpu.dot_dimension_numbers<[1], [0], [0], [1], [0, 0, 1, 1], [], []>} : vector<2x128xbf16>, vector<128x512xbf16>, vector<2x512xf32> -> vector<2x512xf32>
    %709 = arith.addf %706, %708 : vector<2x512xf32>
    %710 = vector.extract_strided_slice %709 {offsets = [0, 0], sizes = [2, 384], strides = [1, 1]} : vector<2x512xf32> to vector<2x384xf32>
    %711 = arith.negf %710 : vector<2x384xf32>
    %712 = math.exp %711 : vector<2x384xf32>
    %cst_155 = arith.constant 1.000000e+00 : f32
    %713 = vector.broadcast %cst_155 : f32 to vector<2x384xf32>
    %714 = arith.addf %713, %712 : vector<2x384xf32>
    %715 = arith.divf %713, %714 : vector<2x384xf32>
    %716 = vector.extract_strided_slice %715 {offsets = [0, 0], sizes = [2, 128], strides = [1, 1]} : vector<2x384xf32> to vector<2x128xf32>
    %717 = vector.extract_strided_slice %715 {offsets = [0, 128], sizes = [2, 128], strides = [1, 1]} : vector<2x384xf32> to vector<2x128xf32>
    %718 = vector.extract_strided_slice %715 {offsets = [0, 256], sizes = [2, 128], strides = [1, 1]} : vector<2x384xf32> to vector<2x128xf32>
    %719 = vector.extract_strided_slice %709 {offsets = [0, 384], sizes = [2, 128], strides = [1, 1]} : vector<2x512xf32> to vector<2x128xf32>
    %720 = math.tanh %719 : vector<2x128xf32>
    %721 = arith.mulf %717, %698 : vector<2x128xf32>
    %722 = arith.mulf %716, %720 : vector<2x128xf32>
    %723 = arith.addf %721, %722 : vector<2x128xf32>
    %724 = math.tanh %723 : vector<2x128xf32>
    %725 = arith.mulf %718, %724 : vector<2x128xf32>
    %726 = arith.truncf %725 : vector<2x128xf32> to vector<2x128xbf16>
    %c4_156 = arith.constant 4 : index
    %c0_157 = arith.constant 0 : index
    %c0_158 = arith.constant 0 : index
    %727 = vector.load %arg18[%c4_156, %c0_157, %c0_158] : memref<8x2x128xbf16, #tpu.memory_space<vmem>>, vector<1x2x128xbf16>
    %728 = vector.shape_cast %727 : vector<1x2x128xbf16> to vector<2x128xbf16>
    %729 = vector.shape_cast %726 : vector<2x128xbf16> to vector<1x2x128xbf16>
    tpu.vector_store %arg18[%c4_156, %c0_157, %c0_158], %729 {strides = array<i32>} : memref<8x2x128xbf16, #tpu.memory_space<vmem>>, vector<1x2x128xbf16>,
    %730 = vector.extract_strided_slice %602 {offsets = [5, 0, 0], sizes = [1, 2, 512], strides = [1, 1, 1]} : vector<8x2x512xf32> to vector<1x2x512xf32>
    %731 = vector.shape_cast %730 : vector<1x2x512xf32> to vector<2x512xf32>
    %732 = arith.truncf %725 : vector<2x128xf32> to vector<2x128xbf16>
    %cst_159 = arith.constant dense<0.000000e+00> : vector<2x512xf32>
    %733 = tpu.matmul %732, %15, %cst_159 {dimension_numbers = #tpu.dot_dimension_numbers<[1], [0], [0], [1], [0, 0, 1, 1], [], []>} : vector<2x128xbf16>, vector<128x512xbf16>, vector<2x512xf32> -> vector<2x512xf32>
    %734 = arith.addf %731, %733 : vector<2x512xf32>
    %735 = vector.extract_strided_slice %734 {offsets = [0, 0], sizes = [2, 384], strides = [1, 1]} : vector<2x512xf32> to vector<2x384xf32>
    %736 = arith.negf %735 : vector<2x384xf32>
    %737 = math.exp %736 : vector<2x384xf32>
    %cst_160 = arith.constant 1.000000e+00 : f32
    %738 = vector.broadcast %cst_160 : f32 to vector<2x384xf32>
    %739 = arith.addf %738, %737 : vector<2x384xf32>
    %740 = arith.divf %738, %739 : vector<2x384xf32>
    %741 = vector.extract_strided_slice %740 {offsets = [0, 0], sizes = [2, 128], strides = [1, 1]} : vector<2x384xf32> to vector<2x128xf32>
    %742 = vector.extract_strided_slice %740 {offsets = [0, 128], sizes = [2, 128], strides = [1, 1]} : vector<2x384xf32> to vector<2x128xf32>
    %743 = vector.extract_strided_slice %740 {offsets = [0, 256], sizes = [2, 128], strides = [1, 1]} : vector<2x384xf32> to vector<2x128xf32>
    %744 = vector.extract_strided_slice %734 {offsets = [0, 384], sizes = [2, 128], strides = [1, 1]} : vector<2x512xf32> to vector<2x128xf32>
    %745 = math.tanh %744 : vector<2x128xf32>
    %746 = arith.mulf %742, %723 : vector<2x128xf32>
    %747 = arith.mulf %741, %745 : vector<2x128xf32>
    %748 = arith.addf %746, %747 : vector<2x128xf32>
    %749 = math.tanh %748 : vector<2x128xf32>
    %750 = arith.mulf %743, %749 : vector<2x128xf32>
    %751 = arith.truncf %750 : vector<2x128xf32> to vector<2x128xbf16>
    %c5_161 = arith.constant 5 : index
    %c0_162 = arith.constant 0 : index
    %c0_163 = arith.constant 0 : index
    %752 = vector.load %arg18[%c5_161, %c0_162, %c0_163] : memref<8x2x128xbf16, #tpu.memory_space<vmem>>, vector<1x2x128xbf16>
    %753 = vector.shape_cast %752 : vector<1x2x128xbf16> to vector<2x128xbf16>
    %754 = vector.shape_cast %751 : vector<2x128xbf16> to vector<1x2x128xbf16>
    tpu.vector_store %arg18[%c5_161, %c0_162, %c0_163], %754 {strides = array<i32>} : memref<8x2x128xbf16, #tpu.memory_space<vmem>>, vector<1x2x128xbf16>,
    %755 = vector.extract_strided_slice %602 {offsets = [6, 0, 0], sizes = [1, 2, 512], strides = [1, 1, 1]} : vector<8x2x512xf32> to vector<1x2x512xf32>
    %756 = vector.shape_cast %755 : vector<1x2x512xf32> to vector<2x512xf32>
    %757 = arith.truncf %750 : vector<2x128xf32> to vector<2x128xbf16>
    %cst_164 = arith.constant dense<0.000000e+00> : vector<2x512xf32>
    %758 = tpu.matmul %757, %15, %cst_164 {dimension_numbers = #tpu.dot_dimension_numbers<[1], [0], [0], [1], [0, 0, 1, 1], [], []>} : vector<2x128xbf16>, vector<128x512xbf16>, vector<2x512xf32> -> vector<2x512xf32>
    %759 = arith.addf %756, %758 : vector<2x512xf32>
    %760 = vector.extract_strided_slice %759 {offsets = [0, 0], sizes = [2, 384], strides = [1, 1]} : vector<2x512xf32> to vector<2x384xf32>
    %761 = arith.negf %760 : vector<2x384xf32>
    %762 = math.exp %761 : vector<2x384xf32>
    %cst_165 = arith.constant 1.000000e+00 : f32
    %763 = vector.broadcast %cst_165 : f32 to vector<2x384xf32>
    %764 = arith.addf %763, %762 : vector<2x384xf32>
    %765 = arith.divf %763, %764 : vector<2x384xf32>
    %766 = vector.extract_strided_slice %765 {offsets = [0, 0], sizes = [2, 128], strides = [1, 1]} : vector<2x384xf32> to vector<2x128xf32>
    %767 = vector.extract_strided_slice %765 {offsets = [0, 128], sizes = [2, 128], strides = [1, 1]} : vector<2x384xf32> to vector<2x128xf32>
    %768 = vector.extract_strided_slice %765 {offsets = [0, 256], sizes = [2, 128], strides = [1, 1]} : vector<2x384xf32> to vector<2x128xf32>
    %769 = vector.extract_strided_slice %759 {offsets = [0, 384], sizes = [2, 128], strides = [1, 1]} : vector<2x512xf32> to vector<2x128xf32>
    %770 = math.tanh %769 : vector<2x128xf32>
    %771 = arith.mulf %767, %748 : vector<2x128xf32>
    %772 = arith.mulf %766, %770 : vector<2x128xf32>
    %773 = arith.addf %771, %772 : vector<2x128xf32>
    %774 = math.tanh %773 : vector<2x128xf32>
    %775 = arith.mulf %768, %774 : vector<2x128xf32>
    %776 = arith.truncf %775 : vector<2x128xf32> to vector<2x128xbf16>
    %c6_166 = arith.constant 6 : index
    %c0_167 = arith.constant 0 : index
    %c0_168 = arith.constant 0 : index
    %777 = vector.load %arg18[%c6_166, %c0_167, %c0_168] : memref<8x2x128xbf16, #tpu.memory_space<vmem>>, vector<1x2x128xbf16>
    %778 = vector.shape_cast %777 : vector<1x2x128xbf16> to vector<2x128xbf16>
    %779 = vector.shape_cast %776 : vector<2x128xbf16> to vector<1x2x128xbf16>
    tpu.vector_store %arg18[%c6_166, %c0_167, %c0_168], %779 {strides = array<i32>} : memref<8x2x128xbf16, #tpu.memory_space<vmem>>, vector<1x2x128xbf16>,
    %780 = vector.extract_strided_slice %602 {offsets = [7, 0, 0], sizes = [1, 2, 512], strides = [1, 1, 1]} : vector<8x2x512xf32> to vector<1x2x512xf32>
    %781 = vector.shape_cast %780 : vector<1x2x512xf32> to vector<2x512xf32>
    %782 = arith.truncf %775 : vector<2x128xf32> to vector<2x128xbf16>
    %cst_169 = arith.constant dense<0.000000e+00> : vector<2x512xf32>
    %783 = tpu.matmul %782, %15, %cst_169 {dimension_numbers = #tpu.dot_dimension_numbers<[1], [0], [0], [1], [0, 0, 1, 1], [], []>} : vector<2x128xbf16>, vector<128x512xbf16>, vector<2x512xf32> -> vector<2x512xf32>
    %784 = arith.addf %781, %783 : vector<2x512xf32>
    %785 = vector.extract_strided_slice %784 {offsets = [0, 0], sizes = [2, 384], strides = [1, 1]} : vector<2x512xf32> to vector<2x384xf32>
    %786 = arith.negf %785 : vector<2x384xf32>
    %787 = math.exp %786 : vector<2x384xf32>
    %cst_170 = arith.constant 1.000000e+00 : f32
    %788 = vector.broadcast %cst_170 : f32 to vector<2x384xf32>
    %789 = arith.addf %788, %787 : vector<2x384xf32>
    %790 = arith.divf %788, %789 : vector<2x384xf32>
    %791 = vector.extract_strided_slice %790 {offsets = [0, 0], sizes = [2, 128], strides = [1, 1]} : vector<2x384xf32> to vector<2x128xf32>
    %792 = vector.extract_strided_slice %790 {offsets = [0, 128], sizes = [2, 128], strides = [1, 1]} : vector<2x384xf32> to vector<2x128xf32>
    %793 = vector.extract_strided_slice %790 {offsets = [0, 256], sizes = [2, 128], strides = [1, 1]} : vector<2x384xf32> to vector<2x128xf32>
    %794 = vector.extract_strided_slice %784 {offsets = [0, 384], sizes = [2, 128], strides = [1, 1]} : vector<2x512xf32> to vector<2x128xf32>
    %795 = math.tanh %794 : vector<2x128xf32>
    %796 = arith.mulf %792, %773 : vector<2x128xf32>
    %797 = arith.mulf %791, %795 : vector<2x128xf32>
    %798 = arith.addf %796, %797 : vector<2x128xf32>
    %799 = math.tanh %798 : vector<2x128xf32>
    %800 = arith.mulf %793, %799 : vector<2x128xf32>
    %801 = arith.truncf %800 : vector<2x128xf32> to vector<2x128xbf16>
    %c7_171 = arith.constant 7 : index
    %c0_172 = arith.constant 0 : index
    %c0_173 = arith.constant 0 : index
    %802 = vector.load %arg18[%c7_171, %c0_172, %c0_173] : memref<8x2x128xbf16, #tpu.memory_space<vmem>>, vector<1x2x128xbf16>
    %803 = vector.shape_cast %802 : vector<1x2x128xbf16> to vector<2x128xbf16>
    %804 = vector.shape_cast %801 : vector<2x128xbf16> to vector<1x2x128xbf16>
    tpu.vector_store %arg18[%c7_171, %c0_172, %c0_173], %804 {strides = array<i32>} : memref<8x2x128xbf16, #tpu.memory_space<vmem>>, vector<1x2x128xbf16>,
    %c0_174 = arith.constant 0 : index
    %c0_175 = arith.constant 0 : index
    %c0_176 = arith.constant 0 : index
    %805 = vector.load %arg18[%c0_174, %c0_175, %c0_176] : memref<8x2x128xbf16, #tpu.memory_space<vmem>>, vector<8x2x128xbf16>
    %806 = vector.shape_cast %805 : vector<8x2x128xbf16> to vector<16x128xbf16>
    %cst_177 = arith.constant dense<0.000000e+00> : vector<16x4xf32>
    %807 = tpu.matmul %806, %17, %cst_177 {dimension_numbers = #tpu.dot_dimension_numbers<[1], [0], [0], [1], [0, 0, 1, 1], [], []>} : vector<16x128xbf16>, vector<128x4xbf16>, vector<16x4xf32> -> vector<16x4xf32>
    %c0_178 = arith.constant 0 : index
    %c0_179 = arith.constant 0 : index
    %808 = vector.load %arg14[%c0_178, %c0_179] : memref<1x4xf32, #tpu.memory_space<vmem>>, vector<1x4xf32>
    %809 = vector.broadcast %808 : vector<1x4xf32> to vector<16x4xf32>
    %810 = arith.addf %807, %809 : vector<16x4xf32>
    %811 = vector.shape_cast %810 : vector<16x4xf32> to vector<8x2x4xf32>
    %c0_180 = arith.constant 0 : index
    %c0_181 = arith.constant 0 : index
    %c0_182 = arith.constant 0 : index
    %812 = vector.load %arg15[%c0_180, %c0_181, %c0_182] : memref<8x2x4xf32, #tpu.memory_space<vmem>>, vector<8x2x4xf32>
    tpu.vector_store %arg15[%c0_180, %c0_181, %c0_182], %811 {strides = array<i32>} : memref<8x2x4xf32, #tpu.memory_space<vmem>>, vector<8x2x4xf32>,
    return
  }
}

</mosaic_0001>

<llo_original>
// kernel: tpu_custom_call.1
$region0: #{tpu_custom_call.1}
  #allocation0 [shape = 'u32[]', space=smem, size = 0x4, offset = 0x4, fixed_abs, tag = 'smem constant byte address 0x4 - core index']
  #allocation1 [shape = 'u32[144,128]{1,0:T(1,128)}', space=vmem, size = 0x12000, scoped, tag = 'internal scratch']
  #allocation2 [shape = 'bf16[8,2,128]{2,1,0:T(2,128)(2,1)}', space=vmem, size = 0x1000, scoped, tag = 'scratch operand']
  #allocation3 [shape = 'bf16[8,2,64]{2,1,0:T(2,128)(2,1)}', space=vmem, size = 0x1000, scoped, tag = 'scratch operand']
  #allocation4 [shape = 'bf16[8,2,128]{2,1,0:T(2,128)(2,1)}', space=vmem, size = 0x1000, scoped, tag = 'scratch operand']
  %s0 = inlined_call_operand.vmem [shape: f32[8,2,4], index: 0, kind: input, shape index: {}]
  %s1 = inlined_call_operand.vmem [shape: f32[4,512], index: 1, kind: input, shape index: {}]
  %s2 = inlined_call_operand.hbm [shape: f32[128,512], index: 2, kind: input, shape index: {}]
  %s3 = inlined_call_operand.vmem [shape: f32[1,512], index: 3, kind: input, shape index: {}]
  %s4 = inlined_call_operand.hbm [shape: f32[128,256], index: 4, kind: input, shape index: {}]
  %s5 = inlined_call_operand.vmem [shape: f32[64,256], index: 5, kind: input, shape index: {}]
  %s6 = inlined_call_operand.vmem [shape: f32[1,256], index: 6, kind: input, shape index: {}]
  %s7 = inlined_call_operand.hbm [shape: f32[64,256], index: 7, kind: input, shape index: {}]
  %s8 = inlined_call_operand.hbm [shape: f32[64,256], index: 8, kind: input, shape index: {}]
  %s9 = inlined_call_operand.vmem [shape: f32[1,256], index: 9, kind: input, shape index: {}]
  %s10 = inlined_call_operand.hbm [shape: f32[64,512], index: 10, kind: input, shape index: {}]
  %s11 = inlined_call_operand.hbm [shape: f32[128,512], index: 11, kind: input, shape index: {}]
  %s12 = inlined_call_operand.vmem [shape: f32[1,512], index: 12, kind: input, shape index: {}]
  %s13 = inlined_call_operand.vmem [shape: f32[128,4], index: 13, kind: input, shape index: {}]
  %s14 = inlined_call_operand.vmem [shape: f32[1,4], index: 14, kind: input, shape index: {}]
  %s15 = inlined_call_operand.vmem [shape: f32[8,2,4], index: 15, kind: output, shape index: {}]
  %s16 = sld [smem:[#allocation0]]
  $region94: #{tpu_custom_call.1} parent=0
    _
  %s18 = ssub.s32 1, %s16
  %s19 = scalar_select 0, %s18, %s16
  $region1: #{tpu_custom_call.1} parent=0
    #allocation5 [shape = 'u8[262144]{0}', space=vmem, size = 0x40000, scoped, tag = 'input window, operand 2, single buffered']
    #allocation6 [shape = 's32[1]{0}', space=sflag, size = 0x4, scoped, tag = 'scoped memory for tpu_custom_call.1']
    #allocation7 [shape = 'u8[131072]{0}', space=vmem, size = 0x20000, scoped, tag = 'input window, operand 4, single buffered']
    #allocation8 [shape = 's32[1]{0}', space=sflag, size = 0x4, scoped, tag = 'scoped memory for tpu_custom_call.1']
    #allocation9 [shape = 'u8[65536]{0}', space=vmem, size = 0x10000, scoped, tag = 'input window, operand 7, single buffered']
    #allocation10 [shape = 'u8[65536]{0}', space=vmem, size = 0x10000, scoped, tag = 'input window, operand 8, single buffered']
    #allocation11 [shape = 's32[1]{0}', space=sflag, size = 0x4, scoped, tag = 'scoped memory for tpu_custom_call.1']
    #allocation12 [shape = 'u8[131072]{0}', space=vmem, size = 0x20000, scoped, tag = 'input window, operand 10, single buffered']
    #allocation13 [shape = 'u8[262144]{0}', space=vmem, size = 0x40000, scoped, tag = 'input window, operand 11, single buffered']
    #allocation14 [shape = 's32[1]{0}', space=sflag, size = 0x4, scoped, tag = 'scoped memory for tpu_custom_call.1']
    %20 = vsyncpa [#allocation6], 0
    %21 = vsyncpa [#allocation8], 0
    %22 = vsyncpa [#allocation11], 0
    %23 = vsyncpa [#allocation14], 0
    // Predicated region
    $region2: #{tpu_custom_call.1} parent=1 // pred_check
      _
    $region3: #{tpu_custom_call.1} parent=1 // pred_check_branch
      %25 = sbr.rel (0) target = $region5
    $region4: #{tpu_custom_call.1} parent=1 // pred_region
      _
    $region5: #{tpu_custom_call.1} parent=1 // pred_fallthru
      _
    // Predicated region
    $region6: #{tpu_custom_call.1} parent=1 // pred_check
      _
    $region7: #{tpu_custom_call.1} parent=1 // pred_check_branch
      %27 = sbr.rel (0) target = $region9
    $region8: #{tpu_custom_call.1} parent=1 // pred_region
      _
    $region9: #{tpu_custom_call.1} parent=1 // pred_fallthru
      _
    // Predicated region
    $region10: #{tpu_custom_call.1} parent=1 // pred_check
      _
    $region11: #{tpu_custom_call.1} parent=1 // pred_check_branch
      %29 = sbr.rel (0) target = $region13
    $region12: #{tpu_custom_call.1} parent=1 // pred_region
      %s31 = ssub.s32 8192, 8192
      %32 = vsyncadd [#allocation6], %s31
      %s33 = sshll.u32 [#allocation5], 4
      %s34 = int_to_ptr.vmem [resolvable:$true] %s33
      %39 = dma.hbm_to_vmem [thread:$0]  %s2, 8192, %s34, [#allocation6], 512, 512, 32
    $region13: #{tpu_custom_call.1} parent=1 // pred_fallthru
      _
    // Predicated region
    $region14: #{tpu_custom_call.1} parent=1 // pred_check
      _
    $region15: #{tpu_custom_call.1} parent=1 // pred_check_branch
      %41 = sbr.rel (0) target = $region17
    $region16: #{tpu_custom_call.1} parent=1 // pred_region
      _
    $region17: #{tpu_custom_call.1} parent=1 // pred_fallthru
      _
    // Predicated region
    $region18: #{tpu_custom_call.1} parent=1 // pred_check
      _
    $region19: #{tpu_custom_call.1} parent=1 // pred_check_branch
      %43 = sbr.rel (0) target = $region21
    $region20: #{tpu_custom_call.1} parent=1 // pred_region
      %s45 = ssub.s32 4096, 4096
      %46 = vsyncadd [#allocation8], %s45
      %s47 = sshll.u32 [#allocation7], 4
      %s48 = int_to_ptr.vmem [resolvable:$true] %s47
      %53 = dma.hbm_to_vmem [thread:$0]  %s4, 4096, %s48, [#allocation8], 256, 256, 16
    $region21: #{tpu_custom_call.1} parent=1 // pred_fallthru
      _
    // Predicated region
    $region22: #{tpu_custom_call.1} parent=1 // pred_check
      _
    $region23: #{tpu_custom_call.1} parent=1 // pred_check_branch
      %55 = sbr.rel (0) target = $region25
    $region24: #{tpu_custom_call.1} parent=1 // pred_region
      _
    $region25: #{tpu_custom_call.1} parent=1 // pred_fallthru
      _
    // Predicated region
    $region26: #{tpu_custom_call.1} parent=1 // pred_check
      _
    $region27: #{tpu_custom_call.1} parent=1 // pred_check_branch
      %57 = sbr.rel (0) target = $region29
    $region28: #{tpu_custom_call.1} parent=1 // pred_region
      _
    $region29: #{tpu_custom_call.1} parent=1 // pred_fallthru
      _
    // Predicated region
    $region30: #{tpu_custom_call.1} parent=1 // pred_check
      _
    $region31: #{tpu_custom_call.1} parent=1 // pred_check_branch
      %59 = sbr.rel (0) target = $region33
    $region32: #{tpu_custom_call.1} parent=1 // pred_region
      %s61 = ssub.s32 2048, 2048
      %62 = vsyncadd [#allocation8], %s61
      %s63 = sshll.u32 [#allocation9], 4
      %s64 = int_to_ptr.vmem [resolvable:$true] %s63
      %69 = dma.hbm_to_vmem [thread:$0]  %s7, 2048, %s64, [#allocation8], 256, 256, 16
    $region33: #{tpu_custom_call.1} parent=1 // pred_fallthru
      _
    // Predicated region
    $region34: #{tpu_custom_call.1} parent=1 // pred_check
      _
    $region35: #{tpu_custom_call.1} parent=1 // pred_check_branch
      %71 = sbr.rel (0) target = $region37
    $region36: #{tpu_custom_call.1} parent=1 // pred_region
      %s73 = ssub.s32 2048, 2048
      %74 = vsyncadd [#allocation11], %s73
      %s75 = sshll.u32 [#allocation10], 4
      %s76 = int_to_ptr.vmem [resolvable:$true] %s75
      %81 = dma.hbm_to_vmem [thread:$0]  %s8, 2048, %s76, [#allocation11], 256, 256, 16
    $region37: #{tpu_custom_call.1} parent=1 // pred_fallthru
      _
    // Predicated region
    $region38: #{tpu_custom_call.1} parent=1 // pred_check
      _
    $region39: #{tpu_custom_call.1} parent=1 // pred_check_branch
      %83 = sbr.rel (0) target = $region41
    $region40: #{tpu_custom_call.1} parent=1 // pred_region
      _
    $region41: #{tpu_custom_call.1} parent=1 // pred_fallthru
      _
    // Predicated region
    $region42: #{tpu_custom_call.1} parent=1 // pred_check
      _
    $region43: #{tpu_custom_call.1} parent=1 // pred_check_branch
      %85 = sbr.rel (0) target = $region45
    $region44: #{tpu_custom_call.1} parent=1 // pred_region
      %s87 = ssub.s32 4096, 4096
      %88 = vsyncadd [#allocation11], %s87
      %s89 = sshll.u32 [#allocation12], 4
      %s90 = int_to_ptr.vmem [resolvable:$true] %s89
      %95 = dma.hbm_to_vmem [thread:$0]  %s10, 4096, %s90, [#allocation11], 512, 512, 32
    $region45: #{tpu_custom_call.1} parent=1 // pred_fallthru
      _
    // Predicated region
    $region46: #{tpu_custom_call.1} parent=1 // pred_check
      _
    $region47: #{tpu_custom_call.1} parent=1 // pred_check_branch
      %97 = sbr.rel (0) target = $region49
    $region48: #{tpu_custom_call.1} parent=1 // pred_region
      %s99 = ssub.s32 8192, 8192
      %100 = vsyncadd [#allocation14], %s99
      %s101 = sshll.u32 [#allocation13], 4
      %s102 = int_to_ptr.vmem [resolvable:$true] %s101
      %107 = dma.hbm_to_vmem [thread:$0]  %s11, 8192, %s102, [#allocation14], 512, 512, 32
    $region49: #{tpu_custom_call.1} parent=1 // pred_fallthru
      _
    // Predicated region
    $region50: #{tpu_custom_call.1} parent=1 // pred_check
      _
    $region51: #{tpu_custom_call.1} parent=1 // pred_check_branch
      %109 = sbr.rel (0) target = $region53
    $region52: #{tpu_custom_call.1} parent=1 // pred_region
      _
    $region53: #{tpu_custom_call.1} parent=1 // pred_fallthru
      _
    // Predicated region
    $region54: #{tpu_custom_call.1} parent=1 // pred_check
      _
    $region55: #{tpu_custom_call.1} parent=1 // pred_check_branch
      %111 = sbr.rel (0) target = $region57
    $region56: #{tpu_custom_call.1} parent=1 // pred_region
      _
    $region57: #{tpu_custom_call.1} parent=1 // pred_fallthru
      _
    // Predicated region
    $region58: #{tpu_custom_call.1} parent=1 // pred_check
      _
    $region59: #{tpu_custom_call.1} parent=1 // pred_check_branch
      %113 = sbr.rel (0) target = $region61
    $region60: #{tpu_custom_call.1} parent=1 // pred_region
      _
    $region61: #{tpu_custom_call.1} parent=1 // pred_fallthru
      _
    // Predicated region
    $region62: #{tpu_custom_call.1} parent=1 // pred_check
      _
    $region63: #{tpu_custom_call.1} parent=1 // pred_check_branch
      %115 = sbr.rel (0) target = $region65
    $region64: #{tpu_custom_call.1} parent=1 // pred_region
      %116 = dma.done [#allocation6], 8192
    $region65: #{tpu_custom_call.1} parent=1 // pred_fallthru
      _
    // Predicated region
    $region66: #{tpu_custom_call.1} parent=1 // pred_check
      _
    $region67: #{tpu_custom_call.1} parent=1 // pred_check_branch
      %118 = sbr.rel (0) target = $region69
    $region68: #{tpu_custom_call.1} parent=1 // pred_region
      %119 = dma.done [#allocation8], 4096
    $region69: #{tpu_custom_call.1} parent=1 // pred_fallthru
      _
    // Predicated region
    $region70: #{tpu_custom_call.1} parent=1 // pred_check
      _
    $region71: #{tpu_custom_call.1} parent=1 // pred_check_branch
      %121 = sbr.rel (0) target = $region73
    $region72: #{tpu_custom_call.1} parent=1 // pred_region
      %122 = dma.done [#allocation8], 2048
    $region73: #{tpu_custom_call.1} parent=1 // pred_fallthru
      _
    // Predicated region
    $region74: #{tpu_custom_call.1} parent=1 // pred_check
      _
    $region75: #{tpu_custom_call.1} parent=1 // pred_check_branch
      %124 = sbr.rel (0) target = $region77
    $region76: #{tpu_custom_call.1} parent=1 // pred_region
      %125 = dma.done [#allocation11], 2048
    $region77: #{tpu_custom_call.1} parent=1 // pred_fallthru
      _
    // Predicated region
    $region78: #{tpu_custom_call.1} parent=1 // pred_check
      _
    $region79: #{tpu_custom_call.1} parent=1 // pred_check_branch
      %127 = sbr.rel (0) target = $region81
    $region80: #{tpu_custom_call.1} parent=1 // pred_region
      %128 = dma.done [#allocation11], 4096
    $region81: #{tpu_custom_call.1} parent=1 // pred_fallthru
      _
    // Predicated region
    $region82: #{tpu_custom_call.1} parent=1 // pred_check
      _
    $region83: #{tpu_custom_call.1} parent=1 // pred_check_branch
      %130 = sbr.rel (0) target = $region85
    $region84: #{tpu_custom_call.1} parent=1 // pred_region
      %131 = dma.done [#allocation14], 8192
    $region85: #{tpu_custom_call.1} parent=1 // pred_fallthru
      _
    %v133 = vld [vmem:[%s1] sm:$0xff]
    %v134 = vld [vmem:[%s1 + $0x8] sm:$0xff]
    %v137 = vcombine.high %v133, %v133
    %v138 = vcombine.high %v134, %v134
    %v141 = vpack.c.bf16 %v133, %v133
    %v142 = vpack.c.bf16 %v137, %v137
    %v143 = vpack.c.bf16 %v134, %v134
    %v144 = vpack.c.bf16 %v138, %v138
    %v145 = vld [vmem:[#allocation5] sm:$0xff]
    %v146 = vld [vmem:[#allocation5 + $0x8] sm:$0xff]
    %v147 = vld [vmem:[#allocation5 + $0x10] sm:$0xff]
    %v148 = vld [vmem:[#allocation5 + $0x18] sm:$0xff]
    %v149 = vld [vmem:[#allocation5 + $0x20] sm:$0xff]
    %v150 = vld [vmem:[#allocation5 + $0x28] sm:$0xff]
    %v151 = vld [vmem:[#allocation5 + $0x30] sm:$0xff]
    %v152 = vld [vmem:[#allocation5 + $0x38] sm:$0xff]
    %v153 = vld [vmem:[#allocation5 + $0x40] sm:$0xff]
    %v154 = vld [vmem:[#allocation5 + $0x48] sm:$0xff]
    %v155 = vld [vmem:[#allocation5 + $0x50] sm:$0xff]
    %v156 = vld [vmem:[#allocation5 + $0x58] sm:$0xff]
    %v157 = vld [vmem:[#allocation5 + $0x60] sm:$0xff]
    %v158 = vld [vmem:[#allocation5 + $0x68] sm:$0xff]
    %v159 = vld [vmem:[#allocation5 + $0x70] sm:$0xff]
    %v160 = vld [vmem:[#allocation5 + $0x78] sm:$0xff]
    %v161 = vld [vmem:[#allocation5 + $0x80] sm:$0xff]
    %v162 = vld [vmem:[#allocation5 + $0x88] sm:$0xff]
    %v163 = vld [vmem:[#allocation5 + $0x90] sm:$0xff]
    %v164 = vld [vmem:[#allocation5 + $0x98] sm:$0xff]
    %v165 = vld [vmem:[#allocation5 + $0xa0] sm:$0xff]
    %v166 = vld [vmem:[#allocation5 + $0xa8] sm:$0xff]
    %v167 = vld [vmem:[#allocation5 + $0xb0] sm:$0xff]
    %v168 = vld [vmem:[#allocation5 + $0xb8] sm:$0xff]
    %v169 = vld [vmem:[#allocation5 + $0xc0] sm:$0xff]
    %v170 = vld [vmem:[#allocation5 + $0xc8] sm:$0xff]
    %v171 = vld [vmem:[#allocation5 + $0xd0] sm:$0xff]
    %v172 = vld [vmem:[#allocation5 + $0xd8] sm:$0xff]
    %v173 = vld [vmem:[#allocation5 + $0xe0] sm:$0xff]
    %v174 = vld [vmem:[#allocation5 + $0xe8] sm:$0xff]
    %v175 = vld [vmem:[#allocation5 + $0xf0] sm:$0xff]
    %v176 = vld [vmem:[#allocation5 + $0xf8] sm:$0xff]
    %v177 = vld [vmem:[#allocation5 + $0x100] sm:$0xff]
    %v178 = vld [vmem:[#allocation5 + $0x108] sm:$0xff]
    %v179 = vld [vmem:[#allocation5 + $0x110] sm:$0xff]
    %v180 = vld [vmem:[#allocation5 + $0x118] sm:$0xff]
    %v181 = vld [vmem:[#allocation5 + $0x120] sm:$0xff]
    %v182 = vld [vmem:[#allocation5 + $0x128] sm:$0xff]
    %v183 = vld [vmem:[#allocation5 + $0x130] sm:$0xff]
    %v184 = vld [vmem:[#allocation5 + $0x138] sm:$0xff]
    %v185 = vld [vmem:[#allocation5 + $0x140] sm:$0xff]
    %v186 = vld [vmem:[#allocation5 + $0x148] sm:$0xff]
    %v187 = vld [vmem:[#allocation5 + $0x150] sm:$0xff]
    %v188 = vld [vmem:[#allocation5 + $0x158] sm:$0xff]
    %v189 = vld [vmem:[#allocation5 + $0x160] sm:$0xff]
    %v190 = vld [vmem:[#allocation5 + $0x168] sm:$0xff]
    %v191 = vld [vmem:[#allocation5 + $0x170] sm:$0xff]
    %v192 = vld [vmem:[#allocation5 + $0x178] sm:$0xff]
    %v193 = vld [vmem:[#allocation5 + $0x180] sm:$0xff]
    %v194 = vld [vmem:[#allocation5 + $0x188] sm:$0xff]
    %v195 = vld [vmem:[#allocation5 + $0x190] sm:$0xff]
    %v196 = vld [vmem:[#allocation5 + $0x198] sm:$0xff]
    %v197 = vld [vmem:[#allocation5 + $0x1a0] sm:$0xff]
    %v198 = vld [vmem:[#allocation5 + $0x1a8] sm:$0xff]
    %v199 = vld [vmem:[#allocation5 + $0x1b0] sm:$0xff]
    %v200 = vld [vmem:[#allocation5 + $0x1b8] sm:$0xff]
    %v201 = vld [vmem:[#allocation5 + $0x1c0] sm:$0xff]
    %v202 = vld [vmem:[#allocation5 + $0x1c8] sm:$0xff]
    %v203 = vld [vmem:[#allocation5 + $0x1d0] sm:$0xff]
    %v204 = vld [vmem:[#allocation5 + $0x1d8] sm:$0xff]
    %v205 = vld [vmem:[#allocation5 + $0x1e0] sm:$0xff]
    %v206 = vld [vmem:[#allocation5 + $0x1e8] sm:$0xff]
    %v207 = vld [vmem:[#allocation5 + $0x1f0] sm:$0xff]
    %v208 = vld [vmem:[#allocation5 + $0x1f8] sm:$0xff]
    %v209 = vpack.c.bf16 %v149, %v145
    %v210 = vpack.c.bf16 %v150, %v146
    %v211 = vpack.c.bf16 %v151, %v147
    %v212 = vpack.c.bf16 %v152, %v148
    %v213 = vpack.c.bf16 %v157, %v153
    %v214 = vpack.c.bf16 %v158, %v154
    %v215 = vpack.c.bf16 %v159, %v155
    %v216 = vpack.c.bf16 %v160, %v156
    %v217 = vpack.c.bf16 %v165, %v161
    %v218 = vpack.c.bf16 %v166, %v162
    %v219 = vpack.c.bf16 %v167, %v163
    %v220 = vpack.c.bf16 %v168, %v164
    %v221 = vpack.c.bf16 %v173, %v169
    %v222 = vpack.c.bf16 %v174, %v170
    %v223 = vpack.c.bf16 %v175, %v171
    %v224 = vpack.c.bf16 %v176, %v172
    %v225 = vpack.c.bf16 %v181, %v177
    %v226 = vpack.c.bf16 %v182, %v178
    %v227 = vpack.c.bf16 %v183, %v179
    %v228 = vpack.c.bf16 %v184, %v180
    %v229 = vpack.c.bf16 %v189, %v185
    %v230 = vpack.c.bf16 %v190, %v186
    %v231 = vpack.c.bf16 %v191, %v187
    %v232 = vpack.c.bf16 %v192, %v188
    %v233 = vpack.c.bf16 %v197, %v193
    %v234 = vpack.c.bf16 %v198, %v194
    %v235 = vpack.c.bf16 %v199, %v195
    %v236 = vpack.c.bf16 %v200, %v196
    %v237 = vpack.c.bf16 %v205, %v201
    %v238 = vpack.c.bf16 %v206, %v202
    %v239 = vpack.c.bf16 %v207, %v203
    %v240 = vpack.c.bf16 %v208, %v204
    %v241 = vld [vmem:[#allocation7] sm:$0xff]
    %v242 = vld [vmem:[#allocation7 + $0x8] sm:$0xff]
    %v243 = vld [vmem:[#allocation7 + $0x10] sm:$0xff]
    %v244 = vld [vmem:[#allocation7 + $0x18] sm:$0xff]
    %v245 = vld [vmem:[#allocation7 + $0x20] sm:$0xff]
    %v246 = vld [vmem:[#allocation7 + $0x28] sm:$0xff]
    %v247 = vld [vmem:[#allocation7 + $0x30] sm:$0xff]
    %v248 = vld [vmem:[#allocation7 + $0x38] sm:$0xff]
    %v249 = vld [vmem:[#allocation7 + $0x40] sm:$0xff]
    %v250 = vld [vmem:[#allocation7 + $0x48] sm:$0xff]
    %v251 = vld [vmem:[#allocation7 + $0x50] sm:$0xff]
    %v252 = vld [vmem:[#allocation7 + $0x58] sm:$0xff]
    %v253 = vld [vmem:[#allocation7 + $0x60] sm:$0xff]
    %v254 = vld [vmem:[#allocation7 + $0x68] sm:$0xff]
    %v255 = vld [vmem:[#allocation7 + $0x70] sm:$0xff]
    %v256 = vld [vmem:[#allocation7 + $0x78] sm:$0xff]
    %v257 = vld [vmem:[#allocation7 + $0x80] sm:$0xff]
    %v258 = vld [vmem:[#allocation7 + $0x88] sm:$0xff]
    %v259 = vld [vmem:[#allocation7 + $0x90] sm:$0xff]
    %v260 = vld [vmem:[#allocation7 + $0x98] sm:$0xff]
    %v261 = vld [vmem:[#allocation7 + $0xa0] sm:$0xff]
    %v262 = vld [vmem:[#allocation7 + $0xa8] sm:$0xff]
    %v263 = vld [vmem:[#allocation7 + $0xb0] sm:$0xff]
    %v264 = vld [vmem:[#allocation7 + $0xb8] sm:$0xff]
    %v265 = vld [vmem:[#allocation7 + $0xc0] sm:$0xff]
    %v266 = vld [vmem:[#allocation7 + $0xc8] sm:$0xff]
    %v267 = vld [vmem:[#allocation7 + $0xd0] sm:$0xff]
    %v268 = vld [vmem:[#allocation7 + $0xd8] sm:$0xff]
    %v269 = vld [vmem:[#allocation7 + $0xe0] sm:$0xff]
    %v270 = vld [vmem:[#allocation7 + $0xe8] sm:$0xff]
    %v271 = vld [vmem:[#allocation7 + $0xf0] sm:$0xff]
    %v272 = vld [vmem:[#allocation7 + $0xf8] sm:$0xff]
    %v273 = vpack.c.bf16 %v243, %v241
    %v274 = vpack.c.bf16 %v244, %v242
    %v275 = vpack.c.bf16 %v247, %v245
    %v276 = vpack.c.bf16 %v248, %v246
    %v277 = vpack.c.bf16 %v251, %v249
    %v278 = vpack.c.bf16 %v252, %v250
    %v279 = vpack.c.bf16 %v255, %v253
    %v280 = vpack.c.bf16 %v256, %v254
    %v281 = vpack.c.bf16 %v259, %v257
    %v282 = vpack.c.bf16 %v260, %v258
    %v283 = vpack.c.bf16 %v263, %v261
    %v284 = vpack.c.bf16 %v264, %v262
    %v285 = vpack.c.bf16 %v267, %v265
    %v286 = vpack.c.bf16 %v268, %v266
    %v287 = vpack.c.bf16 %v271, %v269
    %v288 = vpack.c.bf16 %v272, %v270
    %v289 = vld [vmem:[%s5] sm:$0xff]
    %v290 = vld [vmem:[%s5 + $0x8] sm:$0xff]
    %v291 = vld [vmem:[%s5 + $0x10] sm:$0xff]
    %v292 = vld [vmem:[%s5 + $0x18] sm:$0xff]
    %v293 = vld [vmem:[%s5 + $0x20] sm:$0xff]
    %v294 = vld [vmem:[%s5 + $0x28] sm:$0xff]
    %v295 = vld [vmem:[%s5 + $0x30] sm:$0xff]
    %v296 = vld [vmem:[%s5 + $0x38] sm:$0xff]
    %v297 = vld [vmem:[%s5 + $0x40] sm:$0xff]
    %v298 = vld [vmem:[%s5 + $0x48] sm:$0xff]
    %v299 = vld [vmem:[%s5 + $0x50] sm:$0xff]
    %v300 = vld [vmem:[%s5 + $0x58] sm:$0xff]
    %v301 = vld [vmem:[%s5 + $0x60] sm:$0xff]
    %v302 = vld [vmem:[%s5 + $0x68] sm:$0xff]
    %v303 = vld [vmem:[%s5 + $0x70] sm:$0xff]
    %v304 = vld [vmem:[%s5 + $0x78] sm:$0xff]
    %v305 = vpack.c.bf16 %v291, %v289
    %v306 = vpack.c.bf16 %v292, %v290
    %v307 = vpack.c.bf16 %v295, %v293
    %v308 = vpack.c.bf16 %v296, %v294
    %v309 = vpack.c.bf16 %v299, %v297
    %v310 = vpack.c.bf16 %v300, %v298
    %v311 = vpack.c.bf16 %v303, %v301
    %v312 = vpack.c.bf16 %v304, %v302
    %v313 = vld [vmem:[#allocation9] sm:$0xff]
    %v314 = vld [vmem:[#allocation9 + $0x8] sm:$0xff]
    %v315 = vld [vmem:[#allocation9 + $0x10] sm:$0xff]
    %v316 = vld [vmem:[#allocation9 + $0x18] sm:$0xff]
    %v317 = vld [vmem:[#allocation9 + $0x20] sm:$0xff]
    %v318 = vld [vmem:[#allocation9 + $0x28] sm:$0xff]
    %v319 = vld [vmem:[#allocation9 + $0x30] sm:$0xff]
    %v320 = vld [vmem:[#allocation9 + $0x38] sm:$0xff]
    %v321 = vld [vmem:[#allocation9 + $0x40] sm:$0xff]
    %v322 = vld [vmem:[#allocation9 + $0x48] sm:$0xff]
    %v323 = vld [vmem:[#allocation9 + $0x50] sm:$0xff]
    %v324 = vld [vmem:[#allocation9 + $0x58] sm:$0xff]
    %v325 = vld [vmem:[#allocation9 + $0x60] sm:$0xff]
    %v326 = vld [vmem:[#allocation9 + $0x68] sm:$0xff]
    %v327 = vld [vmem:[#allocation9 + $0x70] sm:$0xff]
    %v328 = vld [vmem:[#allocation9 + $0x78] sm:$0xff]
    %v329 = vpack.c.bf16 %v315, %v313
    %v330 = vpack.c.bf16 %v316, %v314
    %v331 = vpack.c.bf16 %v319, %v317
    %v332 = vpack.c.bf16 %v320, %v318
    %v333 = vpack.c.bf16 %v323, %v321
    %v334 = vpack.c.bf16 %v324, %v322
    %v335 = vpack.c.bf16 %v327, %v325
    %v336 = vpack.c.bf16 %v328, %v326
    %v337 = vld [vmem:[#allocation10] sm:$0xff]
    %v338 = vld [vmem:[#allocation10 + $0x8] sm:$0xff]
    %v339 = vld [vmem:[#allocation10 + $0x10] sm:$0xff]
    %v340 = vld [vmem:[#allocation10 + $0x18] sm:$0xff]
    %v341 = vld [vmem:[#allocation10 + $0x20] sm:$0xff]
    %v342 = vld [vmem:[#allocation10 + $0x28] sm:$0xff]
    %v343 = vld [vmem:[#allocation10 + $0x30] sm:$0xff]
    %v344 = vld [vmem:[#allocation10 + $0x38] sm:$0xff]
    %v345 = vld [vmem:[#allocation10 + $0x40] sm:$0xff]
    %v346 = vld [vmem:[#allocation10 + $0x48] sm:$0xff]
    %v347 = vld [vmem:[#allocation10 + $0x50] sm:$0xff]
    %v348 = vld [vmem:[#allocation10 + $0x58] sm:$0xff]
    %v349 = vld [vmem:[#allocation10 + $0x60] sm:$0xff]
    %v350 = vld [vmem:[#allocation10 + $0x68] sm:$0xff]
    %v351 = vld [vmem:[#allocation10 + $0x70] sm:$0xff]
    %v352 = vld [vmem:[#allocation10 + $0x78] sm:$0xff]
    %v353 = vpack.c.bf16 %v339, %v337
    %v354 = vpack.c.bf16 %v340, %v338
    %v355 = vpack.c.bf16 %v343, %v341
    %v356 = vpack.c.bf16 %v344, %v342
    %v357 = vpack.c.bf16 %v347, %v345
    %v358 = vpack.c.bf16 %v348, %v346
    %v359 = vpack.c.bf16 %v351, %v349
    %v360 = vpack.c.bf16 %v352, %v350
    %v361 = vld [vmem:[#allocation12] sm:$0xff]
    %v362 = vld [vmem:[#allocation12 + $0x8] sm:$0xff]
    %v363 = vld [vmem:[#allocation12 + $0x10] sm:$0xff]
    %v364 = vld [vmem:[#allocation12 + $0x18] sm:$0xff]
    %v365 = vld [vmem:[#allocation12 + $0x20] sm:$0xff]
    %v366 = vld [vmem:[#allocation12 + $0x28] sm:$0xff]
    %v367 = vld [vmem:[#allocation12 + $0x30] sm:$0xff]
    %v368 = vld [vmem:[#allocation12 + $0x38] sm:$0xff]
    %v369 = vld [vmem:[#allocation12 + $0x40] sm:$0xff]
    %v370 = vld [vmem:[#allocation12 + $0x48] sm:$0xff]
    %v371 = vld [vmem:[#allocation12 + $0x50] sm:$0xff]
    %v372 = vld [vmem:[#allocation12 + $0x58] sm:$0xff]
    %v373 = vld [vmem:[#allocation12 + $0x60] sm:$0xff]
    %v374 = vld [vmem:[#allocation12 + $0x68] sm:$0xff]
    %v375 = vld [vmem:[#allocation12 + $0x70] sm:$0xff]
    %v376 = vld [vmem:[#allocation12 + $0x78] sm:$0xff]
    %v377 = vld [vmem:[#allocation12 + $0x80] sm:$0xff]
    %v378 = vld [vmem:[#allocation12 + $0x88] sm:$0xff]
    %v379 = vld [vmem:[#allocation12 + $0x90] sm:$0xff]
    %v380 = vld [vmem:[#allocation12 + $0x98] sm:$0xff]
    %v381 = vld [vmem:[#allocation12 + $0xa0] sm:$0xff]
    %v382 = vld [vmem:[#allocation12 + $0xa8] sm:$0xff]
    %v383 = vld [vmem:[#allocation12 + $0xb0] sm:$0xff]
    %v384 = vld [vmem:[#allocation12 + $0xb8] sm:$0xff]
    %v385 = vld [vmem:[#allocation12 + $0xc0] sm:$0xff]
    %v386 = vld [vmem:[#allocation12 + $0xc8] sm:$0xff]
    %v387 = vld [vmem:[#allocation12 + $0xd0] sm:$0xff]
    %v388 = vld [vmem:[#allocation12 + $0xd8] sm:$0xff]
    %v389 = vld [vmem:[#allocation12 + $0xe0] sm:$0xff]
    %v390 = vld [vmem:[#allocation12 + $0xe8] sm:$0xff]
    %v391 = vld [vmem:[#allocation12 + $0xf0] sm:$0xff]
    %v392 = vld [vmem:[#allocation12 + $0xf8] sm:$0xff]
    %v393 = vpack.c.bf16 %v365, %v361
    %v394 = vpack.c.bf16 %v366, %v362
    %v395 = vpack.c.bf16 %v367, %v363
    %v396 = vpack.c.bf16 %v368, %v364
    %v397 = vpack.c.bf16 %v373, %v369
    %v398 = vpack.c.bf16 %v374, %v370
    %v399 = vpack.c.bf16 %v375, %v371
    %v400 = vpack.c.bf16 %v376, %v372
    %v401 = vpack.c.bf16 %v381, %v377
    %v402 = vpack.c.bf16 %v382, %v378
    %v403 = vpack.c.bf16 %v383, %v379
    %v404 = vpack.c.bf16 %v384, %v380
    %v405 = vpack.c.bf16 %v389, %v385
    %v406 = vpack.c.bf16 %v390, %v386
    %v407 = vpack.c.bf16 %v391, %v387
    %v408 = vpack.c.bf16 %v392, %v388
    %v409 = vld [vmem:[#allocation13] sm:$0xff]
    %v410 = vld [vmem:[#allocation13 + $0x8] sm:$0xff]
    %v411 = vld [vmem:[#allocation13 + $0x10] sm:$0xff]
    %v412 = vld [vmem:[#allocation13 + $0x18] sm:$0xff]
    %v413 = vld [vmem:[#allocation13 + $0x20] sm:$0xff]
    %v414 = vld [vmem:[#allocation13 + $0x28] sm:$0xff]
    %v415 = vld [vmem:[#allocation13 + $0x30] sm:$0xff]
    %v416 = vld [vmem:[#allocation13 + $0x38] sm:$0xff]
    %v417 = vld [vmem:[#allocation13 + $0x40] sm:$0xff]
    %v418 = vld [vmem:[#allocation13 + $0x48] sm:$0xff]
    %v419 = vld [vmem:[#allocation13 + $0x50] sm:$0xff]
    %v420 = vld [vmem:[#allocation13 + $0x58] sm:$0xff]
    %v421 = vld [vmem:[#allocation13 + $0x60] sm:$0xff]
    %v422 = vld [vmem:[#allocation13 + $0x68] sm:$0xff]
    %v423 = vld [vmem:[#allocation13 + $0x70] sm:$0xff]
    %v424 = vld [vmem:[#allocation13 + $0x78] sm:$0xff]
    %v425 = vld [vmem:[#allocation13 + $0x80] sm:$0xff]
    %v426 = vld [vmem:[#allocation13 + $0x88] sm:$0xff]
    %v427 = vld [vmem:[#allocation13 + $0x90] sm:$0xff]
    %v428 = vld [vmem:[#allocation13 + $0x98] sm:$0xff]
    %v429 = vld [vmem:[#allocation13 + $0xa0] sm:$0xff]
    %v430 = vld [vmem:[#allocation13 + $0xa8] sm:$0xff]
    %v431 = vld [vmem:[#allocation13 + $0xb0] sm:$0xff]
    %v432 = vld [vmem:[#allocation13 + $0xb8] sm:$0xff]
    %v433 = vld [vmem:[#allocation13 + $0xc0] sm:$0xff]
    %v434 = vld [vmem:[#allocation13 + $0xc8] sm:$0xff]
    %v435 = vld [vmem:[#allocation13 + $0xd0] sm:$0xff]
    %v436 = vld [vmem:[#allocation13 + $0xd8] sm:$0xff]
    %v437 = vld [vmem:[#allocation13 + $0xe0] sm:$0xff]
    %v438 = vld [vmem:[#allocation13 + $0xe8] sm:$0xff]
    %v439 = vld [vmem:[#allocation13 + $0xf0] sm:$0xff]
    %v440 = vld [vmem:[#allocation13 + $0xf8] sm:$0xff]
    %v441 = vld [vmem:[#allocation13 + $0x100] sm:$0xff]
    %v442 = vld [vmem:[#allocation13 + $0x108] sm:$0xff]
    %v443 = vld [vmem:[#allocation13 + $0x110] sm:$0xff]
    %v444 = vld [vmem:[#allocation13 + $0x118] sm:$0xff]
    %v445 = vld [vmem:[#allocation13 + $0x120] sm:$0xff]
    %v446 = vld [vmem:[#allocation13 + $0x128] sm:$0xff]
    %v447 = vld [vmem:[#allocation13 + $0x130] sm:$0xff]
    %v448 = vld [vmem:[#allocation13 + $0x138] sm:$0xff]
    %v449 = vld [vmem:[#allocation13 + $0x140] sm:$0xff]
    %v450 = vld [vmem:[#allocation13 + $0x148] sm:$0xff]
    %v451 = vld [vmem:[#allocation13 + $0x150] sm:$0xff]
    %v452 = vld [vmem:[#allocation13 + $0x158] sm:$0xff]
    %v453 = vld [vmem:[#allocation13 + $0x160] sm:$0xff]
    %v454 = vld [vmem:[#allocation13 + $0x168] sm:$0xff]
    %v455 = vld [vmem:[#allocation13 + $0x170] sm:$0xff]
    %v456 = vld [vmem:[#allocation13 + $0x178] sm:$0xff]
    %v457 = vld [vmem:[#allocation13 + $0x180] sm:$0xff]
    %v458 = vld [vmem:[#allocation13 + $0x188] sm:$0xff]
    %v459 = vld [vmem:[#allocation13 + $0x190] sm:$0xff]
    %v460 = vld [vmem:[#allocation13 + $0x198] sm:$0xff]
    %v461 = vld [vmem:[#allocation13 + $0x1a0] sm:$0xff]
    %v462 = vld [vmem:[#allocation13 + $0x1a8] sm:$0xff]
    %v463 = vld [vmem:[#allocation13 + $0x1b0] sm:$0xff]
    %v464 = vld [vmem:[#allocation13 + $0x1b8] sm:$0xff]
    %v465 = vld [vmem:[#allocation13 + $0x1c0] sm:$0xff]
    %v466 = vld [vmem:[#allocation13 + $0x1c8] sm:$0xff]
    %v467 = vld [vmem:[#allocation13 + $0x1d0] sm:$0xff]
    %v468 = vld [vmem:[#allocation13 + $0x1d8] sm:$0xff]
    %v469 = vld [vmem:[#allocation13 + $0x1e0] sm:$0xff]
    %v470 = vld [vmem:[#allocation13 + $0x1e8] sm:$0xff]
    %v471 = vld [vmem:[#allocation13 + $0x1f0] sm:$0xff]
    %v472 = vld [vmem:[#allocation13 + $0x1f8] sm:$0xff]
    %v473 = vpack.c.bf16 %v413, %v409
    %v474 = vpack.c.bf16 %v414, %v410
    %v475 = vpack.c.bf16 %v415, %v411
    %v476 = vpack.c.bf16 %v416, %v412
    %v477 = vpack.c.bf16 %v421, %v417
    %v478 = vpack.c.bf16 %v422, %v418
    %v479 = vpack.c.bf16 %v423, %v419
    %v480 = vpack.c.bf16 %v424, %v420
    %v481 = vpack.c.bf16 %v429, %v425
    %v482 = vpack.c.bf16 %v430, %v426
    %v483 = vpack.c.bf16 %v431, %v427
    %v484 = vpack.c.bf16 %v432, %v428
    %v485 = vpack.c.bf16 %v437, %v433
    %v486 = vpack.c.bf16 %v438, %v434
    %v487 = vpack.c.bf16 %v439, %v435
    %v488 = vpack.c.bf16 %v440, %v436
    %v489 = vpack.c.bf16 %v445, %v441
    %v490 = vpack.c.bf16 %v446, %v442
    %v491 = vpack.c.bf16 %v447, %v443
    %v492 = vpack.c.bf16 %v448, %v444
    %v493 = vpack.c.bf16 %v453, %v449
    %v494 = vpack.c.bf16 %v454, %v450
    %v495 = vpack.c.bf16 %v455, %v451
    %v496 = vpack.c.bf16 %v456, %v452
    %v497 = vpack.c.bf16 %v461, %v457
    %v498 = vpack.c.bf16 %v462, %v458
    %v499 = vpack.c.bf16 %v463, %v459
    %v500 = vpack.c.bf16 %v464, %v460
    %v501 = vpack.c.bf16 %v469, %v465
    %v502 = vpack.c.bf16 %v470, %v466
    %v503 = vpack.c.bf16 %v471, %v467
    %v504 = vpack.c.bf16 %v472, %v468
    %v505 = vld [vmem:[%s13] sm:$0xff]
    %v506 = vld [vmem:[%s13 + $0x8] sm:$0xff]
    %v507 = vld [vmem:[%s13 + $0x10] sm:$0xff]
    %v508 = vld [vmem:[%s13 + $0x18] sm:$0xff]
    %v509 = vld [vmem:[%s13 + $0x20] sm:$0xff]
    %v510 = vld [vmem:[%s13 + $0x28] sm:$0xff]
    %v511 = vld [vmem:[%s13 + $0x30] sm:$0xff]
    %v512 = vld [vmem:[%s13 + $0x38] sm:$0xff]
    %v513 = vld [vmem:[%s13 + $0x40] sm:$0xff]
    %v514 = vld [vmem:[%s13 + $0x48] sm:$0xff]
    %v515 = vld [vmem:[%s13 + $0x50] sm:$0xff]
    %v516 = vld [vmem:[%s13 + $0x58] sm:$0xff]
    %v517 = vld [vmem:[%s13 + $0x60] sm:$0xff]
    %v518 = vld [vmem:[%s13 + $0x68] sm:$0xff]
    %v519 = vld [vmem:[%s13 + $0x70] sm:$0xff]
    %v520 = vld [vmem:[%s13 + $0x78] sm:$0xff]
    %v521 = vpack.c.bf16 %v506, %v505
    %v522 = vpack.c.bf16 %v508, %v507
    %v523 = vpack.c.bf16 %v510, %v509
    %v524 = vpack.c.bf16 %v512, %v511
    %v525 = vpack.c.bf16 %v514, %v513
    %v526 = vpack.c.bf16 %v516, %v515
    %v527 = vpack.c.bf16 %v518, %v517
    %v528 = vpack.c.bf16 %v520, %v519
    %v529 = vld [vmem:[%s0] sm:$0x3]
    %v530 = vld [vmem:[%s0 + $0x2] sm:$0x3]
    %v531 = vld [vmem:[%s0 + $0x4] sm:$0x3]
    %v532 = vld [vmem:[%s0 + $0x6] sm:$0x3]
    %v533 = vld [vmem:[%s0 + $0x8] sm:$0x3]
    %v534 = vld [vmem:[%s0 + $0xa] sm:$0x3]
    %v535 = vld [vmem:[%s0 + $0xc] sm:$0x3]
    %v536 = vld [vmem:[%s0 + $0xe] sm:$0x3]
    %v545 = vcombine.low %v529, %v530
    %v546 = vcombine.low %v531, %v532
    %v548 = vunpack.c.l.s4 1983009808
    %v549 = vunpack.c.0.s8 %v548
    %v550 = vlaneseq
    %v551 = vshrl.u32 %v550, 7
    %v552 = vsub.s32 %v549, %v551
    %v553 = vrot.slane %v545, %v552
    %v555 = vunpack.c.l.s4 1983009808
    %v556 = vunpack.c.0.s8 %v555
    %v557 = vlaneseq
    %v558 = vshrl.u32 %v557, 7
    %v559 = vsub.s32 %v556, %v558
    %v560 = vrot.slane %v546, %v559
    %v561 = vcombine.low %v553, %v560
    %v562 = vcombine.low %v533, %v534
    %v563 = vcombine.low %v535, %v536
    %v565 = vunpack.c.l.s4 1983009808
    %v566 = vunpack.c.0.s8 %v565
    %v567 = vlaneseq
    %v568 = vshrl.u32 %v567, 7
    %v569 = vsub.s32 %v566, %v568
    %v570 = vrot.slane %v562, %v569
    %v572 = vunpack.c.l.s4 1983009808
    %v573 = vunpack.c.0.s8 %v572
    %v574 = vlaneseq
    %v575 = vshrl.u32 %v574, 7
    %v576 = vsub.s32 %v573, %v575
    %v577 = vrot.slane %v563, %v576
    %v578 = vcombine.low %v570, %v577
    %v581 = vpack.c.bf16 %v578, %v561
    %v582 = vld [vmem:[%s3] sm:$0xf]
    %v584 = vlaneseq
    %v585 = vshrl.u32 %v584, 7
    %v586 = vsub.s32 0, %v585
    %v587 = vrot.slane %v582, %v586
    %v588 = vlaneseq
    %v589 = vshrl.u32 %v588, 7
    %v590 = vsub.s32 1, %v589
    %v591 = vrot.slane %v582, %v590
    %v592 = vlaneseq
    %v593 = vshrl.u32 %v592, 7
    %v594 = vsub.s32 2, %v593
    %v595 = vrot.slane %v582, %v594
    %v596 = vlaneseq
    %v597 = vshrl.u32 %v596, 7
    %v598 = vsub.s32 3, %v597
    %v599 = vrot.slane %v582, %v598
    %vm604 = vcmask 31744
    %v606 = vsel %vm604, %v581, 0
    %vm608 = vcmask 1041408
    %v610 = vsel %vm608, %v141, 0
    %v613 = vsel %vm608, %v142, 0
    %v616 = vsel %vm608, %v143, 0
    %v619 = vsel %vm608, %v144, 0
    %621 = vmatprep.subr.bf16.mxu0 %v613
    %622 = vmatpush1.bf16.msra.mxu0 %v610
    %623 = vmatprep.subr.bf16.mxu0 0
    %624 = vmatpush1.bf16.msra.mxu0 0
    %625 = vmatprep.subr.bf16.mxu0 0
    %626 = vmatpush1.bf16.msra.mxu0 0
    %627 = vmatprep.subr.bf16.mxu0 0
    %628 = vmatpush1.bf16.msra.mxu0 0
    %629 = vmatprep.subr.bf16.mxu0 0
    %630 = vmatpush1.bf16.msra.mxu0 0
    %631 = vmatprep.subr.bf16.mxu0 0
    %632 = vmatpush1.bf16.msra.mxu0 0
    %633 = vmatprep.subr.bf16.mxu0 0
    %634 = vmatpush1.bf16.msra.mxu0 0
    %635 = vmatprep.subr.bf16.mxu0 0
    %636 = vmatpush1.bf16.msra.mxu0 0
    %637 = vmatprep.subr.bf16.mxu0 0
    %638 = vmatpush1.bf16.msra.mxu0 0
    %639 = vmatprep.subr.bf16.mxu0 0
    %640 = vmatpush1.bf16.msra.mxu0 0
    %641 = vmatprep.subr.bf16.mxu0 0
    %642 = vmatpush1.bf16.msra.mxu0 0
    %643 = vmatprep.subr.bf16.mxu0 0
    %644 = vmatpush1.bf16.msra.mxu0 0
    %645 = vmatprep.subr.bf16.mxu0 0
    %646 = vmatpush1.bf16.msra.mxu0 0
    %647 = vmatprep.subr.bf16.mxu0 0
    %648 = vmatpush1.bf16.msra.mxu0 0
    %649 = vmatprep.subr.bf16.mxu0 0
    %650 = vmatpush1.bf16.msra.mxu0 0
    %651 = vmatprep.subr.bf16.mxu0 0
    %652 = vmatpush1.bf16.msra.mxu0 0
    %653 = vmatprep.mubr.bf16.mxu0 0
    %654 = vmatmul.mubr.bf16.gmra.mrb[0].mxu0 %v606
    %v655 = vpop.f32.mrb[0].mxu0
    %v656 = vadd.f32 %v587, %v655
    %v657 = vpop.f32.mrb[0].mxu0
    %v658 = vadd.f32 %v591, %v657
    %v659 = vpop.f32.mrb[0].mxu0
    %v660 = vadd.f32 %v587, %v659
    %v661 = vpop.f32.mrb[0].mxu0
    %v662 = vadd.f32 %v591, %v661
    %663 = vdwg.mxu0
    %664 = vmatprep.subr.bf16.mxu0 %v619
    %665 = vmatpush1.bf16.msra.mxu0 %v616
    %666 = vmatprep.subr.bf16.mxu0 0
    %667 = vmatpush1.bf16.msra.mxu0 0
    %668 = vmatprep.subr.bf16.mxu0 0
    %669 = vmatpush1.bf16.msra.mxu0 0
    %670 = vmatprep.subr.bf16.mxu0 0
    %671 = vmatpush1.bf16.msra.mxu0 0
    %672 = vmatprep.subr.bf16.mxu0 0
    %673 = vmatpush1.bf16.msra.mxu0 0
    %674 = vmatprep.subr.bf16.mxu0 0
    %675 = vmatpush1.bf16.msra.mxu0 0
    %676 = vmatprep.subr.bf16.mxu0 0
    %677 = vmatpush1.bf16.msra.mxu0 0
    %678 = vmatprep.subr.bf16.mxu0 0
    %679 = vmatpush1.bf16.msra.mxu0 0
    %680 = vmatprep.subr.bf16.mxu0 0
    %681 = vmatpush1.bf16.msra.mxu0 0
    %682 = vmatprep.subr.bf16.mxu0 0
    %683 = vmatpush1.bf16.msra.mxu0 0
    %684 = vmatprep.subr.bf16.mxu0 0
    %685 = vmatpush1.bf16.msra.mxu0 0
    %686 = vmatprep.subr.bf16.mxu0 0
    %687 = vmatpush1.bf16.msra.mxu0 0
    %688 = vmatprep.subr.bf16.mxu0 0
    %689 = vmatpush1.bf16.msra.mxu0 0
    %690 = vmatprep.subr.bf16.mxu0 0
    %691 = vmatpush1.bf16.msra.mxu0 0
    %692 = vmatprep.subr.bf16.mxu0 0
    %693 = vmatpush1.bf16.msra.mxu0 0
    %694 = vmatprep.subr.bf16.mxu0 0
    %695 = vmatpush1.bf16.msra.mxu0 0
    %696 = vmatprep.mubr.bf16.mxu0 0
    %697 = vmatmul.mubr.bf16.gmra.mrb[0].mxu0 %v606
    %v698 = vpop.f32.mrb[0].mxu0
    %v699 = vadd.f32 %v595, %v698
    %v700 = vpop.f32.mrb[0].mxu0
    %v701 = vadd.f32 %v599, %v700
    %v702 = vpop.f32.mrb[0].mxu0
    %v703 = vadd.f32 %v595, %v702
    %v704 = vpop.f32.mrb[0].mxu0
    %v705 = vadd.f32 %v599, %v704
    %706 = vdwg.mxu0
    %v715 = vcombine.low %v656, %v658
    %v716 = vcombine.high %v656, %v658
    %v717 = vcombine.low %v699, %v701
    %v718 = vcombine.high %v699, %v701
    %v720 = vunpack.c.l.s4 1983009808
    %v721 = vunpack.c.0.s8 %v720
    %v722 = vlaneseq
    %v723 = vshrl.u32 %v722, 7
    %v724 = vsub.s32 %v721, %v723
    %v725 = vrot.slane %v715, %v724
    %v727 = vunpack.c.l.s4 1983009808
    %v728 = vunpack.c.0.s8 %v727
    %v729 = vlaneseq
    %v730 = vshrl.u32 %v729, 7
    %v731 = vsub.s32 %v728, %v730
    %v732 = vrot.slane %v716, %v731
    %v734 = vunpack.c.l.s4 1983009808
    %v735 = vunpack.c.0.s8 %v734
    %v736 = vlaneseq
    %v737 = vshrl.u32 %v736, 7
    %v738 = vsub.s32 %v735, %v737
    %v739 = vrot.slane %v717, %v738
    %v741 = vunpack.c.l.s4 1983009808
    %v742 = vunpack.c.0.s8 %v741
    %v743 = vlaneseq
    %v744 = vshrl.u32 %v743, 7
    %v745 = vsub.s32 %v742, %v744
    %v746 = vrot.slane %v718, %v745
    %v747 = vcombine.low %v725, %v739
    %v748 = vcombine.high %v725, %v739
    %v749 = vcombine.low %v732, %v746
    %v750 = vcombine.high %v732, %v746
    %v751 = vcombine.low %v660, %v662
    %v752 = vcombine.high %v660, %v662
    %v753 = vcombine.low %v703, %v705
    %v754 = vcombine.high %v703, %v705
    %v756 = vunpack.c.l.s4 1983009808
    %v757 = vunpack.c.0.s8 %v756
    %v758 = vlaneseq
    %v759 = vshrl.u32 %v758, 7
    %v760 = vsub.s32 %v757, %v759
    %v761 = vrot.slane %v751, %v760
    %v763 = vunpack.c.l.s4 1983009808
    %v764 = vunpack.c.0.s8 %v763
    %v765 = vlaneseq
    %v766 = vshrl.u32 %v765, 7
    %v767 = vsub.s32 %v764, %v766
    %v768 = vrot.slane %v752, %v767
    %v770 = vunpack.c.l.s4 1983009808
    %v771 = vunpack.c.0.s8 %v770
    %v772 = vlaneseq
    %v773 = vshrl.u32 %v772, 7
    %v774 = vsub.s32 %v771, %v773
    %v775 = vrot.slane %v753, %v774
    %v777 = vunpack.c.l.s4 1983009808
    %v778 = vunpack.c.0.s8 %v777
    %v779 = vlaneseq
    %v780 = vshrl.u32 %v779, 7
    %v781 = vsub.s32 %v778, %v780
    %v782 = vrot.slane %v754, %v781
    %v783 = vcombine.low %v761, %v775
    %v784 = vcombine.high %v761, %v775
    %v785 = vcombine.low %v768, %v782
    %v786 = vcombine.high %v768, %v782
    %795 = vmatprep.subr.bf16.mxu0 %v210
    %796 = vmatpush1.bf16.msra.mxu0 %v209
    %797 = vmatprep.subr.bf16.mxu0 %v214
    %798 = vmatpush1.bf16.msra.mxu0 %v213
    %799 = vmatprep.subr.bf16.mxu0 %v218
    %800 = vmatpush1.bf16.msra.mxu0 %v217
    %801 = vmatprep.subr.bf16.mxu0 %v222
    %802 = vmatpush1.bf16.msra.mxu0 %v221
    %803 = vmatprep.subr.bf16.mxu0 %v226
    %804 = vmatpush1.bf16.msra.mxu0 %v225
    %805 = vmatprep.subr.bf16.mxu0 %v230
    %806 = vmatpush1.bf16.msra.mxu0 %v229
    %807 = vmatprep.subr.bf16.mxu0 %v234
    %808 = vmatpush1.bf16.msra.mxu0 %v233
    %809 = vmatprep.subr.bf16.mxu0 %v238
    %810 = vmatpush1.bf16.msra.mxu0 %v237
    %811 = vmatprep.subr.bf16.mxu0 0
    %812 = vmatpush1.bf16.msra.mxu0 0
    %813 = vmatprep.subr.bf16.mxu0 0
    %814 = vmatpush1.bf16.msra.mxu0 0
    %815 = vmatprep.subr.bf16.mxu0 0
    %816 = vmatpush1.bf16.msra.mxu0 0
    %817 = vmatprep.subr.bf16.mxu0 0
    %818 = vmatpush1.bf16.msra.mxu0 0
    %819 = vmatprep.subr.bf16.mxu0 0
    %820 = vmatpush1.bf16.msra.mxu0 0
    %821 = vmatprep.subr.bf16.mxu0 0
    %822 = vmatpush1.bf16.msra.mxu0 0
    %823 = vmatprep.subr.bf16.mxu0 0
    %824 = vmatpush1.bf16.msra.mxu0 0
    %825 = vmatprep.subr.bf16.mxu0 0
    %826 = vmatpush1.bf16.msra.mxu0 0
    %827 = vmatprep.mubr.bf16.mxu0 0
    %828 = vmatmul.mubr.bf16.gmra.mrb[0].mxu0 0
    %v829 = vpop.f32.mrb[0].mxu0
    %v830 = vadd.f32 0.0, %v829
    %v831 = vpop.f32.mrb[0].mxu0
    %v832 = vadd.f32 0.0, %v831
    %v833 = vpop.f32.mrb[0].mxu0
    %v834 = vpop.f32.mrb[0].mxu0
    %835 = vdwg.mxu0
    %836 = vmatprep.subr.bf16.mxu0 %v212
    %837 = vmatpush1.bf16.msra.mxu0 %v211
    %838 = vmatprep.subr.bf16.mxu0 %v216
    %839 = vmatpush1.bf16.msra.mxu0 %v215
    %840 = vmatprep.subr.bf16.mxu0 %v220
    %841 = vmatpush1.bf16.msra.mxu0 %v219
    %842 = vmatprep.subr.bf16.mxu0 %v224
    %843 = vmatpush1.bf16.msra.mxu0 %v223
    %844 = vmatprep.subr.bf16.mxu0 %v228
    %845 = vmatpush1.bf16.msra.mxu0 %v227
    %846 = vmatprep.subr.bf16.mxu0 %v232
    %847 = vmatpush1.bf16.msra.mxu0 %v231
    %848 = vmatprep.subr.bf16.mxu0 %v236
    %849 = vmatpush1.bf16.msra.mxu0 %v235
    %850 = vmatprep.subr.bf16.mxu0 %v240
    %851 = vmatpush1.bf16.msra.mxu0 %v239
    %852 = vmatprep.subr.bf16.mxu0 0
    %853 = vmatpush1.bf16.msra.mxu0 0
    %854 = vmatprep.subr.bf16.mxu0 0
    %855 = vmatpush1.bf16.msra.mxu0 0
    %856 = vmatprep.subr.bf16.mxu0 0
    %857 = vmatpush1.bf16.msra.mxu0 0
    %858 = vmatprep.subr.bf16.mxu0 0
    %859 = vmatpush1.bf16.msra.mxu0 0
    %860 = vmatprep.subr.bf16.mxu0 0
    %861 = vmatpush1.bf16.msra.mxu0 0
    %862 = vmatprep.subr.bf16.mxu0 0
    %863 = vmatpush1.bf16.msra.mxu0 0
    %864 = vmatprep.subr.bf16.mxu0 0
    %865 = vmatpush1.bf16.msra.mxu0 0
    %866 = vmatprep.subr.bf16.mxu0 0
    %867 = vmatpush1.bf16.msra.mxu0 0
    %868 = vmatprep.mubr.bf16.mxu0 0
    %869 = vmatmul.mubr.bf16.gmra.mrb[0].mxu0 0
    %v870 = vpop.f32.mrb[0].mxu0
    %v871 = vadd.f32 0.0, %v870
    %v872 = vpop.f32.mrb[0].mxu0
    %v873 = vadd.f32 0.0, %v872
    %v874 = vpop.f32.mrb[0].mxu0
    %v875 = vpop.f32.mrb[0].mxu0
    %876 = vdwg.mxu0
    %v881 = vcombine.low %v830, %v832
    %v882 = vcombine.low %v871, %v873
    %v884 = vunpack.c.l.s4 1983009808
    %v885 = vunpack.c.0.s8 %v884
    %v886 = vlaneseq
    %v887 = vshrl.u32 %v886, 7
    %v888 = vsub.s32 %v885, %v887
    %v889 = vrot.slane %v881, %v888
    %v891 = vunpack.c.l.s4 1983009808
    %v892 = vunpack.c.0.s8 %v891
    %v893 = vlaneseq
    %v894 = vshrl.u32 %v893, 7
    %v895 = vsub.s32 %v892, %v894
    %v896 = vrot.slane %v882, %v895
    %v897 = vcombine.low %v889, %v896
    %v899 = vadd.f32 %v747, %v897
    %v900 = vxor.u32 %v899, 2147483648
    %v901 = vmul.f32 %v900, 1.442695
    %v902 = vpow.pop %v901
    %v903 = vadd.f32 %v902, 1.0
    %v904 = vrcp.pop %v903
    %v905 = vmul.f32 1.0, %v904
    %v907 = vrot.slane %v899, 6
    %v909 = vtanh.pop %v907
    %v911 = vrot.slane %v905, 2
    %v913 = vmul.f32 %v911, 0.0
    %v914 = vmul.f32 %v905, %v909
    %v915 = vadd.f32 %v913, %v914
    %v916 = vtanh.pop %v915
    %v917 = vrot.slane %v905, 4
    %v919 = vmul.f32 %v917, %v916
    %v920 = vpack.c.bf16 %v919, %v919
    %921 = vst [vmem:[#allocation2] sm:$0x1] %v920
    %922 = vmatprep.subr.bf16.mxu0 %v210
    %923 = vmatpush1.bf16.msra.mxu0 %v209
    %924 = vmatprep.subr.bf16.mxu0 %v214
    %925 = vmatpush1.bf16.msra.mxu0 %v213
    %926 = vmatprep.subr.bf16.mxu0 %v218
    %927 = vmatpush1.bf16.msra.mxu0 %v217
    %928 = vmatprep.subr.bf16.mxu0 %v222
    %929 = vmatpush1.bf16.msra.mxu0 %v221
    %930 = vmatprep.subr.bf16.mxu0 %v226
    %931 = vmatpush1.bf16.msra.mxu0 %v225
    %932 = vmatprep.subr.bf16.mxu0 %v230
    %933 = vmatpush1.bf16.msra.mxu0 %v229
    %934 = vmatprep.subr.bf16.mxu0 %v234
    %935 = vmatpush1.bf16.msra.mxu0 %v233
    %936 = vmatprep.subr.bf16.mxu0 %v238
    %937 = vmatpush1.bf16.msra.mxu0 %v237
    %938 = vmatprep.subr.bf16.mxu0 0
    %939 = vmatpush1.bf16.msra.mxu0 0
    %940 = vmatprep.subr.bf16.mxu0 0
    %941 = vmatpush1.bf16.msra.mxu0 0
    %942 = vmatprep.subr.bf16.mxu0 0
    %943 = vmatpush1.bf16.msra.mxu0 0
    %944 = vmatprep.subr.bf16.mxu0 0
    %945 = vmatpush1.bf16.msra.mxu0 0
    %946 = vmatprep.subr.bf16.mxu0 0
    %947 = vmatpush1.bf16.msra.mxu0 0
    %948 = vmatprep.subr.bf16.mxu0 0
    %949 = vmatpush1.bf16.msra.mxu0 0
    %950 = vmatprep.subr.bf16.mxu0 0
    %951 = vmatpush1.bf16.msra.mxu0 0
    %952 = vmatprep.subr.bf16.mxu0 0
    %953 = vmatpush1.bf16.msra.mxu0 0
    %954 = vmatprep.mubr.bf16.mxu0 0
    %955 = vmatmul.mubr.bf16.gmra.mrb[0].mxu0 %v920
    %v956 = vpop.f32.mrb[0].mxu0
    %v957 = vadd.f32 0.0, %v956
    %v958 = vpop.f32.mrb[0].mxu0
    %v959 = vadd.f32 0.0, %v958
    %v960 = vpop.f32.mrb[0].mxu0
    %v961 = vpop.f32.mrb[0].mxu0
    %962 = vdwg.mxu0
    %963 = vmatprep.subr.bf16.mxu0 %v212
    %964 = vmatpush1.bf16.msra.mxu0 %v211
    %965 = vmatprep.subr.bf16.mxu0 %v216
    %966 = vmatpush1.bf16.msra.mxu0 %v215
    %967 = vmatprep.subr.bf16.mxu0 %v220
    %968 = vmatpush1.bf16.msra.mxu0 %v219
    %969 = vmatprep.subr.bf16.mxu0 %v224
    %970 = vmatpush1.bf16.msra.mxu0 %v223
    %971 = vmatprep.subr.bf16.mxu0 %v228
    %972 = vmatpush1.bf16.msra.mxu0 %v227
    %973 = vmatprep.subr.bf16.mxu0 %v232
    %974 = vmatpush1.bf16.msra.mxu0 %v231
    %975 = vmatprep.subr.bf16.mxu0 %v236
    %976 = vmatpush1.bf16.msra.mxu0 %v235
    %977 = vmatprep.subr.bf16.mxu0 %v240
    %978 = vmatpush1.bf16.msra.mxu0 %v239
    %979 = vmatprep.subr.bf16.mxu0 0
    %980 = vmatpush1.bf16.msra.mxu0 0
    %981 = vmatprep.subr.bf16.mxu0 0
    %982 = vmatpush1.bf16.msra.mxu0 0
    %983 = vmatprep.subr.bf16.mxu0 0
    %984 = vmatpush1.bf16.msra.mxu0 0
    %985 = vmatprep.subr.bf16.mxu0 0
    %986 = vmatpush1.bf16.msra.mxu0 0
    %987 = vmatprep.subr.bf16.mxu0 0
    %988 = vmatpush1.bf16.msra.mxu0 0
    %989 = vmatprep.subr.bf16.mxu0 0
    %990 = vmatpush1.bf16.msra.mxu0 0
    %991 = vmatprep.subr.bf16.mxu0 0
    %992 = vmatpush1.bf16.msra.mxu0 0
    %993 = vmatprep.subr.bf16.mxu0 0
    %994 = vmatpush1.bf16.msra.mxu0 0
    %995 = vmatprep.mubr.bf16.mxu0 0
    %996 = vmatmul.mubr.bf16.gmra.mrb[0].mxu0 %v920
    %v997 = vpop.f32.mrb[0].mxu0
    %v998 = vadd.f32 0.0, %v997
    %v999 = vpop.f32.mrb[0].mxu0
    %v1000 = vadd.f32 0.0, %v999
    %v1001 = vpop.f32.mrb[0].mxu0
    %v1002 = vpop.f32.mrb[0].mxu0
    %1003 = vdwg.mxu0
    %v1008 = vcombine.low %v957, %v959
    %v1009 = vcombine.low %v998, %v1000
    %v1011 = vunpack.c.l.s4 1983009808
    %v1012 = vunpack.c.0.s8 %v1011
    %v1013 = vlaneseq
    %v1014 = vshrl.u32 %v1013, 7
    %v1015 = vsub.s32 %v1012, %v1014
    %v1016 = vrot.slane %v1008, %v1015
    %v1018 = vunpack.c.l.s4 1983009808
    %v1019 = vunpack.c.0.s8 %v1018
    %v1020 = vlaneseq
    %v1021 = vshrl.u32 %v1020, 7
    %v1022 = vsub.s32 %v1019, %v1021
    %v1023 = vrot.slane %v1009, %v1022
    %v1024 = vcombine.low %v1016, %v1023
    %v1026 = vadd.f32 %v748, %v1024
    %v1027 = vxor.u32 %v1026, 2147483648
    %v1028 = vmul.f32 %v1027, 1.442695
    %v1029 = vpow.pop %v1028
    %v1030 = vadd.f32 %v1029, 1.0
    %v1031 = vrcp.pop %v1030
    %v1032 = vmul.f32 1.0, %v1031
    %v1034 = vrot.slane %v1026, 6
    %v1036 = vtanh.pop %v1034
    %v1038 = vrot.slane %v1032, 2
    %v1040 = vmul.f32 %v1038, %v915
    %v1041 = vmul.f32 %v1032, %v1036
    %v1042 = vadd.f32 %v1040, %v1041
    %v1043 = vtanh.pop %v1042
    %v1044 = vrot.slane %v1032, 4
    %v1046 = vmul.f32 %v1044, %v1043
    %v1047 = vpack.c.bf16 %v1046, %v1046
    %s1048 = scalar_lea.vmem [#allocation2], 1
    %1049 = vst [vmem:[%s1048] sm:$0x1] %v1047
    %1050 = vmatprep.subr.bf16.mxu0 %v210
    %1051 = vmatpush1.bf16.msra.mxu0 %v209
    %1052 = vmatprep.subr.bf16.mxu0 %v214
    %1053 = vmatpush1.bf16.msra.mxu0 %v213
    %1054 = vmatprep.subr.bf16.mxu0 %v218
    %1055 = vmatpush1.bf16.msra.mxu0 %v217
    %1056 = vmatprep.subr.bf16.mxu0 %v222
    %1057 = vmatpush1.bf16.msra.mxu0 %v221
    %1058 = vmatprep.subr.bf16.mxu0 %v226
    %1059 = vmatpush1.bf16.msra.mxu0 %v225
    %1060 = vmatprep.subr.bf16.mxu0 %v230
    %1061 = vmatpush1.bf16.msra.mxu0 %v229
    %1062 = vmatprep.subr.bf16.mxu0 %v234
    %1063 = vmatpush1.bf16.msra.mxu0 %v233
    %1064 = vmatprep.subr.bf16.mxu0 %v238
    %1065 = vmatpush1.bf16.msra.mxu0 %v237
    %1066 = vmatprep.subr.bf16.mxu0 0
    %1067 = vmatpush1.bf16.msra.mxu0 0
    %1068 = vmatprep.subr.bf16.mxu0 0
    %1069 = vmatpush1.bf16.msra.mxu0 0
    %1070 = vmatprep.subr.bf16.mxu0 0
    %1071 = vmatpush1.bf16.msra.mxu0 0
    %1072 = vmatprep.subr.bf16.mxu0 0
    %1073 = vmatpush1.bf16.msra.mxu0 0
    %1074 = vmatprep.subr.bf16.mxu0 0
    %1075 = vmatpush1.bf16.msra.mxu0 0
    %1076 = vmatprep.subr.bf16.mxu0 0
    %1077 = vmatpush1.bf16.msra.mxu0 0
    %1078 = vmatprep.subr.bf16.mxu0 0
    %1079 = vmatpush1.bf16.msra.mxu0 0
    %1080 = vmatprep.subr.bf16.mxu0 0
    %1081 = vmatpush1.bf16.msra.mxu0 0
    %1082 = vmatprep.mubr.bf16.mxu0 0
    %1083 = vmatmul.mubr.bf16.gmra.mrb[0].mxu0 %v1047
    %v1084 = vpop.f32.mrb[0].mxu0
    %v1085 = vadd.f32 0.0, %v1084
    %v1086 = vpop.f32.mrb[0].mxu0
    %v1087 = vadd.f32 0.0, %v1086
    %v1088 = vpop.f32.mrb[0].mxu0
    %v1089 = vpop.f32.mrb[0].mxu0
    %1090 = vdwg.mxu0
    %1091 = vmatprep.subr.bf16.mxu0 %v212
    %1092 = vmatpush1.bf16.msra.mxu0 %v211
    %1093 = vmatprep.subr.bf16.mxu0 %v216
    %1094 = vmatpush1.bf16.msra.mxu0 %v215
    %1095 = vmatprep.subr.bf16.mxu0 %v220
    %1096 = vmatpush1.bf16.msra.mxu0 %v219
    %1097 = vmatprep.subr.bf16.mxu0 %v224
    %1098 = vmatpush1.bf16.msra.mxu0 %v223
    %1099 = vmatprep.subr.bf16.mxu0 %v228
    %1100 = vmatpush1.bf16.msra.mxu0 %v227
    %1101 = vmatprep.subr.bf16.mxu0 %v232
    %1102 = vmatpush1.bf16.msra.mxu0 %v231
    %1103 = vmatprep.subr.bf16.mxu0 %v236
    %1104 = vmatpush1.bf16.msra.mxu0 %v235
    %1105 = vmatprep.subr.bf16.mxu0 %v240
    %1106 = vmatpush1.bf16.msra.mxu0 %v239
    %1107 = vmatprep.subr.bf16.mxu0 0
    %1108 = vmatpush1.bf16.msra.mxu0 0
    %1109 = vmatprep.subr.bf16.mxu0 0
    %1110 = vmatpush1.bf16.msra.mxu0 0
    %1111 = vmatprep.subr.bf16.mxu0 0
    %1112 = vmatpush1.bf16.msra.mxu0 0
    %1113 = vmatprep.subr.bf16.mxu0 0
    %1114 = vmatpush1.bf16.msra.mxu0 0
    %1115 = vmatprep.subr.bf16.mxu0 0
    %1116 = vmatpush1.bf16.msra.mxu0 0
    %1117 = vmatprep.subr.bf16.mxu0 0
    %1118 = vmatpush1.bf16.msra.mxu0 0
    %1119 = vmatprep.subr.bf16.mxu0 0
    %1120 = vmatpush1.bf16.msra.mxu0 0
    %1121 = vmatprep.subr.bf16.mxu0 0
    %1122 = vmatpush1.bf16.msra.mxu0 0
    %1123 = vmatprep.mubr.bf16.mxu0 0
    %1124 = vmatmul.mubr.bf16.gmra.mrb[0].mxu0 %v1047
    %v1125 = vpop.f32.mrb[0].mxu0
    %v1126 = vadd.f32 0.0, %v1125
    %v1127 = vpop.f32.mrb[0].mxu0
    %v1128 = vadd.f32 0.0, %v1127
    %v1129 = vpop.f32.mrb[0].mxu0
    %v1130 = vpop.f32.mrb[0].mxu0
    %1131 = vdwg.mxu0
    %v1136 = vcombine.low %v1085, %v1087
    %v1137 = vcombine.low %v1126, %v1128
    %v1139 = vunpack.c.l.s4 1983009808
    %v1140 = vunpack.c.0.s8 %v1139
    %v1141 = vlaneseq
    %v1142 = vshrl.u32 %v1141, 7
    %v1143 = vsub.s32 %v1140, %v1142
    %v1144 = vrot.slane %v1136, %v1143
    %v1146 = vunpack.c.l.s4 1983009808
    %v1147 = vunpack.c.0.s8 %v1146
    %v1148 = vlaneseq
    %v1149 = vshrl.u32 %v1148, 7
    %v1150 = vsub.s32 %v1147, %v1149
    %v1151 = vrot.slane %v1137, %v1150
    %v1152 = vcombine.low %v1144, %v1151
    %v1154 = vadd.f32 %v749, %v1152
    %v1155 = vxor.u32 %v1154, 2147483648
    %v1156 = vmul.f32 %v1155, 1.442695
    %v1157 = vpow.pop %v1156
    %v1158 = vadd.f32 %v1157, 1.0
    %v1159 = vrcp.pop %v1158
    %v1160 = vmul.f32 1.0, %v1159
    %v1162 = vrot.slane %v1154, 6
    %v1164 = vtanh.pop %v1162
    %v1166 = vrot.slane %v1160, 2
    %v1168 = vmul.f32 %v1166, %v1042
    %v1169 = vmul.f32 %v1160, %v1164
    %v1170 = vadd.f32 %v1168, %v1169
    %v1171 = vtanh.pop %v1170
    %v1172 = vrot.slane %v1160, 4
    %v1174 = vmul.f32 %v1172, %v1171
    %v1175 = vpack.c.bf16 %v1174, %v1174
    %s1176 = scalar_lea.vmem [#allocation2], 2
    %1177 = vst [vmem:[%s1176] sm:$0x1] %v1175
    %1178 = vmatprep.subr.bf16.mxu0 %v210
    %1179 = vmatpush1.bf16.msra.mxu0 %v209
    %1180 = vmatprep.subr.bf16.mxu0 %v214
    %1181 = vmatpush1.bf16.msra.mxu0 %v213
    %1182 = vmatprep.subr.bf16.mxu0 %v218
    %1183 = vmatpush1.bf16.msra.mxu0 %v217
    %1184 = vmatprep.subr.bf16.mxu0 %v222
    %1185 = vmatpush1.bf16.msra.mxu0 %v221
    %1186 = vmatprep.subr.bf16.mxu0 %v226
    %1187 = vmatpush1.bf16.msra.mxu0 %v225
    %1188 = vmatprep.subr.bf16.mxu0 %v230
    %1189 = vmatpush1.bf16.msra.mxu0 %v229
    %1190 = vmatprep.subr.bf16.mxu0 %v234
    %1191 = vmatpush1.bf16.msra.mxu0 %v233
    %1192 = vmatprep.subr.bf16.mxu0 %v238
    %1193 = vmatpush1.bf16.msra.mxu0 %v237
    %1194 = vmatprep.subr.bf16.mxu0 0
    %1195 = vmatpush1.bf16.msra.mxu0 0
    %1196 = vmatprep.subr.bf16.mxu0 0
    %1197 = vmatpush1.bf16.msra.mxu0 0
    %1198 = vmatprep.subr.bf16.mxu0 0
    %1199 = vmatpush1.bf16.msra.mxu0 0
    %1200 = vmatprep.subr.bf16.mxu0 0
    %1201 = vmatpush1.bf16.msra.mxu0 0
    %1202 = vmatprep.subr.bf16.mxu0 0
    %1203 = vmatpush1.bf16.msra.mxu0 0
    %1204 = vmatprep.subr.bf16.mxu0 0
    %1205 = vmatpush1.bf16.msra.mxu0 0
    %1206 = vmatprep.subr.bf16.mxu0 0
    %1207 = vmatpush1.bf16.msra.mxu0 0
    %1208 = vmatprep.subr.bf16.mxu0 0
    %1209 = vmatpush1.bf16.msra.mxu0 0
    %1210 = vmatprep.mubr.bf16.mxu0 0
    %1211 = vmatmul.mubr.bf16.gmra.mrb[0].mxu0 %v1175
    %v1212 = vpop.f32.mrb[0].mxu0
    %v1213 = vadd.f32 0.0, %v1212
    %v1214 = vpop.f32.mrb[0].mxu0
    %v1215 = vadd.f32 0.0, %v1214
    %v1216 = vpop.f32.mrb[0].mxu0
    %v1217 = vpop.f32.mrb[0].mxu0
    %1218 = vdwg.mxu0
    %1219 = vmatprep.subr.bf16.mxu0 %v212
    %1220 = vmatpush1.bf16.msra.mxu0 %v211
    %1221 = vmatprep.subr.bf16.mxu0 %v216
    %1222 = vmatpush1.bf16.msra.mxu0 %v215
    %1223 = vmatprep.subr.bf16.mxu0 %v220
    %1224 = vmatpush1.bf16.msra.mxu0 %v219
    %1225 = vmatprep.subr.bf16.mxu0 %v224
    %1226 = vmatpush1.bf16.msra.mxu0 %v223
    %1227 = vmatprep.subr.bf16.mxu0 %v228
    %1228 = vmatpush1.bf16.msra.mxu0 %v227
    %1229 = vmatprep.subr.bf16.mxu0 %v232
    %1230 = vmatpush1.bf16.msra.mxu0 %v231
    %1231 = vmatprep.subr.bf16.mxu0 %v236
    %1232 = vmatpush1.bf16.msra.mxu0 %v235
    %1233 = vmatprep.subr.bf16.mxu0 %v240
    %1234 = vmatpush1.bf16.msra.mxu0 %v239
    %1235 = vmatprep.subr.bf16.mxu0 0
    %1236 = vmatpush1.bf16.msra.mxu0 0
    %1237 = vmatprep.subr.bf16.mxu0 0
    %1238 = vmatpush1.bf16.msra.mxu0 0
    %1239 = vmatprep.subr.bf16.mxu0 0
    %1240 = vmatpush1.bf16.msra.mxu0 0
    %1241 = vmatprep.subr.bf16.mxu0 0
    %1242 = vmatpush1.bf16.msra.mxu0 0
    %1243 = vmatprep.subr.bf16.mxu0 0
    %1244 = vmatpush1.bf16.msra.mxu0 0
    %1245 = vmatprep.subr.bf16.mxu0 0
    %1246 = vmatpush1.bf16.msra.mxu0 0
    %1247 = vmatprep.subr.bf16.mxu0 0
    %1248 = vmatpush1.bf16.msra.mxu0 0
    %1249 = vmatprep.subr.bf16.mxu0 0
    %1250 = vmatpush1.bf16.msra.mxu0 0
    %1251 = vmatprep.mubr.bf16.mxu0 0
    %1252 = vmatmul.mubr.bf16.gmra.mrb[0].mxu0 %v1175
    %v1253 = vpop.f32.mrb[0].mxu0
    %v1254 = vadd.f32 0.0, %v1253
    %v1255 = vpop.f32.mrb[0].mxu0
    %v1256 = vadd.f32 0.0, %v1255
    %v1257 = vpop.f32.mrb[0].mxu0
    %v1258 = vpop.f32.mrb[0].mxu0
    %1259 = vdwg.mxu0
    %v1264 = vcombine.low %v1213, %v1215
    %v1265 = vcombine.low %v1254, %v1256
    %v1267 = vunpack.c.l.s4 1983009808
    %v1268 = vunpack.c.0.s8 %v1267
    %v1269 = vlaneseq
    %v1270 = vshrl.u32 %v1269, 7
    %v1271 = vsub.s32 %v1268, %v1270
    %v1272 = vrot.slane %v1264, %v1271
    %v1274 = vunpack.c.l.s4 1983009808
    %v1275 = vunpack.c.0.s8 %v1274
    %v1276 = vlaneseq
    %v1277 = vshrl.u32 %v1276, 7
    %v1278 = vsub.s32 %v1275, %v1277
    %v1279 = vrot.slane %v1265, %v1278
    %v1280 = vcombine.low %v1272, %v1279
    %v1282 = vadd.f32 %v750, %v1280
    %v1283 = vxor.u32 %v1282, 2147483648
    %v1284 = vmul.f32 %v1283, 1.442695
    %v1285 = vpow.pop %v1284
    %v1286 = vadd.f32 %v1285, 1.0
    %v1287 = vrcp.pop %v1286
    %v1288 = vmul.f32 1.0, %v1287
    %v1290 = vrot.slane %v1282, 6
    %v1292 = vtanh.pop %v1290
    %v1294 = vrot.slane %v1288, 2
    %v1296 = vmul.f32 %v1294, %v1170
    %v1297 = vmul.f32 %v1288, %v1292
    %v1298 = vadd.f32 %v1296, %v1297
    %v1299 = vtanh.pop %v1298
    %v1300 = vrot.slane %v1288, 4
    %v1302 = vmul.f32 %v1300, %v1299
    %v1303 = vpack.c.bf16 %v1302, %v1302
    %s1304 = scalar_lea.vmem [#allocation2], 3
    %1305 = vst [vmem:[%s1304] sm:$0x1] %v1303
    %1306 = vmatprep.subr.bf16.mxu0 %v210
    %1307 = vmatpush1.bf16.msra.mxu0 %v209
    %1308 = vmatprep.subr.bf16.mxu0 %v214
    %1309 = vmatpush1.bf16.msra.mxu0 %v213
    %1310 = vmatprep.subr.bf16.mxu0 %v218
    %1311 = vmatpush1.bf16.msra.mxu0 %v217
    %1312 = vmatprep.subr.bf16.mxu0 %v222
    %1313 = vmatpush1.bf16.msra.mxu0 %v221
    %1314 = vmatprep.subr.bf16.mxu0 %v226
    %1315 = vmatpush1.bf16.msra.mxu0 %v225
    %1316 = vmatprep.subr.bf16.mxu0 %v230
    %1317 = vmatpush1.bf16.msra.mxu0 %v229
    %1318 = vmatprep.subr.bf16.mxu0 %v234
    %1319 = vmatpush1.bf16.msra.mxu0 %v233
    %1320 = vmatprep.subr.bf16.mxu0 %v238
    %1321 = vmatpush1.bf16.msra.mxu0 %v237
    %1322 = vmatprep.subr.bf16.mxu0 0
    %1323 = vmatpush1.bf16.msra.mxu0 0
    %1324 = vmatprep.subr.bf16.mxu0 0
    %1325 = vmatpush1.bf16.msra.mxu0 0
    %1326 = vmatprep.subr.bf16.mxu0 0
    %1327 = vmatpush1.bf16.msra.mxu0 0
    %1328 = vmatprep.subr.bf16.mxu0 0
    %1329 = vmatpush1.bf16.msra.mxu0 0
    %1330 = vmatprep.subr.bf16.mxu0 0
    %1331 = vmatpush1.bf16.msra.mxu0 0
    %1332 = vmatprep.subr.bf16.mxu0 0
    %1333 = vmatpush1.bf16.msra.mxu0 0
    %1334 = vmatprep.subr.bf16.mxu0 0
    %1335 = vmatpush1.bf16.msra.mxu0 0
    %1336 = vmatprep.subr.bf16.mxu0 0
    %1337 = vmatpush1.bf16.msra.mxu0 0
    %1338 = vmatprep.mubr.bf16.mxu0 0
    %1339 = vmatmul.mubr.bf16.gmra.mrb[0].mxu0 %v1303
    %v1340 = vpop.f32.mrb[0].mxu0
    %v1341 = vadd.f32 0.0, %v1340
    %v1342 = vpop.f32.mrb[0].mxu0
    %v1343 = vadd.f32 0.0, %v1342
    %v1344 = vpop.f32.mrb[0].mxu0
    %v1345 = vpop.f32.mrb[0].mxu0
    %1346 = vdwg.mxu0
    %1347 = vmatprep.subr.bf16.mxu0 %v212
    %1348 = vmatpush1.bf16.msra.mxu0 %v211
    %1349 = vmatprep.subr.bf16.mxu0 %v216
    %1350 = vmatpush1.bf16.msra.mxu0 %v215
    %1351 = vmatprep.subr.bf16.mxu0 %v220
    %1352 = vmatpush1.bf16.msra.mxu0 %v219
    %1353 = vmatprep.subr.bf16.mxu0 %v224
    %1354 = vmatpush1.bf16.msra.mxu0 %v223
    %1355 = vmatprep.subr.bf16.mxu0 %v228
    %1356 = vmatpush1.bf16.msra.mxu0 %v227
    %1357 = vmatprep.subr.bf16.mxu0 %v232
    %1358 = vmatpush1.bf16.msra.mxu0 %v231
    %1359 = vmatprep.subr.bf16.mxu0 %v236
    %1360 = vmatpush1.bf16.msra.mxu0 %v235
    %1361 = vmatprep.subr.bf16.mxu0 %v240
    %1362 = vmatpush1.bf16.msra.mxu0 %v239
    %1363 = vmatprep.subr.bf16.mxu0 0
    %1364 = vmatpush1.bf16.msra.mxu0 0
    %1365 = vmatprep.subr.bf16.mxu0 0
    %1366 = vmatpush1.bf16.msra.mxu0 0
    %1367 = vmatprep.subr.bf16.mxu0 0
    %1368 = vmatpush1.bf16.msra.mxu0 0
    %1369 = vmatprep.subr.bf16.mxu0 0
    %1370 = vmatpush1.bf16.msra.mxu0 0
    %1371 = vmatprep.subr.bf16.mxu0 0
    %1372 = vmatpush1.bf16.msra.mxu0 0
    %1373 = vmatprep.subr.bf16.mxu0 0
    %1374 = vmatpush1.bf16.msra.mxu0 0
    %1375 = vmatprep.subr.bf16.mxu0 0
    %1376 = vmatpush1.bf16.msra.mxu0 0
    %1377 = vmatprep.subr.bf16.mxu0 0
    %1378 = vmatpush1.bf16.msra.mxu0 0
    %1379 = vmatprep.mubr.bf16.mxu0 0
    %1380 = vmatmul.mubr.bf16.gmra.mrb[0].mxu0 %v1303
    %v1381 = vpop.f32.mrb[0].mxu0
    %v1382 = vadd.f32 0.0, %v1381
    %v1383 = vpop.f32.mrb[0].mxu0
    %v1384 = vadd.f32 0.0, %v1383
    %v1385 = vpop.f32.mrb[0].mxu0
    %v1386 = vpop.f32.mrb[0].mxu0
    %1387 = vdwg.mxu0
    %v1392 = vcombine.low %v1341, %v1343
    %v1393 = vcombine.low %v1382, %v1384
    %v1395 = vunpack.c.l.s4 1983009808
    %v1396 = vunpack.c.0.s8 %v1395
    %v1397 = vlaneseq
    %v1398 = vshrl.u32 %v1397, 7
    %v1399 = vsub.s32 %v1396, %v1398
    %v1400 = vrot.slane %v1392, %v1399
    %v1402 = vunpack.c.l.s4 1983009808
    %v1403 = vunpack.c.0.s8 %v1402
    %v1404 = vlaneseq
    %v1405 = vshrl.u32 %v1404, 7
    %v1406 = vsub.s32 %v1403, %v1405
    %v1407 = vrot.slane %v1393, %v1406
    %v1408 = vcombine.low %v1400, %v1407
    %v1410 = vadd.f32 %v783, %v1408
    %v1411 = vxor.u32 %v1410, 2147483648
    %v1412 = vmul.f32 %v1411, 1.442695
    %v1413 = vpow.pop %v1412
    %v1414 = vadd.f32 %v1413, 1.0
    %v1415 = vrcp.pop %v1414
    %v1416 = vmul.f32 1.0, %v1415
    %v1418 = vrot.slane %v1410, 6
    %v1420 = vtanh.pop %v1418
    %v1422 = vrot.slane %v1416, 2
    %v1424 = vmul.f32 %v1422, %v1298
    %v1425 = vmul.f32 %v1416, %v1420
    %v1426 = vadd.f32 %v1424, %v1425
    %v1427 = vtanh.pop %v1426
    %v1428 = vrot.slane %v1416, 4
    %v1430 = vmul.f32 %v1428, %v1427
    %v1431 = vpack.c.bf16 %v1430, %v1430
    %s1432 = scalar_lea.vmem [#allocation2], 4
    %1433 = vst [vmem:[%s1432] sm:$0x1] %v1431
    %1434 = vmatprep.subr.bf16.mxu0 %v210
    %1435 = vmatpush1.bf16.msra.mxu0 %v209
    %1436 = vmatprep.subr.bf16.mxu0 %v214
    %1437 = vmatpush1.bf16.msra.mxu0 %v213
    %1438 = vmatprep.subr.bf16.mxu0 %v218
    %1439 = vmatpush1.bf16.msra.mxu0 %v217
    %1440 = vmatprep.subr.bf16.mxu0 %v222
    %1441 = vmatpush1.bf16.msra.mxu0 %v221
    %1442 = vmatprep.subr.bf16.mxu0 %v226
    %1443 = vmatpush1.bf16.msra.mxu0 %v225
    %1444 = vmatprep.subr.bf16.mxu0 %v230
    %1445 = vmatpush1.bf16.msra.mxu0 %v229
    %1446 = vmatprep.subr.bf16.mxu0 %v234
    %1447 = vmatpush1.bf16.msra.mxu0 %v233
    %1448 = vmatprep.subr.bf16.mxu0 %v238
    %1449 = vmatpush1.bf16.msra.mxu0 %v237
    %1450 = vmatprep.subr.bf16.mxu0 0
    %1451 = vmatpush1.bf16.msra.mxu0 0
    %1452 = vmatprep.subr.bf16.mxu0 0
    %1453 = vmatpush1.bf16.msra.mxu0 0
    %1454 = vmatprep.subr.bf16.mxu0 0
    %1455 = vmatpush1.bf16.msra.mxu0 0
    %1456 = vmatprep.subr.bf16.mxu0 0
    %1457 = vmatpush1.bf16.msra.mxu0 0
    %1458 = vmatprep.subr.bf16.mxu0 0
    %1459 = vmatpush1.bf16.msra.mxu0 0
    %1460 = vmatprep.subr.bf16.mxu0 0
    %1461 = vmatpush1.bf16.msra.mxu0 0
    %1462 = vmatprep.subr.bf16.mxu0 0
    %1463 = vmatpush1.bf16.msra.mxu0 0
    %1464 = vmatprep.subr.bf16.mxu0 0
    %1465 = vmatpush1.bf16.msra.mxu0 0
    %1466 = vmatprep.mubr.bf16.mxu0 0
    %1467 = vmatmul.mubr.bf16.gmra.mrb[0].mxu0 %v1431
    %v1468 = vpop.f32.mrb[0].mxu0
    %v1469 = vadd.f32 0.0, %v1468
    %v1470 = vpop.f32.mrb[0].mxu0
    %v1471 = vadd.f32 0.0, %v1470
    %v1472 = vpop.f32.mrb[0].mxu0
    %v1473 = vpop.f32.mrb[0].mxu0
    %1474 = vdwg.mxu0
    %1475 = vmatprep.subr.bf16.mxu0 %v212
    %1476 = vmatpush1.bf16.msra.mxu0 %v211
    %1477 = vmatprep.subr.bf16.mxu0 %v216
    %1478 = vmatpush1.bf16.msra.mxu0 %v215
    %1479 = vmatprep.subr.bf16.mxu0 %v220
    %1480 = vmatpush1.bf16.msra.mxu0 %v219
    %1481 = vmatprep.subr.bf16.mxu0 %v224
    %1482 = vmatpush1.bf16.msra.mxu0 %v223
    %1483 = vmatprep.subr.bf16.mxu0 %v228
    %1484 = vmatpush1.bf16.msra.mxu0 %v227
    %1485 = vmatprep.subr.bf16.mxu0 %v232
    %1486 = vmatpush1.bf16.msra.mxu0 %v231
    %1487 = vmatprep.subr.bf16.mxu0 %v236
    %1488 = vmatpush1.bf16.msra.mxu0 %v235
    %1489 = vmatprep.subr.bf16.mxu0 %v240
    %1490 = vmatpush1.bf16.msra.mxu0 %v239
    %1491 = vmatprep.subr.bf16.mxu0 0
    %1492 = vmatpush1.bf16.msra.mxu0 0
    %1493 = vmatprep.subr.bf16.mxu0 0
    %1494 = vmatpush1.bf16.msra.mxu0 0
    %1495 = vmatprep.subr.bf16.mxu0 0
    %1496 = vmatpush1.bf16.msra.mxu0 0
    %1497 = vmatprep.subr.bf16.mxu0 0
    %1498 = vmatpush1.bf16.msra.mxu0 0
    %1499 = vmatprep.subr.bf16.mxu0 0
    %1500 = vmatpush1.bf16.msra.mxu0 0
    %1501 = vmatprep.subr.bf16.mxu0 0
    %1502 = vmatpush1.bf16.msra.mxu0 0
    %1503 = vmatprep.subr.bf16.mxu0 0
    %1504 = vmatpush1.bf16.msra.mxu0 0
    %1505 = vmatprep.subr.bf16.mxu0 0
    %1506 = vmatpush1.bf16.msra.mxu0 0
    %1507 = vmatprep.mubr.bf16.mxu0 0
    %1508 = vmatmul.mubr.bf16.gmra.mrb[0].mxu0 %v1431
    %v1509 = vpop.f32.mrb[0].mxu0
    %v1510 = vadd.f32 0.0, %v1509
    %v1511 = vpop.f32.mrb[0].mxu0
    %v1512 = vadd.f32 0.0, %v1511
    %v1513 = vpop.f32.mrb[0].mxu0
    %v1514 = vpop.f32.mrb[0].mxu0
    %1515 = vdwg.mxu0
    %v1520 = vcombine.low %v1469, %v1471
    %v1521 = vcombine.low %v1510, %v1512
    %v1523 = vunpack.c.l.s4 1983009808
    %v1524 = vunpack.c.0.s8 %v1523
    %v1525 = vlaneseq
    %v1526 = vshrl.u32 %v1525, 7
    %v1527 = vsub.s32 %v1524, %v1526
    %v1528 = vrot.slane %v1520, %v1527
    %v1530 = vunpack.c.l.s4 1983009808
    %v1531 = vunpack.c.0.s8 %v1530
    %v1532 = vlaneseq
    %v1533 = vshrl.u32 %v1532, 7
    %v1534 = vsub.s32 %v1531, %v1533
    %v1535 = vrot.slane %v1521, %v1534
    %v1536 = vcombine.low %v1528, %v1535
    %v1538 = vadd.f32 %v784, %v1536
    %v1539 = vxor.u32 %v1538, 2147483648
    %v1540 = vmul.f32 %v1539, 1.442695
    %v1541 = vpow.pop %v1540
    %v1542 = vadd.f32 %v1541, 1.0
    %v1543 = vrcp.pop %v1542
    %v1544 = vmul.f32 1.0, %v1543
    %v1546 = vrot.slane %v1538, 6
    %v1548 = vtanh.pop %v1546
    %v1550 = vrot.slane %v1544, 2
    %v1552 = vmul.f32 %v1550, %v1426
    %v1553 = vmul.f32 %v1544, %v1548
    %v1554 = vadd.f32 %v1552, %v1553
    %v1555 = vtanh.pop %v1554
    %v1556 = vrot.slane %v1544, 4
    %v1558 = vmul.f32 %v1556, %v1555
    %v1559 = vpack.c.bf16 %v1558, %v1558
    %s1560 = scalar_lea.vmem [#allocation2], 5
    %1561 = vst [vmem:[%s1560] sm:$0x1] %v1559
    %1562 = vmatprep.subr.bf16.mxu0 %v210
    %1563 = vmatpush1.bf16.msra.mxu0 %v209
    %1564 = vmatprep.subr.bf16.mxu0 %v214
    %1565 = vmatpush1.bf16.msra.mxu0 %v213
    %1566 = vmatprep.subr.bf16.mxu0 %v218
    %1567 = vmatpush1.bf16.msra.mxu0 %v217
    %1568 = vmatprep.subr.bf16.mxu0 %v222
    %1569 = vmatpush1.bf16.msra.mxu0 %v221
    %1570 = vmatprep.subr.bf16.mxu0 %v226
    %1571 = vmatpush1.bf16.msra.mxu0 %v225
    %1572 = vmatprep.subr.bf16.mxu0 %v230
    %1573 = vmatpush1.bf16.msra.mxu0 %v229
    %1574 = vmatprep.subr.bf16.mxu0 %v234
    %1575 = vmatpush1.bf16.msra.mxu0 %v233
    %1576 = vmatprep.subr.bf16.mxu0 %v238
    %1577 = vmatpush1.bf16.msra.mxu0 %v237
    %1578 = vmatprep.subr.bf16.mxu0 0
    %1579 = vmatpush1.bf16.msra.mxu0 0
    %1580 = vmatprep.subr.bf16.mxu0 0
    %1581 = vmatpush1.bf16.msra.mxu0 0
    %1582 = vmatprep.subr.bf16.mxu0 0
    %1583 = vmatpush1.bf16.msra.mxu0 0
    %1584 = vmatprep.subr.bf16.mxu0 0
    %1585 = vmatpush1.bf16.msra.mxu0 0
    %1586 = vmatprep.subr.bf16.mxu0 0
    %1587 = vmatpush1.bf16.msra.mxu0 0
    %1588 = vmatprep.subr.bf16.mxu0 0
    %1589 = vmatpush1.bf16.msra.mxu0 0
    %1590 = vmatprep.subr.bf16.mxu0 0
    %1591 = vmatpush1.bf16.msra.mxu0 0
    %1592 = vmatprep.subr.bf16.mxu0 0
    %1593 = vmatpush1.bf16.msra.mxu0 0
    %1594 = vmatprep.mubr.bf16.mxu0 0
    %1595 = vmatmul.mubr.bf16.gmra.mrb[0].mxu0 %v1559
    %v1596 = vpop.f32.mrb[0].mxu0
    %v1597 = vadd.f32 0.0, %v1596
    %v1598 = vpop.f32.mrb[0].mxu0
    %v1599 = vadd.f32 0.0, %v1598
    %v1600 = vpop.f32.mrb[0].mxu0
    %v1601 = vpop.f32.mrb[0].mxu0
    %1602 = vdwg.mxu0
    %1603 = vmatprep.subr.bf16.mxu0 %v212
    %1604 = vmatpush1.bf16.msra.mxu0 %v211
    %1605 = vmatprep.subr.bf16.mxu0 %v216
    %1606 = vmatpush1.bf16.msra.mxu0 %v215
    %1607 = vmatprep.subr.bf16.mxu0 %v220
    %1608 = vmatpush1.bf16.msra.mxu0 %v219
    %1609 = vmatprep.subr.bf16.mxu0 %v224
    %1610 = vmatpush1.bf16.msra.mxu0 %v223
    %1611 = vmatprep.subr.bf16.mxu0 %v228
    %1612 = vmatpush1.bf16.msra.mxu0 %v227
    %1613 = vmatprep.subr.bf16.mxu0 %v232
    %1614 = vmatpush1.bf16.msra.mxu0 %v231
    %1615 = vmatprep.subr.bf16.mxu0 %v236
    %1616 = vmatpush1.bf16.msra.mxu0 %v235
    %1617 = vmatprep.subr.bf16.mxu0 %v240
    %1618 = vmatpush1.bf16.msra.mxu0 %v239
    %1619 = vmatprep.subr.bf16.mxu0 0
    %1620 = vmatpush1.bf16.msra.mxu0 0
    %1621 = vmatprep.subr.bf16.mxu0 0
    %1622 = vmatpush1.bf16.msra.mxu0 0
    %1623 = vmatprep.subr.bf16.mxu0 0
    %1624 = vmatpush1.bf16.msra.mxu0 0
    %1625 = vmatprep.subr.bf16.mxu0 0
    %1626 = vmatpush1.bf16.msra.mxu0 0
    %1627 = vmatprep.subr.bf16.mxu0 0
    %1628 = vmatpush1.bf16.msra.mxu0 0
    %1629 = vmatprep.subr.bf16.mxu0 0
    %1630 = vmatpush1.bf16.msra.mxu0 0
    %1631 = vmatprep.subr.bf16.mxu0 0
    %1632 = vmatpush1.bf16.msra.mxu0 0
    %1633 = vmatprep.subr.bf16.mxu0 0
    %1634 = vmatpush1.bf16.msra.mxu0 0
    %1635 = vmatprep.mubr.bf16.mxu0 0
    %1636 = vmatmul.mubr.bf16.gmra.mrb[0].mxu0 %v1559
    %v1637 = vpop.f32.mrb[0].mxu0
    %v1638 = vadd.f32 0.0, %v1637
    %v1639 = vpop.f32.mrb[0].mxu0
    %v1640 = vadd.f32 0.0, %v1639
    %v1641 = vpop.f32.mrb[0].mxu0
    %v1642 = vpop.f32.mrb[0].mxu0
    %1643 = vdwg.mxu0
    %v1648 = vcombine.low %v1597, %v1599
    %v1649 = vcombine.low %v1638, %v1640
    %v1651 = vunpack.c.l.s4 1983009808
    %v1652 = vunpack.c.0.s8 %v1651
    %v1653 = vlaneseq
    %v1654 = vshrl.u32 %v1653, 7
    %v1655 = vsub.s32 %v1652, %v1654
    %v1656 = vrot.slane %v1648, %v1655
    %v1658 = vunpack.c.l.s4 1983009808
    %v1659 = vunpack.c.0.s8 %v1658
    %v1660 = vlaneseq
    %v1661 = vshrl.u32 %v1660, 7
    %v1662 = vsub.s32 %v1659, %v1661
    %v1663 = vrot.slane %v1649, %v1662
    %v1664 = vcombine.low %v1656, %v1663
    %v1666 = vadd.f32 %v785, %v1664
    %v1667 = vxor.u32 %v1666, 2147483648
    %v1668 = vmul.f32 %v1667, 1.442695
    %v1669 = vpow.pop %v1668
    %v1670 = vadd.f32 %v1669, 1.0
    %v1671 = vrcp.pop %v1670
    %v1672 = vmul.f32 1.0, %v1671
    %v1674 = vrot.slane %v1666, 6
    %v1676 = vtanh.pop %v1674
    %v1678 = vrot.slane %v1672, 2
    %v1680 = vmul.f32 %v1678, %v1554
    %v1681 = vmul.f32 %v1672, %v1676
    %v1682 = vadd.f32 %v1680, %v1681
    %v1683 = vtanh.pop %v1682
    %v1684 = vrot.slane %v1672, 4
    %v1686 = vmul.f32 %v1684, %v1683
    %v1687 = vpack.c.bf16 %v1686, %v1686
    %s1688 = scalar_lea.vmem [#allocation2], 6
    %1689 = vst [vmem:[%s1688] sm:$0x1] %v1687
    %1690 = vmatprep.subr.bf16.mxu0 %v210
    %1691 = vmatpush1.bf16.msra.mxu0 %v209
    %1692 = vmatprep.subr.bf16.mxu0 %v214
    %1693 = vmatpush1.bf16.msra.mxu0 %v213
    %1694 = vmatprep.subr.bf16.mxu0 %v218
    %1695 = vmatpush1.bf16.msra.mxu0 %v217
    %1696 = vmatprep.subr.bf16.mxu0 %v222
    %1697 = vmatpush1.bf16.msra.mxu0 %v221
    %1698 = vmatprep.subr.bf16.mxu0 %v226
    %1699 = vmatpush1.bf16.msra.mxu0 %v225
    %1700 = vmatprep.subr.bf16.mxu0 %v230
    %1701 = vmatpush1.bf16.msra.mxu0 %v229
    %1702 = vmatprep.subr.bf16.mxu0 %v234
    %1703 = vmatpush1.bf16.msra.mxu0 %v233
    %1704 = vmatprep.subr.bf16.mxu0 %v238
    %1705 = vmatpush1.bf16.msra.mxu0 %v237
    %1706 = vmatprep.subr.bf16.mxu0 0
    %1707 = vmatpush1.bf16.msra.mxu0 0
    %1708 = vmatprep.subr.bf16.mxu0 0
    %1709 = vmatpush1.bf16.msra.mxu0 0
    %1710 = vmatprep.subr.bf16.mxu0 0
    %1711 = vmatpush1.bf16.msra.mxu0 0
    %1712 = vmatprep.subr.bf16.mxu0 0
    %1713 = vmatpush1.bf16.msra.mxu0 0
    %1714 = vmatprep.subr.bf16.mxu0 0
    %1715 = vmatpush1.bf16.msra.mxu0 0
    %1716 = vmatprep.subr.bf16.mxu0 0
    %1717 = vmatpush1.bf16.msra.mxu0 0
    %1718 = vmatprep.subr.bf16.mxu0 0
    %1719 = vmatpush1.bf16.msra.mxu0 0
    %1720 = vmatprep.subr.bf16.mxu0 0
    %1721 = vmatpush1.bf16.msra.mxu0 0
    %1722 = vmatprep.mubr.bf16.mxu0 0
    %1723 = vmatmul.mubr.bf16.gmra.mrb[0].mxu0 %v1687
    %v1724 = vpop.f32.mrb[0].mxu0
    %v1725 = vadd.f32 0.0, %v1724
    %v1726 = vpop.f32.mrb[0].mxu0
    %v1727 = vadd.f32 0.0, %v1726
    %v1728 = vpop.f32.mrb[0].mxu0
    %v1729 = vpop.f32.mrb[0].mxu0
    %1730 = vdwg.mxu0
    %1731 = vmatprep.subr.bf16.mxu0 %v212
    %1732 = vmatpush1.bf16.msra.mxu0 %v211
    %1733 = vmatprep.subr.bf16.mxu0 %v216
    %1734 = vmatpush1.bf16.msra.mxu0 %v215
    %1735 = vmatprep.subr.bf16.mxu0 %v220
    %1736 = vmatpush1.bf16.msra.mxu0 %v219
    %1737 = vmatprep.subr.bf16.mxu0 %v224
    %1738 = vmatpush1.bf16.msra.mxu0 %v223
    %1739 = vmatprep.subr.bf16.mxu0 %v228
    %1740 = vmatpush1.bf16.msra.mxu0 %v227
    %1741 = vmatprep.subr.bf16.mxu0 %v232
    %1742 = vmatpush1.bf16.msra.mxu0 %v231
    %1743 = vmatprep.subr.bf16.mxu0 %v236
    %1744 = vmatpush1.bf16.msra.mxu0 %v235
    %1745 = vmatprep.subr.bf16.mxu0 %v240
    %1746 = vmatpush1.bf16.msra.mxu0 %v239
    %1747 = vmatprep.subr.bf16.mxu0 0
    %1748 = vmatpush1.bf16.msra.mxu0 0
    %1749 = vmatprep.subr.bf16.mxu0 0
    %1750 = vmatpush1.bf16.msra.mxu0 0
    %1751 = vmatprep.subr.bf16.mxu0 0
    %1752 = vmatpush1.bf16.msra.mxu0 0
    %1753 = vmatprep.subr.bf16.mxu0 0
    %1754 = vmatpush1.bf16.msra.mxu0 0
    %1755 = vmatprep.subr.bf16.mxu0 0
    %1756 = vmatpush1.bf16.msra.mxu0 0
    %1757 = vmatprep.subr.bf16.mxu0 0
    %1758 = vmatpush1.bf16.msra.mxu0 0
    %1759 = vmatprep.subr.bf16.mxu0 0
    %1760 = vmatpush1.bf16.msra.mxu0 0
    %1761 = vmatprep.subr.bf16.mxu0 0
    %1762 = vmatpush1.bf16.msra.mxu0 0
    %1763 = vmatprep.mubr.bf16.mxu0 0
    %1764 = vmatmul.mubr.bf16.gmra.mrb[0].mxu0 %v1687
    %v1765 = vpop.f32.mrb[0].mxu0
    %v1766 = vadd.f32 0.0, %v1765
    %v1767 = vpop.f32.mrb[0].mxu0
    %v1768 = vadd.f32 0.0, %v1767
    %v1769 = vpop.f32.mrb[0].mxu0
    %v1770 = vpop.f32.mrb[0].mxu0
    %1771 = vdwg.mxu0
    %v1776 = vcombine.low %v1725, %v1727
    %v1777 = vcombine.low %v1766, %v1768
    %v1779 = vunpack.c.l.s4 1983009808
    %v1780 = vunpack.c.0.s8 %v1779
    %v1781 = vlaneseq
    %v1782 = vshrl.u32 %v1781, 7
    %v1783 = vsub.s32 %v1780, %v1782
    %v1784 = vrot.slane %v1776, %v1783
    %v1786 = vunpack.c.l.s4 1983009808
    %v1787 = vunpack.c.0.s8 %v1786
    %v1788 = vlaneseq
    %v1789 = vshrl.u32 %v1788, 7
    %v1790 = vsub.s32 %v1787, %v1789
    %v1791 = vrot.slane %v1777, %v1790
    %v1792 = vcombine.low %v1784, %v1791
    %v1794 = vadd.f32 %v786, %v1792
    %v1795 = vxor.u32 %v1794, 2147483648
    %v1796 = vmul.f32 %v1795, 1.442695
    %v1797 = vpow.pop %v1796
    %v1798 = vadd.f32 %v1797, 1.0
    %v1799 = vrcp.pop %v1798
    %v1800 = vmul.f32 1.0, %v1799
    %v1802 = vrot.slane %v1794, 6
    %v1804 = vtanh.pop %v1802
    %v1806 = vrot.slane %v1800, 2
    %v1808 = vmul.f32 %v1806, %v1682
    %v1809 = vmul.f32 %v1800, %v1804
    %v1810 = vadd.f32 %v1808, %v1809
    %v1811 = vtanh.pop %v1810
    %v1812 = vrot.slane %v1800, 4
    %v1814 = vmul.f32 %v1812, %v1811
    %v1815 = vpack.c.bf16 %v1814, %v1814
    %s1816 = scalar_lea.vmem [#allocation2], 7
    %1817 = vst [vmem:[%s1816] sm:$0x1] %v1815
    %v1818 = vld [vmem:[#allocation2] sm:$0x1]
    %v1819 = vld [vmem:[#allocation2 + $0x1] sm:$0x1]
    %v1820 = vld [vmem:[#allocation2 + $0x2] sm:$0x1]
    %v1821 = vld [vmem:[#allocation2 + $0x3] sm:$0x1]
    %v1822 = vld [vmem:[#allocation2 + $0x4] sm:$0x1]
    %v1823 = vld [vmem:[#allocation2 + $0x5] sm:$0x1]
    %v1824 = vld [vmem:[#allocation2 + $0x6] sm:$0x1]
    %v1825 = vld [vmem:[#allocation2 + $0x7] sm:$0x1]
    %v1826 = vld [vmem:[%s6] sm:$0x3]
    %v1828 = vlaneseq
    %v1829 = vshrl.u32 %v1828, 7
    %v1830 = vsub.s32 0, %v1829
    %v1831 = vrot.slane %v1826, %v1830
    %v1832 = vlaneseq
    %v1833 = vshrl.u32 %v1832, 7
    %v1834 = vsub.s32 1, %v1833
    %v1835 = vrot.slane %v1826, %v1834
    %v1846 = vcombine.low %v1818, %v1819
    %v1847 = vcombine.low %v1820, %v1821
    %v1848 = vcombine.low %v1822, %v1823
    %v1849 = vcombine.low %v1824, %v1825
    %v1851 = vunpack.c.l.s4 1966171168
    %v1852 = vunpack.c.0.s8 %v1851
    %v1853 = vlaneseq
    %v1854 = vshrl.u32 %v1853, 7
    %v1855 = vsub.s32 %v1852, %v1854
    %v1856 = vrot.slane %v1846, %v1855
    %v1858 = vunpack.c.l.s4 1966171168
    %v1859 = vunpack.c.0.s8 %v1858
    %v1860 = vlaneseq
    %v1861 = vshrl.u32 %v1860, 7
    %v1862 = vsub.s32 %v1859, %v1861
    %v1863 = vrot.slane %v1847, %v1862
    %v1865 = vunpack.c.l.s4 1966171168
    %v1866 = vunpack.c.0.s8 %v1865
    %v1867 = vlaneseq
    %v1868 = vshrl.u32 %v1867, 7
    %v1869 = vsub.s32 %v1866, %v1868
    %v1870 = vrot.slane %v1848, %v1869
    %v1872 = vunpack.c.l.s4 1966171168
    %v1873 = vunpack.c.0.s8 %v1872
    %v1874 = vlaneseq
    %v1875 = vshrl.u32 %v1874, 7
    %v1876 = vsub.s32 %v1873, %v1875
    %v1877 = vrot.slane %v1849, %v1876
    %v1878 = vcombine.low %v1856, %v1863
    %v1879 = vcombine.low %v1870, %v1877
    %v1881 = vunpack.c.l.s4 1966171168
    %v1882 = vunpack.c.0.s8 %v1881
    %v1883 = vlaneseq
    %v1884 = vshrl.u32 %v1883, 7
    %v1885 = vsub.s32 %v1882, %v1884
    %v1886 = vrot.slane %v1878, %v1885
    %v1888 = vunpack.c.l.s4 1966171168
    %v1889 = vunpack.c.0.s8 %v1888
    %v1890 = vlaneseq
    %v1891 = vshrl.u32 %v1890, 7
    %v1892 = vsub.s32 %v1889, %v1891
    %v1893 = vrot.slane %v1879, %v1892
    %v1894 = vcombine.low %v1886, %v1893
    %1896 = vmatprep.subr.bf16.mxu0 %v274
    %1897 = vmatpush1.bf16.msra.mxu0 %v273
    %1898 = vmatprep.subr.bf16.mxu0 %v276
    %1899 = vmatpush1.bf16.msra.mxu0 %v275
    %1900 = vmatprep.subr.bf16.mxu0 %v278
    %1901 = vmatpush1.bf16.msra.mxu0 %v277
    %1902 = vmatprep.subr.bf16.mxu0 %v280
    %1903 = vmatpush1.bf16.msra.mxu0 %v279
    %1904 = vmatprep.subr.bf16.mxu0 %v282
    %1905 = vmatpush1.bf16.msra.mxu0 %v281
    %1906 = vmatprep.subr.bf16.mxu0 %v284
    %1907 = vmatpush1.bf16.msra.mxu0 %v283
    %1908 = vmatprep.subr.bf16.mxu0 %v286
    %1909 = vmatpush1.bf16.msra.mxu0 %v285
    %1910 = vmatprep.subr.bf16.mxu0 %v288
    %1911 = vmatpush1.bf16.msra.mxu0 %v287
    %1912 = vmatprep.subr.bf16.mxu0 0
    %1913 = vmatpush1.bf16.msra.mxu0 0
    %1914 = vmatprep.subr.bf16.mxu0 0
    %1915 = vmatpush1.bf16.msra.mxu0 0
    %1916 = vmatprep.subr.bf16.mxu0 0
    %1917 = vmatpush1.bf16.msra.mxu0 0
    %1918 = vmatprep.subr.bf16.mxu0 0
    %1919 = vmatpush1.bf16.msra.mxu0 0
    %1920 = vmatprep.subr.bf16.mxu0 0
    %1921 = vmatpush1.bf16.msra.mxu0 0
    %1922 = vmatprep.subr.bf16.mxu0 0
    %1923 = vmatpush1.bf16.msra.mxu0 0
    %1924 = vmatprep.subr.bf16.mxu0 0
    %1925 = vmatpush1.bf16.msra.mxu0 0
    %1926 = vmatprep.subr.bf16.mxu0 0
    %1927 = vmatpush1.bf16.msra.mxu0 0
    %1928 = vmatprep.mubr.bf16.mxu0 0
    %1929 = vmatmul.mubr.bf16.gmra.mrb[0].mxu0 %v1894
    %v1930 = vpop.f32.mrb[0].mxu0
    %v1931 = vadd.f32 %v1831, %v1930
    %v1932 = vpop.f32.mrb[0].mxu0
    %v1933 = vadd.f32 %v1835, %v1932
    %v1934 = vpop.f32.mrb[0].mxu0
    %v1935 = vadd.f32 %v1831, %v1934
    %v1936 = vpop.f32.mrb[0].mxu0
    %v1937 = vadd.f32 %v1835, %v1936
    %1938 = vdwg.mxu0
    %v1943 = vcombine.low %v1931, %v1933
    %v1944 = vcombine.high %v1931, %v1933
    %v1946 = vunpack.c.l.s4 1983009808
    %v1947 = vunpack.c.0.s8 %v1946
    %v1948 = vlaneseq
    %v1949 = vshrl.u32 %v1948, 7
    %v1950 = vsub.s32 %v1947, %v1949
    %v1951 = vrot.slane %v1943, %v1950
    %v1953 = vunpack.c.l.s4 1983009808
    %v1954 = vunpack.c.0.s8 %v1953
    %v1955 = vlaneseq
    %v1956 = vshrl.u32 %v1955, 7
    %v1957 = vsub.s32 %v1954, %v1956
    %v1958 = vrot.slane %v1944, %v1957
    %v1959 = vcombine.high %v1951, %v1951
    %v1960 = vcombine.high %v1958, %v1958
    %v1961 = vcombine.low %v1935, %v1937
    %v1962 = vcombine.high %v1935, %v1937
    %v1964 = vunpack.c.l.s4 1983009808
    %v1965 = vunpack.c.0.s8 %v1964
    %v1966 = vlaneseq
    %v1967 = vshrl.u32 %v1966, 7
    %v1968 = vsub.s32 %v1965, %v1967
    %v1969 = vrot.slane %v1961, %v1968
    %v1971 = vunpack.c.l.s4 1983009808
    %v1972 = vunpack.c.0.s8 %v1971
    %v1973 = vlaneseq
    %v1974 = vshrl.u32 %v1973, 7
    %v1975 = vsub.s32 %v1972, %v1974
    %v1976 = vrot.slane %v1962, %v1975
    %v1977 = vcombine.high %v1969, %v1969
    %v1978 = vcombine.high %v1976, %v1976
    %vm1987 = vcmask 523264
    %v1989 = vsel %vm1987, 0, 0
    %1991 = vmatprep.subr.bf16.mxu0 %v306
    %1992 = vmatpush1.bf16.msra.mxu0 %v305
    %1993 = vmatprep.subr.bf16.mxu0 %v308
    %1994 = vmatpush1.bf16.msra.mxu0 %v307
    %1995 = vmatprep.subr.bf16.mxu0 %v310
    %1996 = vmatpush1.bf16.msra.mxu0 %v309
    %1997 = vmatprep.subr.bf16.mxu0 %v312
    %1998 = vmatpush1.bf16.msra.mxu0 %v311
    %1999 = vmatprep.subr.bf16.mxu0 0
    %2000 = vmatpush1.bf16.msra.mxu0 0
    %2001 = vmatprep.subr.bf16.mxu0 0
    %2002 = vmatpush1.bf16.msra.mxu0 0
    %2003 = vmatprep.subr.bf16.mxu0 0
    %2004 = vmatpush1.bf16.msra.mxu0 0
    %2005 = vmatprep.subr.bf16.mxu0 0
    %2006 = vmatpush1.bf16.msra.mxu0 0
    %2007 = vmatprep.subr.bf16.mxu0 0
    %2008 = vmatpush1.bf16.msra.mxu0 0
    %2009 = vmatprep.subr.bf16.mxu0 0
    %2010 = vmatpush1.bf16.msra.mxu0 0
    %2011 = vmatprep.subr.bf16.mxu0 0
    %2012 = vmatpush1.bf16.msra.mxu0 0
    %2013 = vmatprep.subr.bf16.mxu0 0
    %2014 = vmatpush1.bf16.msra.mxu0 0
    %2015 = vmatprep.subr.bf16.mxu0 0
    %2016 = vmatpush1.bf16.msra.mxu0 0
    %2017 = vmatprep.subr.bf16.mxu0 0
    %2018 = vmatpush1.bf16.msra.mxu0 0
    %2019 = vmatprep.subr.bf16.mxu0 0
    %2020 = vmatpush1.bf16.msra.mxu0 0
    %2021 = vmatprep.subr.bf16.mxu0 0
    %2022 = vmatpush1.bf16.msra.mxu0 0
    %2023 = vmatprep.mubr.bf16.mxu0 0
    %2024 = vmatmul.mubr.bf16.gmra.mrb[0].mxu0 %v1989
    %v2025 = vpop.f32.mrb[0].mxu0
    %v2026 = vadd.f32 0.0, %v2025
    %v2027 = vpop.f32.mrb[0].mxu0
    %v2028 = vadd.f32 0.0, %v2027
    %v2029 = vpop.f32.mrb[0].mxu0
    %v2030 = vpop.f32.mrb[0].mxu0
    %2031 = vdwg.mxu0
    %v2034 = vcombine.low %v2026, %v2028
    %v2036 = vunpack.c.l.s4 1983009808
    %v2037 = vunpack.c.0.s8 %v2036
    %v2038 = vlaneseq
    %v2039 = vshrl.u32 %v2038, 7
    %v2040 = vsub.s32 %v2037, %v2039
    %v2041 = vrot.slane %v2034, %v2040
    %v2043 = vadd.f32 %v1951, %v2041
    %v2044 = vxor.u32 %v2043, 2147483648
    %v2045 = vmul.f32 %v2044, 1.442695
    %v2046 = vpow.pop %v2045
    %v2047 = vadd.f32 %v2046, 1.0
    %v2048 = vrcp.pop %v2047
    %v2049 = vmul.f32 1.0, %v2048
    %2051 = vrot.lane.b32.xlu0 %v2043, 64
    %v2052 = vpop.permute.xlu0 %2051
    %v2053 = vrot.slane %v2052, 2
    %v2055 = vtanh.pop %v2053
    %v2056 = vmul.f32 %v2049, 0.0
    %v2057 = vmul.f32 %v2049, %v2055
    %2059 = vrot.lane.b32.xlu0 %v2057, 64
    %v2060 = vpop.permute.xlu0 %2059
    %v2062 = vadd.f32 %v2056, %v2060
    %v2063 = vtanh.pop %v2062
    %v2065 = vrot.slane %v2049, 2
    %2068 = vrot.lane.b32.xlu0 %v2063, 64
    %v2069 = vpop.permute.xlu0 %2068
    %v2071 = vmul.f32 %v2065, %v2069
    %v2072 = vpack.c.bf16 %v2071, %v2071
    %v2074 = vsel %vm1987, %v2072, 0
    %2076 = vmatprep.subr.bf16.mxu0 %v306
    %2077 = vmatpush1.bf16.msra.mxu0 %v305
    %2078 = vmatprep.subr.bf16.mxu0 %v308
    %2079 = vmatpush1.bf16.msra.mxu0 %v307
    %2080 = vmatprep.subr.bf16.mxu0 %v310
    %2081 = vmatpush1.bf16.msra.mxu0 %v309
    %2082 = vmatprep.subr.bf16.mxu0 %v312
    %2083 = vmatpush1.bf16.msra.mxu0 %v311
    %2084 = vmatprep.subr.bf16.mxu0 0
    %2085 = vmatpush1.bf16.msra.mxu0 0
    %2086 = vmatprep.subr.bf16.mxu0 0
    %2087 = vmatpush1.bf16.msra.mxu0 0
    %2088 = vmatprep.subr.bf16.mxu0 0
    %2089 = vmatpush1.bf16.msra.mxu0 0
    %2090 = vmatprep.subr.bf16.mxu0 0
    %2091 = vmatpush1.bf16.msra.mxu0 0
    %2092 = vmatprep.subr.bf16.mxu0 0
    %2093 = vmatpush1.bf16.msra.mxu0 0
    %2094 = vmatprep.subr.bf16.mxu0 0
    %2095 = vmatpush1.bf16.msra.mxu0 0
    %2096 = vmatprep.subr.bf16.mxu0 0
    %2097 = vmatpush1.bf16.msra.mxu0 0
    %2098 = vmatprep.subr.bf16.mxu0 0
    %2099 = vmatpush1.bf16.msra.mxu0 0
    %2100 = vmatprep.subr.bf16.mxu0 0
    %2101 = vmatpush1.bf16.msra.mxu0 0
    %2102 = vmatprep.subr.bf16.mxu0 0
    %2103 = vmatpush1.bf16.msra.mxu0 0
    %2104 = vmatprep.subr.bf16.mxu0 0
    %2105 = vmatpush1.bf16.msra.mxu0 0
    %2106 = vmatprep.subr.bf16.mxu0 0
    %2107 = vmatpush1.bf16.msra.mxu0 0
    %2108 = vmatprep.mubr.bf16.mxu0 0
    %2109 = vmatmul.mubr.bf16.gmra.mrb[0].mxu0 %v2074
    %v2110 = vpop.f32.mrb[0].mxu0
    %v2111 = vadd.f32 0.0, %v2110
    %v2112 = vpop.f32.mrb[0].mxu0
    %v2113 = vadd.f32 0.0, %v2112
    %v2114 = vpop.f32.mrb[0].mxu0
    %v2115 = vpop.f32.mrb[0].mxu0
    %2116 = vdwg.mxu0
    %v2119 = vcombine.low %v2111, %v2113
    %v2121 = vunpack.c.l.s4 1983009808
    %v2122 = vunpack.c.0.s8 %v2121
    %v2123 = vlaneseq
    %v2124 = vshrl.u32 %v2123, 7
    %v2125 = vsub.s32 %v2122, %v2124
    %v2126 = vrot.slane %v2119, %v2125
    %v2128 = vadd.f32 %v1959, %v2126
    %v2129 = vxor.u32 %v2128, 2147483648
    %v2130 = vmul.f32 %v2129, 1.442695
    %v2131 = vpow.pop %v2130
    %v2132 = vadd.f32 %v2131, 1.0
    %v2133 = vrcp.pop %v2132
    %v2134 = vmul.f32 1.0, %v2133
    %2136 = vrot.lane.b32.xlu0 %v2128, 64
    %v2137 = vpop.permute.xlu0 %2136
    %v2138 = vrot.slane %v2137, 2
    %v2140 = vtanh.pop %v2138
    %v2141 = vmul.f32 %v2134, %v2062
    %v2142 = vmul.f32 %v2134, %v2140
    %2144 = vrot.lane.b32.xlu0 %v2142, 64
    %v2145 = vpop.permute.xlu0 %2144
    %v2147 = vadd.f32 %v2141, %v2145
    %v2148 = vtanh.pop %v2147
    %v2150 = vrot.slane %v2134, 2
    %2153 = vrot.lane.b32.xlu0 %v2148, 64
    %v2154 = vpop.permute.xlu0 %2153
    %v2156 = vmul.f32 %v2150, %v2154
    %v2157 = vpack.c.bf16 %v2156, %v2156
    %v2159 = vsel %vm1987, %v2157, 0
    %2161 = vmatprep.subr.bf16.mxu0 %v306
    %2162 = vmatpush1.bf16.msra.mxu0 %v305
    %2163 = vmatprep.subr.bf16.mxu0 %v308
    %2164 = vmatpush1.bf16.msra.mxu0 %v307
    %2165 = vmatprep.subr.bf16.mxu0 %v310
    %2166 = vmatpush1.bf16.msra.mxu0 %v309
    %2167 = vmatprep.subr.bf16.mxu0 %v312
    %2168 = vmatpush1.bf16.msra.mxu0 %v311
    %2169 = vmatprep.subr.bf16.mxu0 0
    %2170 = vmatpush1.bf16.msra.mxu0 0
    %2171 = vmatprep.subr.bf16.mxu0 0
    %2172 = vmatpush1.bf16.msra.mxu0 0
    %2173 = vmatprep.subr.bf16.mxu0 0
    %2174 = vmatpush1.bf16.msra.mxu0 0
    %2175 = vmatprep.subr.bf16.mxu0 0
    %2176 = vmatpush1.bf16.msra.mxu0 0
    %2177 = vmatprep.subr.bf16.mxu0 0
    %2178 = vmatpush1.bf16.msra.mxu0 0
    %2179 = vmatprep.subr.bf16.mxu0 0
    %2180 = vmatpush1.bf16.msra.mxu0 0
    %2181 = vmatprep.subr.bf16.mxu0 0
    %2182 = vmatpush1.bf16.msra.mxu0 0
    %2183 = vmatprep.subr.bf16.mxu0 0
    %2184 = vmatpush1.bf16.msra.mxu0 0
    %2185 = vmatprep.subr.bf16.mxu0 0
    %2186 = vmatpush1.bf16.msra.mxu0 0
    %2187 = vmatprep.subr.bf16.mxu0 0
    %2188 = vmatpush1.bf16.msra.mxu0 0
    %2189 = vmatprep.subr.bf16.mxu0 0
    %2190 = vmatpush1.bf16.msra.mxu0 0
    %2191 = vmatprep.subr.bf16.mxu0 0
    %2192 = vmatpush1.bf16.msra.mxu0 0
    %2193 = vmatprep.mubr.bf16.mxu0 0
    %2194 = vmatmul.mubr.bf16.gmra.mrb[0].mxu0 %v2159
    %v2195 = vpop.f32.mrb[0].mxu0
    %v2196 = vadd.f32 0.0, %v2195
    %v2197 = vpop.f32.mrb[0].mxu0
    %v2198 = vadd.f32 0.0, %v2197
    %v2199 = vpop.f32.mrb[0].mxu0
    %v2200 = vpop.f32.mrb[0].mxu0
    %2201 = vdwg.mxu0
    %v2204 = vcombine.low %v2196, %v2198
    %v2206 = vunpack.c.l.s4 1983009808
    %v2207 = vunpack.c.0.s8 %v2206
    %v2208 = vlaneseq
    %v2209 = vshrl.u32 %v2208, 7
    %v2210 = vsub.s32 %v2207, %v2209
    %v2211 = vrot.slane %v2204, %v2210
    %v2213 = vadd.f32 %v1958, %v2211
    %v2214 = vxor.u32 %v2213, 2147483648
    %v2215 = vmul.f32 %v2214, 1.442695
    %v2216 = vpow.pop %v2215
    %v2217 = vadd.f32 %v2216, 1.0
    %v2218 = vrcp.pop %v2217
    %v2219 = vmul.f32 1.0, %v2218
    %2221 = vrot.lane.b32.xlu0 %v2213, 64
    %v2222 = vpop.permute.xlu0 %2221
    %v2223 = vrot.slane %v2222, 2
    %v2225 = vtanh.pop %v2223
    %v2226 = vmul.f32 %v2219, %v2147
    %v2227 = vmul.f32 %v2219, %v2225
    %2229 = vrot.lane.b32.xlu0 %v2227, 64
    %v2230 = vpop.permute.xlu0 %2229
    %v2232 = vadd.f32 %v2226, %v2230
    %v2233 = vtanh.pop %v2232
    %v2235 = vrot.slane %v2219, 2
    %2238 = vrot.lane.b32.xlu0 %v2233, 64
    %v2239 = vpop.permute.xlu0 %2238
    %v2241 = vmul.f32 %v2235, %v2239
    %v2242 = vpack.c.bf16 %v2241, %v2241
    %v2244 = vsel %vm1987, %v2242, 0
    %2246 = vmatprep.subr.bf16.mxu0 %v306
    %2247 = vmatpush1.bf16.msra.mxu0 %v305
    %2248 = vmatprep.subr.bf16.mxu0 %v308
    %2249 = vmatpush1.bf16.msra.mxu0 %v307
    %2250 = vmatprep.subr.bf16.mxu0 %v310
    %2251 = vmatpush1.bf16.msra.mxu0 %v309
    %2252 = vmatprep.subr.bf16.mxu0 %v312
    %2253 = vmatpush1.bf16.msra.mxu0 %v311
    %2254 = vmatprep.subr.bf16.mxu0 0
    %2255 = vmatpush1.bf16.msra.mxu0 0
    %2256 = vmatprep.subr.bf16.mxu0 0
    %2257 = vmatpush1.bf16.msra.mxu0 0
    %2258 = vmatprep.subr.bf16.mxu0 0
    %2259 = vmatpush1.bf16.msra.mxu0 0
    %2260 = vmatprep.subr.bf16.mxu0 0
    %2261 = vmatpush1.bf16.msra.mxu0 0
    %2262 = vmatprep.subr.bf16.mxu0 0
    %2263 = vmatpush1.bf16.msra.mxu0 0
    %2264 = vmatprep.subr.bf16.mxu0 0
    %2265 = vmatpush1.bf16.msra.mxu0 0
    %2266 = vmatprep.subr.bf16.mxu0 0
    %2267 = vmatpush1.bf16.msra.mxu0 0
    %2268 = vmatprep.subr.bf16.mxu0 0
    %2269 = vmatpush1.bf16.msra.mxu0 0
    %2270 = vmatprep.subr.bf16.mxu0 0
    %2271 = vmatpush1.bf16.msra.mxu0 0
    %2272 = vmatprep.subr.bf16.mxu0 0
    %2273 = vmatpush1.bf16.msra.mxu0 0
    %2274 = vmatprep.subr.bf16.mxu0 0
    %2275 = vmatpush1.bf16.msra.mxu0 0
    %2276 = vmatprep.subr.bf16.mxu0 0
    %2277 = vmatpush1.bf16.msra.mxu0 0
    %2278 = vmatprep.mubr.bf16.mxu0 0
    %2279 = vmatmul.mubr.bf16.gmra.mrb[0].mxu0 %v2244
    %v2280 = vpop.f32.mrb[0].mxu0
    %v2281 = vadd.f32 0.0, %v2280
    %v2282 = vpop.f32.mrb[0].mxu0
    %v2283 = vadd.f32 0.0, %v2282
    %v2284 = vpop.f32.mrb[0].mxu0
    %v2285 = vpop.f32.mrb[0].mxu0
    %2286 = vdwg.mxu0
    %v2289 = vcombine.low %v2281, %v2283
    %v2291 = vunpack.c.l.s4 1983009808
    %v2292 = vunpack.c.0.s8 %v2291
    %v2293 = vlaneseq
    %v2294 = vshrl.u32 %v2293, 7
    %v2295 = vsub.s32 %v2292, %v2294
    %v2296 = vrot.slane %v2289, %v2295
    %v2298 = vadd.f32 %v1960, %v2296
    %v2299 = vxor.u32 %v2298, 2147483648
    %v2300 = vmul.f32 %v2299, 1.442695
    %v2301 = vpow.pop %v2300
    %v2302 = vadd.f32 %v2301, 1.0
    %v2303 = vrcp.pop %v2302
    %v2304 = vmul.f32 1.0, %v2303
    %2306 = vrot.lane.b32.xlu0 %v2298, 64
    %v2307 = vpop.permute.xlu0 %2306
    %v2308 = vrot.slane %v2307, 2
    %v2310 = vtanh.pop %v2308
    %v2311 = vmul.f32 %v2304, %v2232
    %v2312 = vmul.f32 %v2304, %v2310
    %2314 = vrot.lane.b32.xlu0 %v2312, 64
    %v2315 = vpop.permute.xlu0 %2314
    %v2317 = vadd.f32 %v2311, %v2315
    %v2318 = vtanh.pop %v2317
    %v2320 = vrot.slane %v2304, 2
    %2323 = vrot.lane.b32.xlu0 %v2318, 64
    %v2324 = vpop.permute.xlu0 %2323
    %v2326 = vmul.f32 %v2320, %v2324
    %v2327 = vpack.c.bf16 %v2326, %v2326
    %v2329 = vsel %vm1987, %v2327, 0
    %2331 = vmatprep.subr.bf16.mxu0 %v306
    %2332 = vmatpush1.bf16.msra.mxu0 %v305
    %2333 = vmatprep.subr.bf16.mxu0 %v308
    %2334 = vmatpush1.bf16.msra.mxu0 %v307
    %2335 = vmatprep.subr.bf16.mxu0 %v310
    %2336 = vmatpush1.bf16.msra.mxu0 %v309
    %2337 = vmatprep.subr.bf16.mxu0 %v312
    %2338 = vmatpush1.bf16.msra.mxu0 %v311
    %2339 = vmatprep.subr.bf16.mxu0 0
    %2340 = vmatpush1.bf16.msra.mxu0 0
    %2341 = vmatprep.subr.bf16.mxu0 0
    %2342 = vmatpush1.bf16.msra.mxu0 0
    %2343 = vmatprep.subr.bf16.mxu0 0
    %2344 = vmatpush1.bf16.msra.mxu0 0
    %2345 = vmatprep.subr.bf16.mxu0 0
    %2346 = vmatpush1.bf16.msra.mxu0 0
    %2347 = vmatprep.subr.bf16.mxu0 0
    %2348 = vmatpush1.bf16.msra.mxu0 0
    %2349 = vmatprep.subr.bf16.mxu0 0
    %2350 = vmatpush1.bf16.msra.mxu0 0
    %2351 = vmatprep.subr.bf16.mxu0 0
    %2352 = vmatpush1.bf16.msra.mxu0 0
    %2353 = vmatprep.subr.bf16.mxu0 0
    %2354 = vmatpush1.bf16.msra.mxu0 0
    %2355 = vmatprep.subr.bf16.mxu0 0
    %2356 = vmatpush1.bf16.msra.mxu0 0
    %2357 = vmatprep.subr.bf16.mxu0 0
    %2358 = vmatpush1.bf16.msra.mxu0 0
    %2359 = vmatprep.subr.bf16.mxu0 0
    %2360 = vmatpush1.bf16.msra.mxu0 0
    %2361 = vmatprep.subr.bf16.mxu0 0
    %2362 = vmatpush1.bf16.msra.mxu0 0
    %2363 = vmatprep.mubr.bf16.mxu0 0
    %2364 = vmatmul.mubr.bf16.gmra.mrb[0].mxu0 %v2329
    %v2365 = vpop.f32.mrb[0].mxu0
    %v2366 = vadd.f32 0.0, %v2365
    %v2367 = vpop.f32.mrb[0].mxu0
    %v2368 = vadd.f32 0.0, %v2367
    %v2369 = vpop.f32.mrb[0].mxu0
    %v2370 = vpop.f32.mrb[0].mxu0
    %2371 = vdwg.mxu0
    %v2374 = vcombine.low %v2366, %v2368
    %v2376 = vunpack.c.l.s4 1983009808
    %v2377 = vunpack.c.0.s8 %v2376
    %v2378 = vlaneseq
    %v2379 = vshrl.u32 %v2378, 7
    %v2380 = vsub.s32 %v2377, %v2379
    %v2381 = vrot.slane %v2374, %v2380
    %v2383 = vadd.f32 %v1969, %v2381
    %v2384 = vxor.u32 %v2383, 2147483648
    %v2385 = vmul.f32 %v2384, 1.442695
    %v2386 = vpow.pop %v2385
    %v2387 = vadd.f32 %v2386, 1.0
    %v2388 = vrcp.pop %v2387
    %v2389 = vmul.f32 1.0, %v2388
    %2391 = vrot.lane.b32.xlu0 %v2383, 64
    %v2392 = vpop.permute.xlu0 %2391
    %v2393 = vrot.slane %v2392, 2
    %v2395 = vtanh.pop %v2393
    %v2396 = vmul.f32 %v2389, %v2317
    %v2397 = vmul.f32 %v2389, %v2395
    %2399 = vrot.lane.b32.xlu0 %v2397, 64
    %v2400 = vpop.permute.xlu0 %2399
    %v2402 = vadd.f32 %v2396, %v2400
    %v2403 = vtanh.pop %v2402
    %v2405 = vrot.slane %v2389, 2
    %2408 = vrot.lane.b32.xlu0 %v2403, 64
    %v2409 = vpop.permute.xlu0 %2408
    %v2411 = vmul.f32 %v2405, %v2409
    %v2412 = vpack.c.bf16 %v2411, %v2411
    %v2414 = vsel %vm1987, %v2412, 0
    %2416 = vmatprep.subr.bf16.mxu0 %v306
    %2417 = vmatpush1.bf16.msra.mxu0 %v305
    %2418 = vmatprep.subr.bf16.mxu0 %v308
    %2419 = vmatpush1.bf16.msra.mxu0 %v307
    %2420 = vmatprep.subr.bf16.mxu0 %v310
    %2421 = vmatpush1.bf16.msra.mxu0 %v309
    %2422 = vmatprep.subr.bf16.mxu0 %v312
    %2423 = vmatpush1.bf16.msra.mxu0 %v311
    %2424 = vmatprep.subr.bf16.mxu0 0
    %2425 = vmatpush1.bf16.msra.mxu0 0
    %2426 = vmatprep.subr.bf16.mxu0 0
    %2427 = vmatpush1.bf16.msra.mxu0 0
    %2428 = vmatprep.subr.bf16.mxu0 0
    %2429 = vmatpush1.bf16.msra.mxu0 0
    %2430 = vmatprep.subr.bf16.mxu0 0
    %2431 = vmatpush1.bf16.msra.mxu0 0
    %2432 = vmatprep.subr.bf16.mxu0 0
    %2433 = vmatpush1.bf16.msra.mxu0 0
    %2434 = vmatprep.subr.bf16.mxu0 0
    %2435 = vmatpush1.bf16.msra.mxu0 0
    %2436 = vmatprep.subr.bf16.mxu0 0
    %2437 = vmatpush1.bf16.msra.mxu0 0
    %2438 = vmatprep.subr.bf16.mxu0 0
    %2439 = vmatpush1.bf16.msra.mxu0 0
    %2440 = vmatprep.subr.bf16.mxu0 0
    %2441 = vmatpush1.bf16.msra.mxu0 0
    %2442 = vmatprep.subr.bf16.mxu0 0
    %2443 = vmatpush1.bf16.msra.mxu0 0
    %2444 = vmatprep.subr.bf16.mxu0 0
    %2445 = vmatpush1.bf16.msra.mxu0 0
    %2446 = vmatprep.subr.bf16.mxu0 0
    %2447 = vmatpush1.bf16.msra.mxu0 0
    %2448 = vmatprep.mubr.bf16.mxu0 0
    %2449 = vmatmul.mubr.bf16.gmra.mrb[0].mxu0 %v2414
    %v2450 = vpop.f32.mrb[0].mxu0
    %v2451 = vadd.f32 0.0, %v2450
    %v2452 = vpop.f32.mrb[0].mxu0
    %v2453 = vadd.f32 0.0, %v2452
    %v2454 = vpop.f32.mrb[0].mxu0
    %v2455 = vpop.f32.mrb[0].mxu0
    %2456 = vdwg.mxu0
    %v2459 = vcombine.low %v2451, %v2453
    %v2461 = vunpack.c.l.s4 1983009808
    %v2462 = vunpack.c.0.s8 %v2461
    %v2463 = vlaneseq
    %v2464 = vshrl.u32 %v2463, 7
    %v2465 = vsub.s32 %v2462, %v2464
    %v2466 = vrot.slane %v2459, %v2465
    %v2468 = vadd.f32 %v1977, %v2466
    %v2469 = vxor.u32 %v2468, 2147483648
    %v2470 = vmul.f32 %v2469, 1.442695
    %v2471 = vpow.pop %v2470
    %v2472 = vadd.f32 %v2471, 1.0
    %v2473 = vrcp.pop %v2472
    %v2474 = vmul.f32 1.0, %v2473
    %2476 = vrot.lane.b32.xlu0 %v2468, 64
    %v2477 = vpop.permute.xlu0 %2476
    %v2478 = vrot.slane %v2477, 2
    %v2480 = vtanh.pop %v2478
    %v2481 = vmul.f32 %v2474, %v2402
    %v2482 = vmul.f32 %v2474, %v2480
    %2484 = vrot.lane.b32.xlu0 %v2482, 64
    %v2485 = vpop.permute.xlu0 %2484
    %v2487 = vadd.f32 %v2481, %v2485
    %v2488 = vtanh.pop %v2487
    %v2490 = vrot.slane %v2474, 2
    %2493 = vrot.lane.b32.xlu0 %v2488, 64
    %v2494 = vpop.permute.xlu0 %2493
    %v2496 = vmul.f32 %v2490, %v2494
    %v2497 = vpack.c.bf16 %v2496, %v2496
    %v2499 = vsel %vm1987, %v2497, 0
    %2501 = vmatprep.subr.bf16.mxu0 %v306
    %2502 = vmatpush1.bf16.msra.mxu0 %v305
    %2503 = vmatprep.subr.bf16.mxu0 %v308
    %2504 = vmatpush1.bf16.msra.mxu0 %v307
    %2505 = vmatprep.subr.bf16.mxu0 %v310
    %2506 = vmatpush1.bf16.msra.mxu0 %v309
    %2507 = vmatprep.subr.bf16.mxu0 %v312
    %2508 = vmatpush1.bf16.msra.mxu0 %v311
    %2509 = vmatprep.subr.bf16.mxu0 0
    %2510 = vmatpush1.bf16.msra.mxu0 0
    %2511 = vmatprep.subr.bf16.mxu0 0
    %2512 = vmatpush1.bf16.msra.mxu0 0
    %2513 = vmatprep.subr.bf16.mxu0 0
    %2514 = vmatpush1.bf16.msra.mxu0 0
    %2515 = vmatprep.subr.bf16.mxu0 0
    %2516 = vmatpush1.bf16.msra.mxu0 0
    %2517 = vmatprep.subr.bf16.mxu0 0
    %2518 = vmatpush1.bf16.msra.mxu0 0
    %2519 = vmatprep.subr.bf16.mxu0 0
    %2520 = vmatpush1.bf16.msra.mxu0 0
    %2521 = vmatprep.subr.bf16.mxu0 0
    %2522 = vmatpush1.bf16.msra.mxu0 0
    %2523 = vmatprep.subr.bf16.mxu0 0
    %2524 = vmatpush1.bf16.msra.mxu0 0
    %2525 = vmatprep.subr.bf16.mxu0 0
    %2526 = vmatpush1.bf16.msra.mxu0 0
    %2527 = vmatprep.subr.bf16.mxu0 0
    %2528 = vmatpush1.bf16.msra.mxu0 0
    %2529 = vmatprep.subr.bf16.mxu0 0
    %2530 = vmatpush1.bf16.msra.mxu0 0
    %2531 = vmatprep.subr.bf16.mxu0 0
    %2532 = vmatpush1.bf16.msra.mxu0 0
    %2533 = vmatprep.mubr.bf16.mxu0 0
    %2534 = vmatmul.mubr.bf16.gmra.mrb[0].mxu0 %v2499
    %v2535 = vpop.f32.mrb[0].mxu0
    %v2536 = vadd.f32 0.0, %v2535
    %v2537 = vpop.f32.mrb[0].mxu0
    %v2538 = vadd.f32 0.0, %v2537
    %v2539 = vpop.f32.mrb[0].mxu0
    %v2540 = vpop.f32.mrb[0].mxu0
    %2541 = vdwg.mxu0
    %v2544 = vcombine.low %v2536, %v2538
    %v2546 = vunpack.c.l.s4 1983009808
    %v2547 = vunpack.c.0.s8 %v2546
    %v2548 = vlaneseq
    %v2549 = vshrl.u32 %v2548, 7
    %v2550 = vsub.s32 %v2547, %v2549
    %v2551 = vrot.slane %v2544, %v2550
    %v2553 = vadd.f32 %v1976, %v2551
    %v2554 = vxor.u32 %v2553, 2147483648
    %v2555 = vmul.f32 %v2554, 1.442695
    %v2556 = vpow.pop %v2555
    %v2557 = vadd.f32 %v2556, 1.0
    %v2558 = vrcp.pop %v2557
    %v2559 = vmul.f32 1.0, %v2558
    %2561 = vrot.lane.b32.xlu0 %v2553, 64
    %v2562 = vpop.permute.xlu0 %2561
    %v2563 = vrot.slane %v2562, 2
    %v2565 = vtanh.pop %v2563
    %v2566 = vmul.f32 %v2559, %v2487
    %v2567 = vmul.f32 %v2559, %v2565
    %2569 = vrot.lane.b32.xlu0 %v2567, 64
    %v2570 = vpop.permute.xlu0 %2569
    %v2572 = vadd.f32 %v2566, %v2570
    %v2573 = vtanh.pop %v2572
    %v2575 = vrot.slane %v2559, 2
    %2578 = vrot.lane.b32.xlu0 %v2573, 64
    %v2579 = vpop.permute.xlu0 %2578
    %v2581 = vmul.f32 %v2575, %v2579
    %v2582 = vpack.c.bf16 %v2581, %v2581
    %v2584 = vsel %vm1987, %v2582, 0
    %2586 = vmatprep.subr.bf16.mxu0 %v306
    %2587 = vmatpush1.bf16.msra.mxu0 %v305
    %2588 = vmatprep.subr.bf16.mxu0 %v308
    %2589 = vmatpush1.bf16.msra.mxu0 %v307
    %2590 = vmatprep.subr.bf16.mxu0 %v310
    %2591 = vmatpush1.bf16.msra.mxu0 %v309
    %2592 = vmatprep.subr.bf16.mxu0 %v312
    %2593 = vmatpush1.bf16.msra.mxu0 %v311
    %2594 = vmatprep.subr.bf16.mxu0 0
    %2595 = vmatpush1.bf16.msra.mxu0 0
    %2596 = vmatprep.subr.bf16.mxu0 0
    %2597 = vmatpush1.bf16.msra.mxu0 0
    %2598 = vmatprep.subr.bf16.mxu0 0
    %2599 = vmatpush1.bf16.msra.mxu0 0
    %2600 = vmatprep.subr.bf16.mxu0 0
    %2601 = vmatpush1.bf16.msra.mxu0 0
    %2602 = vmatprep.subr.bf16.mxu0 0
    %2603 = vmatpush1.bf16.msra.mxu0 0
    %2604 = vmatprep.subr.bf16.mxu0 0
    %2605 = vmatpush1.bf16.msra.mxu0 0
    %2606 = vmatprep.subr.bf16.mxu0 0
    %2607 = vmatpush1.bf16.msra.mxu0 0
    %2608 = vmatprep.subr.bf16.mxu0 0
    %2609 = vmatpush1.bf16.msra.mxu0 0
    %2610 = vmatprep.subr.bf16.mxu0 0
    %2611 = vmatpush1.bf16.msra.mxu0 0
    %2612 = vmatprep.subr.bf16.mxu0 0
    %2613 = vmatpush1.bf16.msra.mxu0 0
    %2614 = vmatprep.subr.bf16.mxu0 0
    %2615 = vmatpush1.bf16.msra.mxu0 0
    %2616 = vmatprep.subr.bf16.mxu0 0
    %2617 = vmatpush1.bf16.msra.mxu0 0
    %2618 = vmatprep.mubr.bf16.mxu0 0
    %2619 = vmatmul.mubr.bf16.gmra.mrb[0].mxu0 %v2584
    %v2620 = vpop.f32.mrb[0].mxu0
    %v2621 = vadd.f32 0.0, %v2620
    %v2622 = vpop.f32.mrb[0].mxu0
    %v2623 = vadd.f32 0.0, %v2622
    %v2624 = vpop.f32.mrb[0].mxu0
    %v2625 = vpop.f32.mrb[0].mxu0
    %2626 = vdwg.mxu0
    %v2629 = vcombine.low %v2621, %v2623
    %v2631 = vunpack.c.l.s4 1983009808
    %v2632 = vunpack.c.0.s8 %v2631
    %v2633 = vlaneseq
    %v2634 = vshrl.u32 %v2633, 7
    %v2635 = vsub.s32 %v2632, %v2634
    %v2636 = vrot.slane %v2629, %v2635
    %v2638 = vadd.f32 %v1978, %v2636
    %v2639 = vxor.u32 %v2638, 2147483648
    %v2640 = vmul.f32 %v2639, 1.442695
    %v2641 = vpow.pop %v2640
    %v2642 = vadd.f32 %v2641, 1.0
    %v2643 = vrcp.pop %v2642
    %v2644 = vmul.f32 1.0, %v2643
    %2646 = vrot.lane.b32.xlu0 %v2638, 64
    %v2647 = vpop.permute.xlu0 %2646
    %v2648 = vrot.slane %v2647, 2
    %v2650 = vtanh.pop %v2648
    %v2651 = vmul.f32 %v2644, %v2572
    %v2652 = vmul.f32 %v2644, %v2650
    %2654 = vrot.lane.b32.xlu0 %v2652, 64
    %v2655 = vpop.permute.xlu0 %2654
    %v2657 = vadd.f32 %v2651, %v2655
    %v2658 = vtanh.pop %v2657
    %v2660 = vrot.slane %v2644, 2
    %2663 = vrot.lane.b32.xlu0 %v2658, 64
    %v2664 = vpop.permute.xlu0 %2663
    %v2666 = vmul.f32 %v2660, %v2664
    %v2667 = vpack.c.bf16 %v2666, %v2666
    %v2668 = vld [vmem:[%s9] sm:$0x3]
    %v2670 = vlaneseq
    %v2671 = vshrl.u32 %v2670, 7
    %v2672 = vsub.s32 0, %v2671
    %v2673 = vrot.slane %v2668, %v2672
    %v2674 = vlaneseq
    %v2675 = vshrl.u32 %v2674, 7
    %v2676 = vsub.s32 1, %v2675
    %v2677 = vrot.slane %v2668, %v2676
    %v2681 = vsel %vm1987, %v2667, 0
    %2683 = vmatprep.subr.bf16.mxu0 %v330
    %2684 = vmatpush1.bf16.msra.mxu0 %v329
    %2685 = vmatprep.subr.bf16.mxu0 %v332
    %2686 = vmatpush1.bf16.msra.mxu0 %v331
    %2687 = vmatprep.subr.bf16.mxu0 %v334
    %2688 = vmatpush1.bf16.msra.mxu0 %v333
    %2689 = vmatprep.subr.bf16.mxu0 %v336
    %2690 = vmatpush1.bf16.msra.mxu0 %v335
    %2691 = vmatprep.subr.bf16.mxu0 0
    %2692 = vmatpush1.bf16.msra.mxu0 0
    %2693 = vmatprep.subr.bf16.mxu0 0
    %2694 = vmatpush1.bf16.msra.mxu0 0
    %2695 = vmatprep.subr.bf16.mxu0 0
    %2696 = vmatpush1.bf16.msra.mxu0 0
    %2697 = vmatprep.subr.bf16.mxu0 0
    %2698 = vmatpush1.bf16.msra.mxu0 0
    %2699 = vmatprep.subr.bf16.mxu0 0
    %2700 = vmatpush1.bf16.msra.mxu0 0
    %2701 = vmatprep.subr.bf16.mxu0 0
    %2702 = vmatpush1.bf16.msra.mxu0 0
    %2703 = vmatprep.subr.bf16.mxu0 0
    %2704 = vmatpush1.bf16.msra.mxu0 0
    %2705 = vmatprep.subr.bf16.mxu0 0
    %2706 = vmatpush1.bf16.msra.mxu0 0
    %2707 = vmatprep.subr.bf16.mxu0 0
    %2708 = vmatpush1.bf16.msra.mxu0 0
    %2709 = vmatprep.subr.bf16.mxu0 0
    %2710 = vmatpush1.bf16.msra.mxu0 0
    %2711 = vmatprep.subr.bf16.mxu0 0
    %2712 = vmatpush1.bf16.msra.mxu0 0
    %2713 = vmatprep.subr.bf16.mxu0 0
    %2714 = vmatpush1.bf16.msra.mxu0 0
    %2715 = vmatprep.mubr.bf16.mxu0 0
    %2716 = vmatmul.mubr.bf16.gmra.mrb[0].mxu0 %v2681
    %v2717 = vpop.f32.mrb[0].mxu0
    %v2718 = vadd.f32 %v2673, %v2717
    %v2719 = vpop.f32.mrb[0].mxu0
    %v2720 = vadd.f32 %v2677, %v2719
    %v2721 = vpop.f32.mrb[0].mxu0
    %v2722 = vpop.f32.mrb[0].mxu0
    %2723 = vdwg.mxu0
    %2724 = vmatprep.subr.bf16.mxu0 %v354
    %2725 = vmatpush1.bf16.msra.mxu0 %v353
    %2726 = vmatprep.subr.bf16.mxu0 %v356
    %2727 = vmatpush1.bf16.msra.mxu0 %v355
    %2728 = vmatprep.subr.bf16.mxu0 %v358
    %2729 = vmatpush1.bf16.msra.mxu0 %v357
    %2730 = vmatprep.subr.bf16.mxu0 %v360
    %2731 = vmatpush1.bf16.msra.mxu0 %v359
    %2732 = vmatprep.subr.bf16.mxu0 0
    %2733 = vmatpush1.bf16.msra.mxu0 0
    %2734 = vmatprep.subr.bf16.mxu0 0
    %2735 = vmatpush1.bf16.msra.mxu0 0
    %2736 = vmatprep.subr.bf16.mxu0 0
    %2737 = vmatpush1.bf16.msra.mxu0 0
    %2738 = vmatprep.subr.bf16.mxu0 0
    %2739 = vmatpush1.bf16.msra.mxu0 0
    %2740 = vmatprep.subr.bf16.mxu0 0
    %2741 = vmatpush1.bf16.msra.mxu0 0
    %2742 = vmatprep.subr.bf16.mxu0 0
    %2743 = vmatpush1.bf16.msra.mxu0 0
    %2744 = vmatprep.subr.bf16.mxu0 0
    %2745 = vmatpush1.bf16.msra.mxu0 0
    %2746 = vmatprep.subr.bf16.mxu0 0
    %2747 = vmatpush1.bf16.msra.mxu0 0
    %2748 = vmatprep.subr.bf16.mxu0 0
    %2749 = vmatpush1.bf16.msra.mxu0 0
    %2750 = vmatprep.subr.bf16.mxu0 0
    %2751 = vmatpush1.bf16.msra.mxu0 0
    %2752 = vmatprep.subr.bf16.mxu0 0
    %2753 = vmatpush1.bf16.msra.mxu0 0
    %2754 = vmatprep.subr.bf16.mxu0 0
    %2755 = vmatpush1.bf16.msra.mxu0 0
    %2756 = vmatprep.mubr.bf16.mxu0 0
    %2757 = vmatmul.mubr.bf16.gmra.mrb[0].mxu0 %v1989
    %v2758 = vpop.f32.mrb[0].mxu0
    %v2759 = vadd.f32 0.0, %v2758
    %v2760 = vpop.f32.mrb[0].mxu0
    %v2761 = vadd.f32 0.0, %v2760
    %v2762 = vpop.f32.mrb[0].mxu0
    %v2763 = vpop.f32.mrb[0].mxu0
    %2764 = vdwg.mxu0
    %v2765 = vadd.f32 %v2718, %v2759
    %v2766 = vadd.f32 %v2720, %v2761
    %v2767 = vxor.u32 %v2765, 2147483648
    %v2768 = vxor.u32 %v2766, 2147483648
    %v2769 = vmul.f32 %v2767, 1.442695
    %v2770 = vpow.pop %v2769
    %v2771 = vmul.f32 %v2768, 1.442695
    %v2772 = vpow.pop %v2771
    %v2773 = vadd.f32 %v2770, 1.0
    %v2774 = vadd.f32 %v2772, 1.0
    %v2775 = vrcp.pop %v2773
    %v2776 = vmul.f32 1.0, %v2775
    %v2777 = vrcp.pop %v2774
    %v2778 = vmul.f32 1.0, %v2777
    %v2779 = vtanh.pop %v2766
    %v2780 = vmul.f32 %v2776, 0.0
    %2782 = vrot.lane.b32.xlu0 %v2779, 64
    %v2783 = vpop.permute.xlu0 %2782
    %v2785 = vmul.f32 %v2776, %v2783
    %2787 = vrot.lane.b32.xlu0 %v2785, 64
    %v2788 = vpop.permute.xlu0 %2787
    %v2790 = vadd.f32 %v2780, %v2788
    %v2791 = vtanh.pop %v2790
    %2793 = vrot.lane.b32.xlu0 %v2791, 64
    %v2794 = vpop.permute.xlu0 %2793
    %v2796 = vmul.f32 %v2778, %v2794
    %v2797 = vpack.c.bf16 %v2796, %v2796
    %vm2798 = vcmask 516096
    %2799 = vst.msk [vmem:[#allocation3] sm:$0x1] %vm2798, %v2797
    %v2801 = vsel %vm1987, %v2797, 0
    %2803 = vmatprep.subr.bf16.mxu0 %v354
    %2804 = vmatpush1.bf16.msra.mxu0 %v353
    %2805 = vmatprep.subr.bf16.mxu0 %v356
    %2806 = vmatpush1.bf16.msra.mxu0 %v355
    %2807 = vmatprep.subr.bf16.mxu0 %v358
    %2808 = vmatpush1.bf16.msra.mxu0 %v357
    %2809 = vmatprep.subr.bf16.mxu0 %v360
    %2810 = vmatpush1.bf16.msra.mxu0 %v359
    %2811 = vmatprep.subr.bf16.mxu0 0
    %2812 = vmatpush1.bf16.msra.mxu0 0
    %2813 = vmatprep.subr.bf16.mxu0 0
    %2814 = vmatpush1.bf16.msra.mxu0 0
    %2815 = vmatprep.subr.bf16.mxu0 0
    %2816 = vmatpush1.bf16.msra.mxu0 0
    %2817 = vmatprep.subr.bf16.mxu0 0
    %2818 = vmatpush1.bf16.msra.mxu0 0
    %2819 = vmatprep.subr.bf16.mxu0 0
    %2820 = vmatpush1.bf16.msra.mxu0 0
    %2821 = vmatprep.subr.bf16.mxu0 0
    %2822 = vmatpush1.bf16.msra.mxu0 0
    %2823 = vmatprep.subr.bf16.mxu0 0
    %2824 = vmatpush1.bf16.msra.mxu0 0
    %2825 = vmatprep.subr.bf16.mxu0 0
    %2826 = vmatpush1.bf16.msra.mxu0 0
    %2827 = vmatprep.subr.bf16.mxu0 0
    %2828 = vmatpush1.bf16.msra.mxu0 0
    %2829 = vmatprep.subr.bf16.mxu0 0
    %2830 = vmatpush1.bf16.msra.mxu0 0
    %2831 = vmatprep.subr.bf16.mxu0 0
    %2832 = vmatpush1.bf16.msra.mxu0 0
    %2833 = vmatprep.subr.bf16.mxu0 0
    %2834 = vmatpush1.bf16.msra.mxu0 0
    %2835 = vmatprep.mubr.bf16.mxu0 0
    %2836 = vmatmul.mubr.bf16.gmra.mrb[0].mxu0 %v2801
    %v2837 = vpop.f32.mrb[0].mxu0
    %v2838 = vadd.f32 0.0, %v2837
    %v2839 = vpop.f32.mrb[0].mxu0
    %v2840 = vadd.f32 0.0, %v2839
    %v2841 = vpop.f32.mrb[0].mxu0
    %v2842 = vpop.f32.mrb[0].mxu0
    %2843 = vdwg.mxu0
    %v2844 = vadd.f32 %v2718, %v2838
    %v2845 = vadd.f32 %v2720, %v2840
    %v2846 = vxor.u32 %v2844, 2147483648
    %v2847 = vxor.u32 %v2845, 2147483648
    %v2848 = vmul.f32 %v2846, 1.442695
    %v2849 = vpow.pop %v2848
    %v2850 = vmul.f32 %v2847, 1.442695
    %v2851 = vpow.pop %v2850
    %v2852 = vadd.f32 %v2849, 1.0
    %v2853 = vadd.f32 %v2851, 1.0
    %v2854 = vrcp.pop %v2852
    %v2855 = vmul.f32 1.0, %v2854
    %v2856 = vrcp.pop %v2853
    %v2857 = vmul.f32 1.0, %v2856
    %v2858 = vtanh.pop %v2845
    %v2859 = vmul.f32 %v2855, %v2790
    %2861 = vrot.lane.b32.xlu0 %v2858, 64
    %v2862 = vpop.permute.xlu0 %2861
    %v2864 = vmul.f32 %v2855, %v2862
    %2866 = vrot.lane.b32.xlu0 %v2864, 64
    %v2867 = vpop.permute.xlu0 %2866
    %v2869 = vadd.f32 %v2859, %v2867
    %v2870 = vtanh.pop %v2869
    %2872 = vrot.lane.b32.xlu0 %v2870, 64
    %v2873 = vpop.permute.xlu0 %2872
    %v2875 = vmul.f32 %v2857, %v2873
    %v2876 = vpack.c.bf16 %v2875, %v2875
    %s2877 = scalar_lea.vmem [#allocation3], 1
    %2878 = vst.msk [vmem:[%s2877] sm:$0x1] %vm2798, %v2876
    %v2880 = vsel %vm1987, %v2876, 0
    %2882 = vmatprep.subr.bf16.mxu0 %v354
    %2883 = vmatpush1.bf16.msra.mxu0 %v353
    %2884 = vmatprep.subr.bf16.mxu0 %v356
    %2885 = vmatpush1.bf16.msra.mxu0 %v355
    %2886 = vmatprep.subr.bf16.mxu0 %v358
    %2887 = vmatpush1.bf16.msra.mxu0 %v357
    %2888 = vmatprep.subr.bf16.mxu0 %v360
    %2889 = vmatpush1.bf16.msra.mxu0 %v359
    %2890 = vmatprep.subr.bf16.mxu0 0
    %2891 = vmatpush1.bf16.msra.mxu0 0
    %2892 = vmatprep.subr.bf16.mxu0 0
    %2893 = vmatpush1.bf16.msra.mxu0 0
    %2894 = vmatprep.subr.bf16.mxu0 0
    %2895 = vmatpush1.bf16.msra.mxu0 0
    %2896 = vmatprep.subr.bf16.mxu0 0
    %2897 = vmatpush1.bf16.msra.mxu0 0
    %2898 = vmatprep.subr.bf16.mxu0 0
    %2899 = vmatpush1.bf16.msra.mxu0 0
    %2900 = vmatprep.subr.bf16.mxu0 0
    %2901 = vmatpush1.bf16.msra.mxu0 0
    %2902 = vmatprep.subr.bf16.mxu0 0
    %2903 = vmatpush1.bf16.msra.mxu0 0
    %2904 = vmatprep.subr.bf16.mxu0 0
    %2905 = vmatpush1.bf16.msra.mxu0 0
    %2906 = vmatprep.subr.bf16.mxu0 0
    %2907 = vmatpush1.bf16.msra.mxu0 0
    %2908 = vmatprep.subr.bf16.mxu0 0
    %2909 = vmatpush1.bf16.msra.mxu0 0
    %2910 = vmatprep.subr.bf16.mxu0 0
    %2911 = vmatpush1.bf16.msra.mxu0 0
    %2912 = vmatprep.subr.bf16.mxu0 0
    %2913 = vmatpush1.bf16.msra.mxu0 0
    %2914 = vmatprep.mubr.bf16.mxu0 0
    %2915 = vmatmul.mubr.bf16.gmra.mrb[0].mxu0 %v2880
    %v2916 = vpop.f32.mrb[0].mxu0
    %v2917 = vadd.f32 0.0, %v2916
    %v2918 = vpop.f32.mrb[0].mxu0
    %v2919 = vadd.f32 0.0, %v2918
    %v2920 = vpop.f32.mrb[0].mxu0
    %v2921 = vpop.f32.mrb[0].mxu0
    %2922 = vdwg.mxu0
    %v2923 = vadd.f32 %v2718, %v2917
    %v2924 = vadd.f32 %v2720, %v2919
    %v2925 = vxor.u32 %v2923, 2147483648
    %v2926 = vxor.u32 %v2924, 2147483648
    %v2927 = vmul.f32 %v2925, 1.442695
    %v2928 = vpow.pop %v2927
    %v2929 = vmul.f32 %v2926, 1.442695
    %v2930 = vpow.pop %v2929
    %v2931 = vadd.f32 %v2928, 1.0
    %v2932 = vadd.f32 %v2930, 1.0
    %v2933 = vrcp.pop %v2931
    %v2934 = vmul.f32 1.0, %v2933
    %v2935 = vrcp.pop %v2932
    %v2936 = vmul.f32 1.0, %v2935
    %v2937 = vtanh.pop %v2924
    %v2938 = vmul.f32 %v2934, %v2869
    %2940 = vrot.lane.b32.xlu0 %v2937, 64
    %v2941 = vpop.permute.xlu0 %2940
    %v2943 = vmul.f32 %v2934, %v2941
    %2945 = vrot.lane.b32.xlu0 %v2943, 64
    %v2946 = vpop.permute.xlu0 %2945
    %v2948 = vadd.f32 %v2938, %v2946
    %v2949 = vtanh.pop %v2948
    %2951 = vrot.lane.b32.xlu0 %v2949, 64
    %v2952 = vpop.permute.xlu0 %2951
    %v2954 = vmul.f32 %v2936, %v2952
    %v2955 = vpack.c.bf16 %v2954, %v2954
    %s2956 = scalar_lea.vmem [#allocation3], 2
    %2957 = vst.msk [vmem:[%s2956] sm:$0x1] %vm2798, %v2955
    %v2959 = vsel %vm1987, %v2955, 0
    %2961 = vmatprep.subr.bf16.mxu0 %v354
    %2962 = vmatpush1.bf16.msra.mxu0 %v353
    %2963 = vmatprep.subr.bf16.mxu0 %v356
    %2964 = vmatpush1.bf16.msra.mxu0 %v355
    %2965 = vmatprep.subr.bf16.mxu0 %v358
    %2966 = vmatpush1.bf16.msra.mxu0 %v357
    %2967 = vmatprep.subr.bf16.mxu0 %v360
    %2968 = vmatpush1.bf16.msra.mxu0 %v359
    %2969 = vmatprep.subr.bf16.mxu0 0
    %2970 = vmatpush1.bf16.msra.mxu0 0
    %2971 = vmatprep.subr.bf16.mxu0 0
    %2972 = vmatpush1.bf16.msra.mxu0 0
    %2973 = vmatprep.subr.bf16.mxu0 0
    %2974 = vmatpush1.bf16.msra.mxu0 0
    %2975 = vmatprep.subr.bf16.mxu0 0
    %2976 = vmatpush1.bf16.msra.mxu0 0
    %2977 = vmatprep.subr.bf16.mxu0 0
    %2978 = vmatpush1.bf16.msra.mxu0 0
    %2979 = vmatprep.subr.bf16.mxu0 0
    %2980 = vmatpush1.bf16.msra.mxu0 0
    %2981 = vmatprep.subr.bf16.mxu0 0
    %2982 = vmatpush1.bf16.msra.mxu0 0
    %2983 = vmatprep.subr.bf16.mxu0 0
    %2984 = vmatpush1.bf16.msra.mxu0 0
    %2985 = vmatprep.subr.bf16.mxu0 0
    %2986 = vmatpush1.bf16.msra.mxu0 0
    %2987 = vmatprep.subr.bf16.mxu0 0
    %2988 = vmatpush1.bf16.msra.mxu0 0
    %2989 = vmatprep.subr.bf16.mxu0 0
    %2990 = vmatpush1.bf16.msra.mxu0 0
    %2991 = vmatprep.subr.bf16.mxu0 0
    %2992 = vmatpush1.bf16.msra.mxu0 0
    %2993 = vmatprep.mubr.bf16.mxu0 0
    %2994 = vmatmul.mubr.bf16.gmra.mrb[0].mxu0 %v2959
    %v2995 = vpop.f32.mrb[0].mxu0
    %v2996 = vadd.f32 0.0, %v2995
    %v2997 = vpop.f32.mrb[0].mxu0
    %v2998 = vadd.f32 0.0, %v2997
    %v2999 = vpop.f32.mrb[0].mxu0
    %v3000 = vpop.f32.mrb[0].mxu0
    %3001 = vdwg.mxu0
    %v3002 = vadd.f32 %v2718, %v2996
    %v3003 = vadd.f32 %v2720, %v2998
    %v3004 = vxor.u32 %v3002, 2147483648
    %v3005 = vxor.u32 %v3003, 2147483648
    %v3006 = vmul.f32 %v3004, 1.442695
    %v3007 = vpow.pop %v3006
    %v3008 = vmul.f32 %v3005, 1.442695
    %v3009 = vpow.pop %v3008
    %v3010 = vadd.f32 %v3007, 1.0
    %v3011 = vadd.f32 %v3009, 1.0
    %v3012 = vrcp.pop %v3010
    %v3013 = vmul.f32 1.0, %v3012
    %v3014 = vrcp.pop %v3011
    %v3015 = vmul.f32 1.0, %v3014
    %v3016 = vtanh.pop %v3003
    %v3017 = vmul.f32 %v3013, %v2948
    %3019 = vrot.lane.b32.xlu0 %v3016, 64
    %v3020 = vpop.permute.xlu0 %3019
    %v3022 = vmul.f32 %v3013, %v3020
    %3024 = vrot.lane.b32.xlu0 %v3022, 64
    %v3025 = vpop.permute.xlu0 %3024
    %v3027 = vadd.f32 %v3017, %v3025
    %v3028 = vtanh.pop %v3027
    %3030 = vrot.lane.b32.xlu0 %v3028, 64
    %v3031 = vpop.permute.xlu0 %3030
    %v3033 = vmul.f32 %v3015, %v3031
    %v3034 = vpack.c.bf16 %v3033, %v3033
    %s3035 = scalar_lea.vmem [#allocation3], 3
    %3036 = vst.msk [vmem:[%s3035] sm:$0x1] %vm2798, %v3034
    %v3038 = vsel %vm1987, %v3034, 0
    %3040 = vmatprep.subr.bf16.mxu0 %v354
    %3041 = vmatpush1.bf16.msra.mxu0 %v353
    %3042 = vmatprep.subr.bf16.mxu0 %v356
    %3043 = vmatpush1.bf16.msra.mxu0 %v355
    %3044 = vmatprep.subr.bf16.mxu0 %v358
    %3045 = vmatpush1.bf16.msra.mxu0 %v357
    %3046 = vmatprep.subr.bf16.mxu0 %v360
    %3047 = vmatpush1.bf16.msra.mxu0 %v359
    %3048 = vmatprep.subr.bf16.mxu0 0
    %3049 = vmatpush1.bf16.msra.mxu0 0
    %3050 = vmatprep.subr.bf16.mxu0 0
    %3051 = vmatpush1.bf16.msra.mxu0 0
    %3052 = vmatprep.subr.bf16.mxu0 0
    %3053 = vmatpush1.bf16.msra.mxu0 0
    %3054 = vmatprep.subr.bf16.mxu0 0
    %3055 = vmatpush1.bf16.msra.mxu0 0
    %3056 = vmatprep.subr.bf16.mxu0 0
    %3057 = vmatpush1.bf16.msra.mxu0 0
    %3058 = vmatprep.subr.bf16.mxu0 0
    %3059 = vmatpush1.bf16.msra.mxu0 0
    %3060 = vmatprep.subr.bf16.mxu0 0
    %3061 = vmatpush1.bf16.msra.mxu0 0
    %3062 = vmatprep.subr.bf16.mxu0 0
    %3063 = vmatpush1.bf16.msra.mxu0 0
    %3064 = vmatprep.subr.bf16.mxu0 0
    %3065 = vmatpush1.bf16.msra.mxu0 0
    %3066 = vmatprep.subr.bf16.mxu0 0
    %3067 = vmatpush1.bf16.msra.mxu0 0
    %3068 = vmatprep.subr.bf16.mxu0 0
    %3069 = vmatpush1.bf16.msra.mxu0 0
    %3070 = vmatprep.subr.bf16.mxu0 0
    %3071 = vmatpush1.bf16.msra.mxu0 0
    %3072 = vmatprep.mubr.bf16.mxu0 0
    %3073 = vmatmul.mubr.bf16.gmra.mrb[0].mxu0 %v3038
    %v3074 = vpop.f32.mrb[0].mxu0
    %v3075 = vadd.f32 0.0, %v3074
    %v3076 = vpop.f32.mrb[0].mxu0
    %v3077 = vadd.f32 0.0, %v3076
    %v3078 = vpop.f32.mrb[0].mxu0
    %v3079 = vpop.f32.mrb[0].mxu0
    %3080 = vdwg.mxu0
    %v3081 = vadd.f32 %v2718, %v3075
    %v3082 = vadd.f32 %v2720, %v3077
    %v3083 = vxor.u32 %v3081, 2147483648
    %v3084 = vxor.u32 %v3082, 2147483648
    %v3085 = vmul.f32 %v3083, 1.442695
    %v3086 = vpow.pop %v3085
    %v3087 = vmul.f32 %v3084, 1.442695
    %v3088 = vpow.pop %v3087
    %v3089 = vadd.f32 %v3086, 1.0
    %v3090 = vadd.f32 %v3088, 1.0
    %v3091 = vrcp.pop %v3089
    %v3092 = vmul.f32 1.0, %v3091
    %v3093 = vrcp.pop %v3090
    %v3094 = vmul.f32 1.0, %v3093
    %v3095 = vtanh.pop %v3082
    %v3096 = vmul.f32 %v3092, %v3027
    %3098 = vrot.lane.b32.xlu0 %v3095, 64
    %v3099 = vpop.permute.xlu0 %3098
    %v3101 = vmul.f32 %v3092, %v3099
    %3103 = vrot.lane.b32.xlu0 %v3101, 64
    %v3104 = vpop.permute.xlu0 %3103
    %v3106 = vadd.f32 %v3096, %v3104
    %v3107 = vtanh.pop %v3106
    %3109 = vrot.lane.b32.xlu0 %v3107, 64
    %v3110 = vpop.permute.xlu0 %3109
    %v3112 = vmul.f32 %v3094, %v3110
    %v3113 = vpack.c.bf16 %v3112, %v3112
    %s3114 = scalar_lea.vmem [#allocation3], 4
    %3115 = vst.msk [vmem:[%s3114] sm:$0x1] %vm2798, %v3113
    %v3117 = vsel %vm1987, %v3113, 0
    %3119 = vmatprep.subr.bf16.mxu0 %v354
    %3120 = vmatpush1.bf16.msra.mxu0 %v353
    %3121 = vmatprep.subr.bf16.mxu0 %v356
    %3122 = vmatpush1.bf16.msra.mxu0 %v355
    %3123 = vmatprep.subr.bf16.mxu0 %v358
    %3124 = vmatpush1.bf16.msra.mxu0 %v357
    %3125 = vmatprep.subr.bf16.mxu0 %v360
    %3126 = vmatpush1.bf16.msra.mxu0 %v359
    %3127 = vmatprep.subr.bf16.mxu0 0
    %3128 = vmatpush1.bf16.msra.mxu0 0
    %3129 = vmatprep.subr.bf16.mxu0 0
    %3130 = vmatpush1.bf16.msra.mxu0 0
    %3131 = vmatprep.subr.bf16.mxu0 0
    %3132 = vmatpush1.bf16.msra.mxu0 0
    %3133 = vmatprep.subr.bf16.mxu0 0
    %3134 = vmatpush1.bf16.msra.mxu0 0
    %3135 = vmatprep.subr.bf16.mxu0 0
    %3136 = vmatpush1.bf16.msra.mxu0 0
    %3137 = vmatprep.subr.bf16.mxu0 0
    %3138 = vmatpush1.bf16.msra.mxu0 0
    %3139 = vmatprep.subr.bf16.mxu0 0
    %3140 = vmatpush1.bf16.msra.mxu0 0
    %3141 = vmatprep.subr.bf16.mxu0 0
    %3142 = vmatpush1.bf16.msra.mxu0 0
    %3143 = vmatprep.subr.bf16.mxu0 0
    %3144 = vmatpush1.bf16.msra.mxu0 0
    %3145 = vmatprep.subr.bf16.mxu0 0
    %3146 = vmatpush1.bf16.msra.mxu0 0
    %3147 = vmatprep.subr.bf16.mxu0 0
    %3148 = vmatpush1.bf16.msra.mxu0 0
    %3149 = vmatprep.subr.bf16.mxu0 0
    %3150 = vmatpush1.bf16.msra.mxu0 0
    %3151 = vmatprep.mubr.bf16.mxu0 0
    %3152 = vmatmul.mubr.bf16.gmra.mrb[0].mxu0 %v3117
    %v3153 = vpop.f32.mrb[0].mxu0
    %v3154 = vadd.f32 0.0, %v3153
    %v3155 = vpop.f32.mrb[0].mxu0
    %v3156 = vadd.f32 0.0, %v3155
    %v3157 = vpop.f32.mrb[0].mxu0
    %v3158 = vpop.f32.mrb[0].mxu0
    %3159 = vdwg.mxu0
    %v3160 = vadd.f32 %v2718, %v3154
    %v3161 = vadd.f32 %v2720, %v3156
    %v3162 = vxor.u32 %v3160, 2147483648
    %v3163 = vxor.u32 %v3161, 2147483648
    %v3164 = vmul.f32 %v3162, 1.442695
    %v3165 = vpow.pop %v3164
    %v3166 = vmul.f32 %v3163, 1.442695
    %v3167 = vpow.pop %v3166
    %v3168 = vadd.f32 %v3165, 1.0
    %v3169 = vadd.f32 %v3167, 1.0
    %v3170 = vrcp.pop %v3168
    %v3171 = vmul.f32 1.0, %v3170
    %v3172 = vrcp.pop %v3169
    %v3173 = vmul.f32 1.0, %v3172
    %v3174 = vtanh.pop %v3161
    %v3175 = vmul.f32 %v3171, %v3106
    %3177 = vrot.lane.b32.xlu0 %v3174, 64
    %v3178 = vpop.permute.xlu0 %3177
    %v3180 = vmul.f32 %v3171, %v3178
    %3182 = vrot.lane.b32.xlu0 %v3180, 64
    %v3183 = vpop.permute.xlu0 %3182
    %v3185 = vadd.f32 %v3175, %v3183
    %v3186 = vtanh.pop %v3185
    %3188 = vrot.lane.b32.xlu0 %v3186, 64
    %v3189 = vpop.permute.xlu0 %3188
    %v3191 = vmul.f32 %v3173, %v3189
    %v3192 = vpack.c.bf16 %v3191, %v3191
    %s3193 = scalar_lea.vmem [#allocation3], 5
    %3194 = vst.msk [vmem:[%s3193] sm:$0x1] %vm2798, %v3192
    %v3196 = vsel %vm1987, %v3192, 0
    %3198 = vmatprep.subr.bf16.mxu0 %v354
    %3199 = vmatpush1.bf16.msra.mxu0 %v353
    %3200 = vmatprep.subr.bf16.mxu0 %v356
    %3201 = vmatpush1.bf16.msra.mxu0 %v355
    %3202 = vmatprep.subr.bf16.mxu0 %v358
    %3203 = vmatpush1.bf16.msra.mxu0 %v357
    %3204 = vmatprep.subr.bf16.mxu0 %v360
    %3205 = vmatpush1.bf16.msra.mxu0 %v359
    %3206 = vmatprep.subr.bf16.mxu0 0
    %3207 = vmatpush1.bf16.msra.mxu0 0
    %3208 = vmatprep.subr.bf16.mxu0 0
    %3209 = vmatpush1.bf16.msra.mxu0 0
    %3210 = vmatprep.subr.bf16.mxu0 0
    %3211 = vmatpush1.bf16.msra.mxu0 0
    %3212 = vmatprep.subr.bf16.mxu0 0
    %3213 = vmatpush1.bf16.msra.mxu0 0
    %3214 = vmatprep.subr.bf16.mxu0 0
    %3215 = vmatpush1.bf16.msra.mxu0 0
    %3216 = vmatprep.subr.bf16.mxu0 0
    %3217 = vmatpush1.bf16.msra.mxu0 0
    %3218 = vmatprep.subr.bf16.mxu0 0
    %3219 = vmatpush1.bf16.msra.mxu0 0
    %3220 = vmatprep.subr.bf16.mxu0 0
    %3221 = vmatpush1.bf16.msra.mxu0 0
    %3222 = vmatprep.subr.bf16.mxu0 0
    %3223 = vmatpush1.bf16.msra.mxu0 0
    %3224 = vmatprep.subr.bf16.mxu0 0
    %3225 = vmatpush1.bf16.msra.mxu0 0
    %3226 = vmatprep.subr.bf16.mxu0 0
    %3227 = vmatpush1.bf16.msra.mxu0 0
    %3228 = vmatprep.subr.bf16.mxu0 0
    %3229 = vmatpush1.bf16.msra.mxu0 0
    %3230 = vmatprep.mubr.bf16.mxu0 0
    %3231 = vmatmul.mubr.bf16.gmra.mrb[0].mxu0 %v3196
    %v3232 = vpop.f32.mrb[0].mxu0
    %v3233 = vadd.f32 0.0, %v3232
    %v3234 = vpop.f32.mrb[0].mxu0
    %v3235 = vadd.f32 0.0, %v3234
    %v3236 = vpop.f32.mrb[0].mxu0
    %v3237 = vpop.f32.mrb[0].mxu0
    %3238 = vdwg.mxu0
    %v3239 = vadd.f32 %v2718, %v3233
    %v3240 = vadd.f32 %v2720, %v3235
    %v3241 = vxor.u32 %v3239, 2147483648
    %v3242 = vxor.u32 %v3240, 2147483648
    %v3243 = vmul.f32 %v3241, 1.442695
    %v3244 = vpow.pop %v3243
    %v3245 = vmul.f32 %v3242, 1.442695
    %v3246 = vpow.pop %v3245
    %v3247 = vadd.f32 %v3244, 1.0
    %v3248 = vadd.f32 %v3246, 1.0
    %v3249 = vrcp.pop %v3247
    %v3250 = vmul.f32 1.0, %v3249
    %v3251 = vrcp.pop %v3248
    %v3252 = vmul.f32 1.0, %v3251
    %v3253 = vtanh.pop %v3240
    %v3254 = vmul.f32 %v3250, %v3185
    %3256 = vrot.lane.b32.xlu0 %v3253, 64
    %v3257 = vpop.permute.xlu0 %3256
    %v3259 = vmul.f32 %v3250, %v3257
    %3261 = vrot.lane.b32.xlu0 %v3259, 64
    %v3262 = vpop.permute.xlu0 %3261
    %v3264 = vadd.f32 %v3254, %v3262
    %v3265 = vtanh.pop %v3264
    %3267 = vrot.lane.b32.xlu0 %v3265, 64
    %v3268 = vpop.permute.xlu0 %3267
    %v3270 = vmul.f32 %v3252, %v3268
    %v3271 = vpack.c.bf16 %v3270, %v3270
    %s3272 = scalar_lea.vmem [#allocation3], 6
    %3273 = vst.msk [vmem:[%s3272] sm:$0x1] %vm2798, %v3271
    %v3275 = vsel %vm1987, %v3271, 0
    %3277 = vmatprep.subr.bf16.mxu0 %v354
    %3278 = vmatpush1.bf16.msra.mxu0 %v353
    %3279 = vmatprep.subr.bf16.mxu0 %v356
    %3280 = vmatpush1.bf16.msra.mxu0 %v355
    %3281 = vmatprep.subr.bf16.mxu0 %v358
    %3282 = vmatpush1.bf16.msra.mxu0 %v357
    %3283 = vmatprep.subr.bf16.mxu0 %v360
    %3284 = vmatpush1.bf16.msra.mxu0 %v359
    %3285 = vmatprep.subr.bf16.mxu0 0
    %3286 = vmatpush1.bf16.msra.mxu0 0
    %3287 = vmatprep.subr.bf16.mxu0 0
    %3288 = vmatpush1.bf16.msra.mxu0 0
    %3289 = vmatprep.subr.bf16.mxu0 0
    %3290 = vmatpush1.bf16.msra.mxu0 0
    %3291 = vmatprep.subr.bf16.mxu0 0
    %3292 = vmatpush1.bf16.msra.mxu0 0
    %3293 = vmatprep.subr.bf16.mxu0 0
    %3294 = vmatpush1.bf16.msra.mxu0 0
    %3295 = vmatprep.subr.bf16.mxu0 0
    %3296 = vmatpush1.bf16.msra.mxu0 0
    %3297 = vmatprep.subr.bf16.mxu0 0
    %3298 = vmatpush1.bf16.msra.mxu0 0
    %3299 = vmatprep.subr.bf16.mxu0 0
    %3300 = vmatpush1.bf16.msra.mxu0 0
    %3301 = vmatprep.subr.bf16.mxu0 0
    %3302 = vmatpush1.bf16.msra.mxu0 0
    %3303 = vmatprep.subr.bf16.mxu0 0
    %3304 = vmatpush1.bf16.msra.mxu0 0
    %3305 = vmatprep.subr.bf16.mxu0 0
    %3306 = vmatpush1.bf16.msra.mxu0 0
    %3307 = vmatprep.subr.bf16.mxu0 0
    %3308 = vmatpush1.bf16.msra.mxu0 0
    %3309 = vmatprep.mubr.bf16.mxu0 0
    %3310 = vmatmul.mubr.bf16.gmra.mrb[0].mxu0 %v3275
    %v3311 = vpop.f32.mrb[0].mxu0
    %v3312 = vadd.f32 0.0, %v3311
    %v3313 = vpop.f32.mrb[0].mxu0
    %v3314 = vadd.f32 0.0, %v3313
    %v3315 = vpop.f32.mrb[0].mxu0
    %v3316 = vpop.f32.mrb[0].mxu0
    %3317 = vdwg.mxu0
    %v3318 = vadd.f32 %v2718, %v3312
    %v3319 = vadd.f32 %v2720, %v3314
    %v3320 = vxor.u32 %v3318, 2147483648
    %v3321 = vxor.u32 %v3319, 2147483648
    %v3322 = vmul.f32 %v3320, 1.442695
    %v3323 = vpow.pop %v3322
    %v3324 = vmul.f32 %v3321, 1.442695
    %v3325 = vpow.pop %v3324
    %v3326 = vadd.f32 %v3323, 1.0
    %v3327 = vadd.f32 %v3325, 1.0
    %v3328 = vrcp.pop %v3326
    %v3329 = vmul.f32 1.0, %v3328
    %v3330 = vrcp.pop %v3327
    %v3331 = vmul.f32 1.0, %v3330
    %v3332 = vtanh.pop %v3319
    %v3333 = vmul.f32 %v3329, %v3264
    %3335 = vrot.lane.b32.xlu0 %v3332, 64
    %v3336 = vpop.permute.xlu0 %3335
    %v3338 = vmul.f32 %v3329, %v3336
    %3340 = vrot.lane.b32.xlu0 %v3338, 64
    %v3341 = vpop.permute.xlu0 %3340
    %v3343 = vadd.f32 %v3333, %v3341
    %v3344 = vtanh.pop %v3343
    %3346 = vrot.lane.b32.xlu0 %v3344, 64
    %v3347 = vpop.permute.xlu0 %3346
    %v3349 = vmul.f32 %v3331, %v3347
    %v3350 = vpack.c.bf16 %v3349, %v3349
    %s3351 = scalar_lea.vmem [#allocation3], 7
    %3352 = vst.msk [vmem:[%s3351] sm:$0x1] %vm2798, %v3350
    %v3353 = vld [vmem:[#allocation3] sm:$0x1]
    %v3354 = vld [vmem:[#allocation3 + $0x1] sm:$0x1]
    %v3355 = vld [vmem:[#allocation3 + $0x2] sm:$0x1]
    %v3356 = vld [vmem:[#allocation3 + $0x3] sm:$0x1]
    %v3357 = vld [vmem:[#allocation3 + $0x4] sm:$0x1]
    %v3358 = vld [vmem:[#allocation3 + $0x5] sm:$0x1]
    %v3359 = vld [vmem:[#allocation3 + $0x6] sm:$0x1]
    %v3360 = vld [vmem:[#allocation3 + $0x7] sm:$0x1]
    %v3361 = vld [vmem:[%s12] sm:$0xf]
    %v3363 = vlaneseq
    %v3364 = vshrl.u32 %v3363, 7
    %v3365 = vsub.s32 0, %v3364
    %v3366 = vrot.slane %v3361, %v3365
    %v3367 = vlaneseq
    %v3368 = vshrl.u32 %v3367, 7
    %v3369 = vsub.s32 1, %v3368
    %v3370 = vrot.slane %v3361, %v3369
    %v3371 = vlaneseq
    %v3372 = vshrl.u32 %v3371, 7
    %v3373 = vsub.s32 2, %v3372
    %v3374 = vrot.slane %v3361, %v3373
    %v3375 = vlaneseq
    %v3376 = vshrl.u32 %v3375, 7
    %v3377 = vsub.s32 3, %v3376
    %v3378 = vrot.slane %v3361, %v3377
    %v3391 = vcombine.low %v3353, %v3354
    %v3392 = vcombine.low %v3355, %v3356
    %v3393 = vcombine.low %v3357, %v3358
    %v3394 = vcombine.low %v3359, %v3360
    %v3396 = vunpack.c.l.s4 1966171168
    %v3397 = vunpack.c.0.s8 %v3396
    %v3398 = vlaneseq
    %v3399 = vshrl.u32 %v3398, 7
    %v3400 = vsub.s32 %v3397, %v3399
    %v3401 = vrot.slane %v3391, %v3400
    %v3403 = vunpack.c.l.s4 1966171168
    %v3404 = vunpack.c.0.s8 %v3403
    %v3405 = vlaneseq
    %v3406 = vshrl.u32 %v3405, 7
    %v3407 = vsub.s32 %v3404, %v3406
    %v3408 = vrot.slane %v3392, %v3407
    %v3410 = vunpack.c.l.s4 1966171168
    %v3411 = vunpack.c.0.s8 %v3410
    %v3412 = vlaneseq
    %v3413 = vshrl.u32 %v3412, 7
    %v3414 = vsub.s32 %v3411, %v3413
    %v3415 = vrot.slane %v3393, %v3414
    %v3417 = vunpack.c.l.s4 1966171168
    %v3418 = vunpack.c.0.s8 %v3417
    %v3419 = vlaneseq
    %v3420 = vshrl.u32 %v3419, 7
    %v3421 = vsub.s32 %v3418, %v3420
    %v3422 = vrot.slane %v3394, %v3421
    %v3423 = vcombine.low %v3401, %v3408
    %v3424 = vcombine.low %v3415, %v3422
    %v3426 = vunpack.c.l.s4 1966171168
    %v3427 = vunpack.c.0.s8 %v3426
    %v3428 = vlaneseq
    %v3429 = vshrl.u32 %v3428, 7
    %v3430 = vsub.s32 %v3427, %v3429
    %v3431 = vrot.slane %v3423, %v3430
    %v3433 = vunpack.c.l.s4 1966171168
    %v3434 = vunpack.c.0.s8 %v3433
    %v3435 = vlaneseq
    %v3436 = vshrl.u32 %v3435, 7
    %v3437 = vsub.s32 %v3434, %v3436
    %v3438 = vrot.slane %v3424, %v3437
    %v3439 = vcombine.low %v3431, %v3438
    %v3441 = vsel %vm1987, %v3439, 0
    %3443 = vmatprep.subr.bf16.mxu0 %v394
    %3444 = vmatpush1.bf16.msra.mxu0 %v393
    %3445 = vmatprep.subr.bf16.mxu0 %v398
    %3446 = vmatpush1.bf16.msra.mxu0 %v397
    %3447 = vmatprep.subr.bf16.mxu0 %v402
    %3448 = vmatpush1.bf16.msra.mxu0 %v401
    %3449 = vmatprep.subr.bf16.mxu0 %v406
    %3450 = vmatpush1.bf16.msra.mxu0 %v405
    %3451 = vmatprep.subr.bf16.mxu0 0
    %3452 = vmatpush1.bf16.msra.mxu0 0
    %3453 = vmatprep.subr.bf16.mxu0 0
    %3454 = vmatpush1.bf16.msra.mxu0 0
    %3455 = vmatprep.subr.bf16.mxu0 0
    %3456 = vmatpush1.bf16.msra.mxu0 0
    %3457 = vmatprep.subr.bf16.mxu0 0
    %3458 = vmatpush1.bf16.msra.mxu0 0
    %3459 = vmatprep.subr.bf16.mxu0 0
    %3460 = vmatpush1.bf16.msra.mxu0 0
    %3461 = vmatprep.subr.bf16.mxu0 0
    %3462 = vmatpush1.bf16.msra.mxu0 0
    %3463 = vmatprep.subr.bf16.mxu0 0
    %3464 = vmatpush1.bf16.msra.mxu0 0
    %3465 = vmatprep.subr.bf16.mxu0 0
    %3466 = vmatpush1.bf16.msra.mxu0 0
    %3467 = vmatprep.subr.bf16.mxu0 0
    %3468 = vmatpush1.bf16.msra.mxu0 0
    %3469 = vmatprep.subr.bf16.mxu0 0
    %3470 = vmatpush1.bf16.msra.mxu0 0
    %3471 = vmatprep.subr.bf16.mxu0 0
    %3472 = vmatpush1.bf16.msra.mxu0 0
    %3473 = vmatprep.subr.bf16.mxu0 0
    %3474 = vmatpush1.bf16.msra.mxu0 0
    %3475 = vmatprep.mubr.bf16.mxu0 0
    %3476 = vmatmul.mubr.bf16.gmra.mrb[0].mxu0 %v3441
    %v3477 = vpop.f32.mrb[0].mxu0
    %v3478 = vadd.f32 %v3366, %v3477
    %v3479 = vpop.f32.mrb[0].mxu0
    %v3480 = vadd.f32 %v3370, %v3479
    %v3481 = vpop.f32.mrb[0].mxu0
    %v3482 = vadd.f32 %v3366, %v3481
    %v3483 = vpop.f32.mrb[0].mxu0
    %v3484 = vadd.f32 %v3370, %v3483
    %3485 = vdwg.mxu0
    %3486 = vmatprep.subr.bf16.mxu0 %v396
    %3487 = vmatpush1.bf16.msra.mxu0 %v395
    %3488 = vmatprep.subr.bf16.mxu0 %v400
    %3489 = vmatpush1.bf16.msra.mxu0 %v399
    %3490 = vmatprep.subr.bf16.mxu0 %v404
    %3491 = vmatpush1.bf16.msra.mxu0 %v403
    %3492 = vmatprep.subr.bf16.mxu0 %v408
    %3493 = vmatpush1.bf16.msra.mxu0 %v407
    %3494 = vmatprep.subr.bf16.mxu0 0
    %3495 = vmatpush1.bf16.msra.mxu0 0
    %3496 = vmatprep.subr.bf16.mxu0 0
    %3497 = vmatpush1.bf16.msra.mxu0 0
    %3498 = vmatprep.subr.bf16.mxu0 0
    %3499 = vmatpush1.bf16.msra.mxu0 0
    %3500 = vmatprep.subr.bf16.mxu0 0
    %3501 = vmatpush1.bf16.msra.mxu0 0
    %3502 = vmatprep.subr.bf16.mxu0 0
    %3503 = vmatpush1.bf16.msra.mxu0 0
    %3504 = vmatprep.subr.bf16.mxu0 0
    %3505 = vmatpush1.bf16.msra.mxu0 0
    %3506 = vmatprep.subr.bf16.mxu0 0
    %3507 = vmatpush1.bf16.msra.mxu0 0
    %3508 = vmatprep.subr.bf16.mxu0 0
    %3509 = vmatpush1.bf16.msra.mxu0 0
    %3510 = vmatprep.subr.bf16.mxu0 0
    %3511 = vmatpush1.bf16.msra.mxu0 0
    %3512 = vmatprep.subr.bf16.mxu0 0
    %3513 = vmatpush1.bf16.msra.mxu0 0
    %3514 = vmatprep.subr.bf16.mxu0 0
    %3515 = vmatpush1.bf16.msra.mxu0 0
    %3516 = vmatprep.subr.bf16.mxu0 0
    %3517 = vmatpush1.bf16.msra.mxu0 0
    %3518 = vmatprep.mubr.bf16.mxu0 0
    %3519 = vmatmul.mubr.bf16.gmra.mrb[0].mxu0 %v3441
    %v3520 = vpop.f32.mrb[0].mxu0
    %v3521 = vadd.f32 %v3374, %v3520
    %v3522 = vpop.f32.mrb[0].mxu0
    %v3523 = vadd.f32 %v3378, %v3522
    %v3524 = vpop.f32.mrb[0].mxu0
    %v3525 = vadd.f32 %v3374, %v3524
    %v3526 = vpop.f32.mrb[0].mxu0
    %v3527 = vadd.f32 %v3378, %v3526
    %3528 = vdwg.mxu0
    %v3537 = vcombine.low %v3478, %v3480
    %v3538 = vcombine.high %v3478, %v3480
    %v3539 = vcombine.low %v3521, %v3523
    %v3540 = vcombine.high %v3521, %v3523
    %v3542 = vunpack.c.l.s4 1983009808
    %v3543 = vunpack.c.0.s8 %v3542
    %v3544 = vlaneseq
    %v3545 = vshrl.u32 %v3544, 7
    %v3546 = vsub.s32 %v3543, %v3545
    %v3547 = vrot.slane %v3537, %v3546
    %v3549 = vunpack.c.l.s4 1983009808
    %v3550 = vunpack.c.0.s8 %v3549
    %v3551 = vlaneseq
    %v3552 = vshrl.u32 %v3551, 7
    %v3553 = vsub.s32 %v3550, %v3552
    %v3554 = vrot.slane %v3538, %v3553
    %v3556 = vunpack.c.l.s4 1983009808
    %v3557 = vunpack.c.0.s8 %v3556
    %v3558 = vlaneseq
    %v3559 = vshrl.u32 %v3558, 7
    %v3560 = vsub.s32 %v3557, %v3559
    %v3561 = vrot.slane %v3539, %v3560
    %v3563 = vunpack.c.l.s4 1983009808
    %v3564 = vunpack.c.0.s8 %v3563
    %v3565 = vlaneseq
    %v3566 = vshrl.u32 %v3565, 7
    %v3567 = vsub.s32 %v3564, %v3566
    %v3568 = vrot.slane %v3540, %v3567
    %v3569 = vcombine.low %v3547, %v3561
    %v3570 = vcombine.high %v3547, %v3561
    %v3571 = vcombine.low %v3554, %v3568
    %v3572 = vcombine.high %v3554, %v3568
    %v3573 = vcombine.low %v3482, %v3484
    %v3574 = vcombine.high %v3482, %v3484
    %v3575 = vcombine.low %v3525, %v3527
    %v3576 = vcombine.high %v3525, %v3527
    %v3578 = vunpack.c.l.s4 1983009808
    %v3579 = vunpack.c.0.s8 %v3578
    %v3580 = vlaneseq
    %v3581 = vshrl.u32 %v3580, 7
    %v3582 = vsub.s32 %v3579, %v3581
    %v3583 = vrot.slane %v3573, %v3582
    %v3585 = vunpack.c.l.s4 1983009808
    %v3586 = vunpack.c.0.s8 %v3585
    %v3587 = vlaneseq
    %v3588 = vshrl.u32 %v3587, 7
    %v3589 = vsub.s32 %v3586, %v3588
    %v3590 = vrot.slane %v3574, %v3589
    %v3592 = vunpack.c.l.s4 1983009808
    %v3593 = vunpack.c.0.s8 %v3592
    %v3594 = vlaneseq
    %v3595 = vshrl.u32 %v3594, 7
    %v3596 = vsub.s32 %v3593, %v3595
    %v3597 = vrot.slane %v3575, %v3596
    %v3599 = vunpack.c.l.s4 1983009808
    %v3600 = vunpack.c.0.s8 %v3599
    %v3601 = vlaneseq
    %v3602 = vshrl.u32 %v3601, 7
    %v3603 = vsub.s32 %v3600, %v3602
    %v3604 = vrot.slane %v3576, %v3603
    %v3605 = vcombine.low %v3583, %v3597
    %v3606 = vcombine.high %v3583, %v3597
    %v3607 = vcombine.low %v3590, %v3604
    %v3608 = vcombine.high %v3590, %v3604
    %3617 = vmatprep.subr.bf16.mxu0 %v474
    %3618 = vmatpush1.bf16.msra.mxu0 %v473
    %3619 = vmatprep.subr.bf16.mxu0 %v478
    %3620 = vmatpush1.bf16.msra.mxu0 %v477
    %3621 = vmatprep.subr.bf16.mxu0 %v482
    %3622 = vmatpush1.bf16.msra.mxu0 %v481
    %3623 = vmatprep.subr.bf16.mxu0 %v486
    %3624 = vmatpush1.bf16.msra.mxu0 %v485
    %3625 = vmatprep.subr.bf16.mxu0 %v490
    %3626 = vmatpush1.bf16.msra.mxu0 %v489
    %3627 = vmatprep.subr.bf16.mxu0 %v494
    %3628 = vmatpush1.bf16.msra.mxu0 %v493
    %3629 = vmatprep.subr.bf16.mxu0 %v498
    %3630 = vmatpush1.bf16.msra.mxu0 %v497
    %3631 = vmatprep.subr.bf16.mxu0 %v502
    %3632 = vmatpush1.bf16.msra.mxu0 %v501
    %3633 = vmatprep.subr.bf16.mxu0 0
    %3634 = vmatpush1.bf16.msra.mxu0 0
    %3635 = vmatprep.subr.bf16.mxu0 0
    %3636 = vmatpush1.bf16.msra.mxu0 0
    %3637 = vmatprep.subr.bf16.mxu0 0
    %3638 = vmatpush1.bf16.msra.mxu0 0
    %3639 = vmatprep.subr.bf16.mxu0 0
    %3640 = vmatpush1.bf16.msra.mxu0 0
    %3641 = vmatprep.subr.bf16.mxu0 0
    %3642 = vmatpush1.bf16.msra.mxu0 0
    %3643 = vmatprep.subr.bf16.mxu0 0
    %3644 = vmatpush1.bf16.msra.mxu0 0
    %3645 = vmatprep.subr.bf16.mxu0 0
    %3646 = vmatpush1.bf16.msra.mxu0 0
    %3647 = vmatprep.subr.bf16.mxu0 0
    %3648 = vmatpush1.bf16.msra.mxu0 0
    %3649 = vmatprep.mubr.bf16.mxu0 0
    %3650 = vmatmul.mubr.bf16.gmra.mrb[0].mxu0 0
    %v3651 = vpop.f32.mrb[0].mxu0
    %v3652 = vadd.f32 0.0, %v3651
    %v3653 = vpop.f32.mrb[0].mxu0
    %v3654 = vadd.f32 0.0, %v3653
    %v3655 = vpop.f32.mrb[0].mxu0
    %v3656 = vpop.f32.mrb[0].mxu0
    %3657 = vdwg.mxu0
    %3658 = vmatprep.subr.bf16.mxu0 %v476
    %3659 = vmatpush1.bf16.msra.mxu0 %v475
    %3660 = vmatprep.subr.bf16.mxu0 %v480
    %3661 = vmatpush1.bf16.msra.mxu0 %v479
    %3662 = vmatprep.subr.bf16.mxu0 %v484
    %3663 = vmatpush1.bf16.msra.mxu0 %v483
    %3664 = vmatprep.subr.bf16.mxu0 %v488
    %3665 = vmatpush1.bf16.msra.mxu0 %v487
    %3666 = vmatprep.subr.bf16.mxu0 %v492
    %3667 = vmatpush1.bf16.msra.mxu0 %v491
    %3668 = vmatprep.subr.bf16.mxu0 %v496
    %3669 = vmatpush1.bf16.msra.mxu0 %v495
    %3670 = vmatprep.subr.bf16.mxu0 %v500
    %3671 = vmatpush1.bf16.msra.mxu0 %v499
    %3672 = vmatprep.subr.bf16.mxu0 %v504
    %3673 = vmatpush1.bf16.msra.mxu0 %v503
    %3674 = vmatprep.subr.bf16.mxu0 0
    %3675 = vmatpush1.bf16.msra.mxu0 0
    %3676 = vmatprep.subr.bf16.mxu0 0
    %3677 = vmatpush1.bf16.msra.mxu0 0
    %3678 = vmatprep.subr.bf16.mxu0 0
    %3679 = vmatpush1.bf16.msra.mxu0 0
    %3680 = vmatprep.subr.bf16.mxu0 0
    %3681 = vmatpush1.bf16.msra.mxu0 0
    %3682 = vmatprep.subr.bf16.mxu0 0
    %3683 = vmatpush1.bf16.msra.mxu0 0
    %3684 = vmatprep.subr.bf16.mxu0 0
    %3685 = vmatpush1.bf16.msra.mxu0 0
    %3686 = vmatprep.subr.bf16.mxu0 0
    %3687 = vmatpush1.bf16.msra.mxu0 0
    %3688 = vmatprep.subr.bf16.mxu0 0
    %3689 = vmatpush1.bf16.msra.mxu0 0
    %3690 = vmatprep.mubr.bf16.mxu0 0
    %3691 = vmatmul.mubr.bf16.gmra.mrb[0].mxu0 0
    %v3692 = vpop.f32.mrb[0].mxu0
    %v3693 = vadd.f32 0.0, %v3692
    %v3694 = vpop.f32.mrb[0].mxu0
    %v3695 = vadd.f32 0.0, %v3694
    %v3696 = vpop.f32.mrb[0].mxu0
    %v3697 = vpop.f32.mrb[0].mxu0
    %3698 = vdwg.mxu0
    %v3703 = vcombine.low %v3652, %v3654
    %v3704 = vcombine.low %v3693, %v3695
    %v3706 = vunpack.c.l.s4 1983009808
    %v3707 = vunpack.c.0.s8 %v3706
    %v3708 = vlaneseq
    %v3709 = vshrl.u32 %v3708, 7
    %v3710 = vsub.s32 %v3707, %v3709
    %v3711 = vrot.slane %v3703, %v3710
    %v3713 = vunpack.c.l.s4 1983009808
    %v3714 = vunpack.c.0.s8 %v3713
    %v3715 = vlaneseq
    %v3716 = vshrl.u32 %v3715, 7
    %v3717 = vsub.s32 %v3714, %v3716
    %v3718 = vrot.slane %v3704, %v3717
    %v3719 = vcombine.low %v3711, %v3718
    %v3721 = vadd.f32 %v3569, %v3719
    %v3722 = vxor.u32 %v3721, 2147483648
    %v3723 = vmul.f32 %v3722, 1.442695
    %v3724 = vpow.pop %v3723
    %v3725 = vadd.f32 %v3724, 1.0
    %v3726 = vrcp.pop %v3725
    %v3727 = vmul.f32 1.0, %v3726
    %v3729 = vrot.slane %v3721, 6
    %v3731 = vtanh.pop %v3729
    %v3733 = vrot.slane %v3727, 2
    %v3735 = vmul.f32 %v3733, 0.0
    %v3736 = vmul.f32 %v3727, %v3731
    %v3737 = vadd.f32 %v3735, %v3736
    %v3738 = vtanh.pop %v3737
    %v3739 = vrot.slane %v3727, 4
    %v3741 = vmul.f32 %v3739, %v3738
    %v3742 = vpack.c.bf16 %v3741, %v3741
    %3743 = vst [vmem:[#allocation4] sm:$0x1] %v3742
    %3744 = vmatprep.subr.bf16.mxu0 %v474
    %3745 = vmatpush1.bf16.msra.mxu0 %v473
    %3746 = vmatprep.subr.bf16.mxu0 %v478
    %3747 = vmatpush1.bf16.msra.mxu0 %v477
    %3748 = vmatprep.subr.bf16.mxu0 %v482
    %3749 = vmatpush1.bf16.msra.mxu0 %v481
    %3750 = vmatprep.subr.bf16.mxu0 %v486
    %3751 = vmatpush1.bf16.msra.mxu0 %v485
    %3752 = vmatprep.subr.bf16.mxu0 %v490
    %3753 = vmatpush1.bf16.msra.mxu0 %v489
    %3754 = vmatprep.subr.bf16.mxu0 %v494
    %3755 = vmatpush1.bf16.msra.mxu0 %v493
    %3756 = vmatprep.subr.bf16.mxu0 %v498
    %3757 = vmatpush1.bf16.msra.mxu0 %v497
    %3758 = vmatprep.subr.bf16.mxu0 %v502
    %3759 = vmatpush1.bf16.msra.mxu0 %v501
    %3760 = vmatprep.subr.bf16.mxu0 0
    %3761 = vmatpush1.bf16.msra.mxu0 0
    %3762 = vmatprep.subr.bf16.mxu0 0
    %3763 = vmatpush1.bf16.msra.mxu0 0
    %3764 = vmatprep.subr.bf16.mxu0 0
    %3765 = vmatpush1.bf16.msra.mxu0 0
    %3766 = vmatprep.subr.bf16.mxu0 0
    %3767 = vmatpush1.bf16.msra.mxu0 0
    %3768 = vmatprep.subr.bf16.mxu0 0
    %3769 = vmatpush1.bf16.msra.mxu0 0
    %3770 = vmatprep.subr.bf16.mxu0 0
    %3771 = vmatpush1.bf16.msra.mxu0 0
    %3772 = vmatprep.subr.bf16.mxu0 0
    %3773 = vmatpush1.bf16.msra.mxu0 0
    %3774 = vmatprep.subr.bf16.mxu0 0
    %3775 = vmatpush1.bf16.msra.mxu0 0
    %3776 = vmatprep.mubr.bf16.mxu0 0
    %3777 = vmatmul.mubr.bf16.gmra.mrb[0].mxu0 %v3742
    %v3778 = vpop.f32.mrb[0].mxu0
    %v3779 = vadd.f32 0.0, %v3778
    %v3780 = vpop.f32.mrb[0].mxu0
    %v3781 = vadd.f32 0.0, %v3780
    %v3782 = vpop.f32.mrb[0].mxu0
    %v3783 = vpop.f32.mrb[0].mxu0
    %3784 = vdwg.mxu0
    %3785 = vmatprep.subr.bf16.mxu0 %v476
    %3786 = vmatpush1.bf16.msra.mxu0 %v475
    %3787 = vmatprep.subr.bf16.mxu0 %v480
    %3788 = vmatpush1.bf16.msra.mxu0 %v479
    %3789 = vmatprep.subr.bf16.mxu0 %v484
    %3790 = vmatpush1.bf16.msra.mxu0 %v483
    %3791 = vmatprep.subr.bf16.mxu0 %v488
    %3792 = vmatpush1.bf16.msra.mxu0 %v487
    %3793 = vmatprep.subr.bf16.mxu0 %v492
    %3794 = vmatpush1.bf16.msra.mxu0 %v491
    %3795 = vmatprep.subr.bf16.mxu0 %v496
    %3796 = vmatpush1.bf16.msra.mxu0 %v495
    %3797 = vmatprep.subr.bf16.mxu0 %v500
    %3798 = vmatpush1.bf16.msra.mxu0 %v499
    %3799 = vmatprep.subr.bf16.mxu0 %v504
    %3800 = vmatpush1.bf16.msra.mxu0 %v503
    %3801 = vmatprep.subr.bf16.mxu0 0
    %3802 = vmatpush1.bf16.msra.mxu0 0
    %3803 = vmatprep.subr.bf16.mxu0 0
    %3804 = vmatpush1.bf16.msra.mxu0 0
    %3805 = vmatprep.subr.bf16.mxu0 0
    %3806 = vmatpush1.bf16.msra.mxu0 0
    %3807 = vmatprep.subr.bf16.mxu0 0
    %3808 = vmatpush1.bf16.msra.mxu0 0
    %3809 = vmatprep.subr.bf16.mxu0 0
    %3810 = vmatpush1.bf16.msra.mxu0 0
    %3811 = vmatprep.subr.bf16.mxu0 0
    %3812 = vmatpush1.bf16.msra.mxu0 0
    %3813 = vmatprep.subr.bf16.mxu0 0
    %3814 = vmatpush1.bf16.msra.mxu0 0
    %3815 = vmatprep.subr.bf16.mxu0 0
    %3816 = vmatpush1.bf16.msra.mxu0 0
    %3817 = vmatprep.mubr.bf16.mxu0 0
    %3818 = vmatmul.mubr.bf16.gmra.mrb[0].mxu0 %v3742
    %v3819 = vpop.f32.mrb[0].mxu0
    %v3820 = vadd.f32 0.0, %v3819
    %v3821 = vpop.f32.mrb[0].mxu0
    %v3822 = vadd.f32 0.0, %v3821
    %v3823 = vpop.f32.mrb[0].mxu0
    %v3824 = vpop.f32.mrb[0].mxu0
    %3825 = vdwg.mxu0
    %v3830 = vcombine.low %v3779, %v3781
    %v3831 = vcombine.low %v3820, %v3822
    %v3833 = vunpack.c.l.s4 1983009808
    %v3834 = vunpack.c.0.s8 %v3833
    %v3835 = vlaneseq
    %v3836 = vshrl.u32 %v3835, 7
    %v3837 = vsub.s32 %v3834, %v3836
    %v3838 = vrot.slane %v3830, %v3837
    %v3840 = vunpack.c.l.s4 1983009808
    %v3841 = vunpack.c.0.s8 %v3840
    %v3842 = vlaneseq
    %v3843 = vshrl.u32 %v3842, 7
    %v3844 = vsub.s32 %v3841, %v3843
    %v3845 = vrot.slane %v3831, %v3844
    %v3846 = vcombine.low %v3838, %v3845
    %v3848 = vadd.f32 %v3570, %v3846
    %v3849 = vxor.u32 %v3848, 2147483648
    %v3850 = vmul.f32 %v3849, 1.442695
    %v3851 = vpow.pop %v3850
    %v3852 = vadd.f32 %v3851, 1.0
    %v3853 = vrcp.pop %v3852
    %v3854 = vmul.f32 1.0, %v3853
    %v3856 = vrot.slane %v3848, 6
    %v3858 = vtanh.pop %v3856
    %v3860 = vrot.slane %v3854, 2
    %v3862 = vmul.f32 %v3860, %v3737
    %v3863 = vmul.f32 %v3854, %v3858
    %v3864 = vadd.f32 %v3862, %v3863
    %v3865 = vtanh.pop %v3864
    %v3866 = vrot.slane %v3854, 4
    %v3868 = vmul.f32 %v3866, %v3865
    %v3869 = vpack.c.bf16 %v3868, %v3868
    %s3870 = scalar_lea.vmem [#allocation4], 1
    %3871 = vst [vmem:[%s3870] sm:$0x1] %v3869
    %3872 = vmatprep.subr.bf16.mxu0 %v474
    %3873 = vmatpush1.bf16.msra.mxu0 %v473
    %3874 = vmatprep.subr.bf16.mxu0 %v478
    %3875 = vmatpush1.bf16.msra.mxu0 %v477
    %3876 = vmatprep.subr.bf16.mxu0 %v482
    %3877 = vmatpush1.bf16.msra.mxu0 %v481
    %3878 = vmatprep.subr.bf16.mxu0 %v486
    %3879 = vmatpush1.bf16.msra.mxu0 %v485
    %3880 = vmatprep.subr.bf16.mxu0 %v490
    %3881 = vmatpush1.bf16.msra.mxu0 %v489
    %3882 = vmatprep.subr.bf16.mxu0 %v494
    %3883 = vmatpush1.bf16.msra.mxu0 %v493
    %3884 = vmatprep.subr.bf16.mxu0 %v498
    %3885 = vmatpush1.bf16.msra.mxu0 %v497
    %3886 = vmatprep.subr.bf16.mxu0 %v502
    %3887 = vmatpush1.bf16.msra.mxu0 %v501
    %3888 = vmatprep.subr.bf16.mxu0 0
    %3889 = vmatpush1.bf16.msra.mxu0 0
    %3890 = vmatprep.subr.bf16.mxu0 0
    %3891 = vmatpush1.bf16.msra.mxu0 0
    %3892 = vmatprep.subr.bf16.mxu0 0
    %3893 = vmatpush1.bf16.msra.mxu0 0
    %3894 = vmatprep.subr.bf16.mxu0 0
    %3895 = vmatpush1.bf16.msra.mxu0 0
    %3896 = vmatprep.subr.bf16.mxu0 0
    %3897 = vmatpush1.bf16.msra.mxu0 0
    %3898 = vmatprep.subr.bf16.mxu0 0
    %3899 = vmatpush1.bf16.msra.mxu0 0
    %3900 = vmatprep.subr.bf16.mxu0 0
    %3901 = vmatpush1.bf16.msra.mxu0 0
    %3902 = vmatprep.subr.bf16.mxu0 0
    %3903 = vmatpush1.bf16.msra.mxu0 0
    %3904 = vmatprep.mubr.bf16.mxu0 0
    %3905 = vmatmul.mubr.bf16.gmra.mrb[0].mxu0 %v3869
    %v3906 = vpop.f32.mrb[0].mxu0
    %v3907 = vadd.f32 0.0, %v3906
    %v3908 = vpop.f32.mrb[0].mxu0
    %v3909 = vadd.f32 0.0, %v3908
    %v3910 = vpop.f32.mrb[0].mxu0
    %v3911 = vpop.f32.mrb[0].mxu0
    %3912 = vdwg.mxu0
    %3913 = vmatprep.subr.bf16.mxu0 %v476
    %3914 = vmatpush1.bf16.msra.mxu0 %v475
    %3915 = vmatprep.subr.bf16.mxu0 %v480
    %3916 = vmatpush1.bf16.msra.mxu0 %v479
    %3917 = vmatprep.subr.bf16.mxu0 %v484
    %3918 = vmatpush1.bf16.msra.mxu0 %v483
    %3919 = vmatprep.subr.bf16.mxu0 %v488
    %3920 = vmatpush1.bf16.msra.mxu0 %v487
    %3921 = vmatprep.subr.bf16.mxu0 %v492
    %3922 = vmatpush1.bf16.msra.mxu0 %v491
    %3923 = vmatprep.subr.bf16.mxu0 %v496
    %3924 = vmatpush1.bf16.msra.mxu0 %v495
    %3925 = vmatprep.subr.bf16.mxu0 %v500
    %3926 = vmatpush1.bf16.msra.mxu0 %v499
    %3927 = vmatprep.subr.bf16.mxu0 %v504
    %3928 = vmatpush1.bf16.msra.mxu0 %v503
    %3929 = vmatprep.subr.bf16.mxu0 0
    %3930 = vmatpush1.bf16.msra.mxu0 0
    %3931 = vmatprep.subr.bf16.mxu0 0
    %3932 = vmatpush1.bf16.msra.mxu0 0
    %3933 = vmatprep.subr.bf16.mxu0 0
    %3934 = vmatpush1.bf16.msra.mxu0 0
    %3935 = vmatprep.subr.bf16.mxu0 0
    %3936 = vmatpush1.bf16.msra.mxu0 0
    %3937 = vmatprep.subr.bf16.mxu0 0
    %3938 = vmatpush1.bf16.msra.mxu0 0
    %3939 = vmatprep.subr.bf16.mxu0 0
    %3940 = vmatpush1.bf16.msra.mxu0 0
    %3941 = vmatprep.subr.bf16.mxu0 0
    %3942 = vmatpush1.bf16.msra.mxu0 0
    %3943 = vmatprep.subr.bf16.mxu0 0
    %3944 = vmatpush1.bf16.msra.mxu0 0
    %3945 = vmatprep.mubr.bf16.mxu0 0
    %3946 = vmatmul.mubr.bf16.gmra.mrb[0].mxu0 %v3869
    %v3947 = vpop.f32.mrb[0].mxu0
    %v3948 = vadd.f32 0.0, %v3947
    %v3949 = vpop.f32.mrb[0].mxu0
    %v3950 = vadd.f32 0.0, %v3949
    %v3951 = vpop.f32.mrb[0].mxu0
    %v3952 = vpop.f32.mrb[0].mxu0
    %3953 = vdwg.mxu0
    %v3958 = vcombine.low %v3907, %v3909
    %v3959 = vcombine.low %v3948, %v3950
    %v3961 = vunpack.c.l.s4 1983009808
    %v3962 = vunpack.c.0.s8 %v3961
    %v3963 = vlaneseq
    %v3964 = vshrl.u32 %v3963, 7
    %v3965 = vsub.s32 %v3962, %v3964
    %v3966 = vrot.slane %v3958, %v3965
    %v3968 = vunpack.c.l.s4 1983009808
    %v3969 = vunpack.c.0.s8 %v3968
    %v3970 = vlaneseq
    %v3971 = vshrl.u32 %v3970, 7
    %v3972 = vsub.s32 %v3969, %v3971
    %v3973 = vrot.slane %v3959, %v3972
    %v3974 = vcombine.low %v3966, %v3973
    %v3976 = vadd.f32 %v3571, %v3974
    %v3977 = vxor.u32 %v3976, 2147483648
    %v3978 = vmul.f32 %v3977, 1.442695
    %v3979 = vpow.pop %v3978
    %v3980 = vadd.f32 %v3979, 1.0
    %v3981 = vrcp.pop %v3980
    %v3982 = vmul.f32 1.0, %v3981
    %v3984 = vrot.slane %v3976, 6
    %v3986 = vtanh.pop %v3984
    %v3988 = vrot.slane %v3982, 2
    %v3990 = vmul.f32 %v3988, %v3864
    %v3991 = vmul.f32 %v3982, %v3986
    %v3992 = vadd.f32 %v3990, %v3991
    %v3993 = vtanh.pop %v3992
    %v3994 = vrot.slane %v3982, 4
    %v3996 = vmul.f32 %v3994, %v3993
    %v3997 = vpack.c.bf16 %v3996, %v3996
    %s3998 = scalar_lea.vmem [#allocation4], 2
    %3999 = vst [vmem:[%s3998] sm:$0x1] %v3997
    %4000 = vmatprep.subr.bf16.mxu0 %v474
    %4001 = vmatpush1.bf16.msra.mxu0 %v473
    %4002 = vmatprep.subr.bf16.mxu0 %v478
    %4003 = vmatpush1.bf16.msra.mxu0 %v477
    %4004 = vmatprep.subr.bf16.mxu0 %v482
    %4005 = vmatpush1.bf16.msra.mxu0 %v481
    %4006 = vmatprep.subr.bf16.mxu0 %v486
    %4007 = vmatpush1.bf16.msra.mxu0 %v485
    %4008 = vmatprep.subr.bf16.mxu0 %v490
    %4009 = vmatpush1.bf16.msra.mxu0 %v489
    %4010 = vmatprep.subr.bf16.mxu0 %v494
    %4011 = vmatpush1.bf16.msra.mxu0 %v493
    %4012 = vmatprep.subr.bf16.mxu0 %v498
    %4013 = vmatpush1.bf16.msra.mxu0 %v497
    %4014 = vmatprep.subr.bf16.mxu0 %v502
    %4015 = vmatpush1.bf16.msra.mxu0 %v501
    %4016 = vmatprep.subr.bf16.mxu0 0
    %4017 = vmatpush1.bf16.msra.mxu0 0
    %4018 = vmatprep.subr.bf16.mxu0 0
    %4019 = vmatpush1.bf16.msra.mxu0 0
    %4020 = vmatprep.subr.bf16.mxu0 0
    %4021 = vmatpush1.bf16.msra.mxu0 0
    %4022 = vmatprep.subr.bf16.mxu0 0
    %4023 = vmatpush1.bf16.msra.mxu0 0
    %4024 = vmatprep.subr.bf16.mxu0 0
    %4025 = vmatpush1.bf16.msra.mxu0 0
    %4026 = vmatprep.subr.bf16.mxu0 0
    %4027 = vmatpush1.bf16.msra.mxu0 0
    %4028 = vmatprep.subr.bf16.mxu0 0
    %4029 = vmatpush1.bf16.msra.mxu0 0
    %4030 = vmatprep.subr.bf16.mxu0 0
    %4031 = vmatpush1.bf16.msra.mxu0 0
    %4032 = vmatprep.mubr.bf16.mxu0 0
    %4033 = vmatmul.mubr.bf16.gmra.mrb[0].mxu0 %v3997
    %v4034 = vpop.f32.mrb[0].mxu0
    %v4035 = vadd.f32 0.0, %v4034
    %v4036 = vpop.f32.mrb[0].mxu0
    %v4037 = vadd.f32 0.0, %v4036
    %v4038 = vpop.f32.mrb[0].mxu0
    %v4039 = vpop.f32.mrb[0].mxu0
    %4040 = vdwg.mxu0
    %4041 = vmatprep.subr.bf16.mxu0 %v476
    %4042 = vmatpush1.bf16.msra.mxu0 %v475
    %4043 = vmatprep.subr.bf16.mxu0 %v480
    %4044 = vmatpush1.bf16.msra.mxu0 %v479
    %4045 = vmatprep.subr.bf16.mxu0 %v484
    %4046 = vmatpush1.bf16.msra.mxu0 %v483
    %4047 = vmatprep.subr.bf16.mxu0 %v488
    %4048 = vmatpush1.bf16.msra.mxu0 %v487
    %4049 = vmatprep.subr.bf16.mxu0 %v492
    %4050 = vmatpush1.bf16.msra.mxu0 %v491
    %4051 = vmatprep.subr.bf16.mxu0 %v496
    %4052 = vmatpush1.bf16.msra.mxu0 %v495
    %4053 = vmatprep.subr.bf16.mxu0 %v500
    %4054 = vmatpush1.bf16.msra.mxu0 %v499
    %4055 = vmatprep.subr.bf16.mxu0 %v504
    %4056 = vmatpush1.bf16.msra.mxu0 %v503
    %4057 = vmatprep.subr.bf16.mxu0 0
    %4058 = vmatpush1.bf16.msra.mxu0 0
    %4059 = vmatprep.subr.bf16.mxu0 0
    %4060 = vmatpush1.bf16.msra.mxu0 0
    %4061 = vmatprep.subr.bf16.mxu0 0
    %4062 = vmatpush1.bf16.msra.mxu0 0
    %4063 = vmatprep.subr.bf16.mxu0 0
    %4064 = vmatpush1.bf16.msra.mxu0 0
    %4065 = vmatprep.subr.bf16.mxu0 0
    %4066 = vmatpush1.bf16.msra.mxu0 0
    %4067 = vmatprep.subr.bf16.mxu0 0
    %4068 = vmatpush1.bf16.msra.mxu0 0
    %4069 = vmatprep.subr.bf16.mxu0 0
    %4070 = vmatpush1.bf16.msra.mxu0 0
    %4071 = vmatprep.subr.bf16.mxu0 0
    %4072 = vmatpush1.bf16.msra.mxu0 0
    %4073 = vmatprep.mubr.bf16.mxu0 0
    %4074 = vmatmul.mubr.bf16.gmra.mrb[0].mxu0 %v3997
    %v4075 = vpop.f32.mrb[0].mxu0
    %v4076 = vadd.f32 0.0, %v4075
    %v4077 = vpop.f32.mrb[0].mxu0
    %v4078 = vadd.f32 0.0, %v4077
    %v4079 = vpop.f32.mrb[0].mxu0
    %v4080 = vpop.f32.mrb[0].mxu0
    %4081 = vdwg.mxu0
    %v4086 = vcombine.low %v4035, %v4037
    %v4087 = vcombine.low %v4076, %v4078
    %v4089 = vunpack.c.l.s4 1983009808
    %v4090 = vunpack.c.0.s8 %v4089
    %v4091 = vlaneseq
    %v4092 = vshrl.u32 %v4091, 7
    %v4093 = vsub.s32 %v4090, %v4092
    %v4094 = vrot.slane %v4086, %v4093
    %v4096 = vunpack.c.l.s4 1983009808
    %v4097 = vunpack.c.0.s8 %v4096
    %v4098 = vlaneseq
    %v4099 = vshrl.u32 %v4098, 7
    %v4100 = vsub.s32 %v4097, %v4099
    %v4101 = vrot.slane %v4087, %v4100
    %v4102 = vcombine.low %v4094, %v4101
    %v4104 = vadd.f32 %v3572, %v4102
    %v4105 = vxor.u32 %v4104, 2147483648
    %v4106 = vmul.f32 %v4105, 1.442695
    %v4107 = vpow.pop %v4106
    %v4108 = vadd.f32 %v4107, 1.0
    %v4109 = vrcp.pop %v4108
    %v4110 = vmul.f32 1.0, %v4109
    %v4112 = vrot.slane %v4104, 6
    %v4114 = vtanh.pop %v4112
    %v4116 = vrot.slane %v4110, 2
    %v4118 = vmul.f32 %v4116, %v3992
    %v4119 = vmul.f32 %v4110, %v4114
    %v4120 = vadd.f32 %v4118, %v4119
    %v4121 = vtanh.pop %v4120
    %v4122 = vrot.slane %v4110, 4
    %v4124 = vmul.f32 %v4122, %v4121
    %v4125 = vpack.c.bf16 %v4124, %v4124
    %s4126 = scalar_lea.vmem [#allocation4], 3
    %4127 = vst [vmem:[%s4126] sm:$0x1] %v4125
    %4128 = vmatprep.subr.bf16.mxu0 %v474
    %4129 = vmatpush1.bf16.msra.mxu0 %v473
    %4130 = vmatprep.subr.bf16.mxu0 %v478
    %4131 = vmatpush1.bf16.msra.mxu0 %v477
    %4132 = vmatprep.subr.bf16.mxu0 %v482
    %4133 = vmatpush1.bf16.msra.mxu0 %v481
    %4134 = vmatprep.subr.bf16.mxu0 %v486
    %4135 = vmatpush1.bf16.msra.mxu0 %v485
    %4136 = vmatprep.subr.bf16.mxu0 %v490
    %4137 = vmatpush1.bf16.msra.mxu0 %v489
    %4138 = vmatprep.subr.bf16.mxu0 %v494
    %4139 = vmatpush1.bf16.msra.mxu0 %v493
    %4140 = vmatprep.subr.bf16.mxu0 %v498
    %4141 = vmatpush1.bf16.msra.mxu0 %v497
    %4142 = vmatprep.subr.bf16.mxu0 %v502
    %4143 = vmatpush1.bf16.msra.mxu0 %v501
    %4144 = vmatprep.subr.bf16.mxu0 0
    %4145 = vmatpush1.bf16.msra.mxu0 0
    %4146 = vmatprep.subr.bf16.mxu0 0
    %4147 = vmatpush1.bf16.msra.mxu0 0
    %4148 = vmatprep.subr.bf16.mxu0 0
    %4149 = vmatpush1.bf16.msra.mxu0 0
    %4150 = vmatprep.subr.bf16.mxu0 0
    %4151 = vmatpush1.bf16.msra.mxu0 0
    %4152 = vmatprep.subr.bf16.mxu0 0
    %4153 = vmatpush1.bf16.msra.mxu0 0
    %4154 = vmatprep.subr.bf16.mxu0 0
    %4155 = vmatpush1.bf16.msra.mxu0 0
    %4156 = vmatprep.subr.bf16.mxu0 0
    %4157 = vmatpush1.bf16.msra.mxu0 0
    %4158 = vmatprep.subr.bf16.mxu0 0
    %4159 = vmatpush1.bf16.msra.mxu0 0
    %4160 = vmatprep.mubr.bf16.mxu0 0
    %4161 = vmatmul.mubr.bf16.gmra.mrb[0].mxu0 %v4125
    %v4162 = vpop.f32.mrb[0].mxu0
    %v4163 = vadd.f32 0.0, %v4162
    %v4164 = vpop.f32.mrb[0].mxu0
    %v4165 = vadd.f32 0.0, %v4164
    %v4166 = vpop.f32.mrb[0].mxu0
    %v4167 = vpop.f32.mrb[0].mxu0
    %4168 = vdwg.mxu0
    %4169 = vmatprep.subr.bf16.mxu0 %v476
    %4170 = vmatpush1.bf16.msra.mxu0 %v475
    %4171 = vmatprep.subr.bf16.mxu0 %v480
    %4172 = vmatpush1.bf16.msra.mxu0 %v479
    %4173 = vmatprep.subr.bf16.mxu0 %v484
    %4174 = vmatpush1.bf16.msra.mxu0 %v483
    %4175 = vmatprep.subr.bf16.mxu0 %v488
    %4176 = vmatpush1.bf16.msra.mxu0 %v487
    %4177 = vmatprep.subr.bf16.mxu0 %v492
    %4178 = vmatpush1.bf16.msra.mxu0 %v491
    %4179 = vmatprep.subr.bf16.mxu0 %v496
    %4180 = vmatpush1.bf16.msra.mxu0 %v495
    %4181 = vmatprep.subr.bf16.mxu0 %v500
    %4182 = vmatpush1.bf16.msra.mxu0 %v499
    %4183 = vmatprep.subr.bf16.mxu0 %v504
    %4184 = vmatpush1.bf16.msra.mxu0 %v503
    %4185 = vmatprep.subr.bf16.mxu0 0
    %4186 = vmatpush1.bf16.msra.mxu0 0
    %4187 = vmatprep.subr.bf16.mxu0 0
    %4188 = vmatpush1.bf16.msra.mxu0 0
    %4189 = vmatprep.subr.bf16.mxu0 0
    %4190 = vmatpush1.bf16.msra.mxu0 0
    %4191 = vmatprep.subr.bf16.mxu0 0
    %4192 = vmatpush1.bf16.msra.mxu0 0
    %4193 = vmatprep.subr.bf16.mxu0 0
    %4194 = vmatpush1.bf16.msra.mxu0 0
    %4195 = vmatprep.subr.bf16.mxu0 0
    %4196 = vmatpush1.bf16.msra.mxu0 0
    %4197 = vmatprep.subr.bf16.mxu0 0
    %4198 = vmatpush1.bf16.msra.mxu0 0
    %4199 = vmatprep.subr.bf16.mxu0 0
    %4200 = vmatpush1.bf16.msra.mxu0 0
    %4201 = vmatprep.mubr.bf16.mxu0 0
    %4202 = vmatmul.mubr.bf16.gmra.mrb[0].mxu0 %v4125
    %v4203 = vpop.f32.mrb[0].mxu0
    %v4204 = vadd.f32 0.0, %v4203
    %v4205 = vpop.f32.mrb[0].mxu0
    %v4206 = vadd.f32 0.0, %v4205
    %v4207 = vpop.f32.mrb[0].mxu0
    %v4208 = vpop.f32.mrb[0].mxu0
    %4209 = vdwg.mxu0
    %v4214 = vcombine.low %v4163, %v4165
    %v4215 = vcombine.low %v4204, %v4206
    %v4217 = vunpack.c.l.s4 1983009808
    %v4218 = vunpack.c.0.s8 %v4217
    %v4219 = vlaneseq
    %v4220 = vshrl.u32 %v4219, 7
    %v4221 = vsub.s32 %v4218, %v4220
    %v4222 = vrot.slane %v4214, %v4221
    %v4224 = vunpack.c.l.s4 1983009808
    %v4225 = vunpack.c.0.s8 %v4224
    %v4226 = vlaneseq
    %v4227 = vshrl.u32 %v4226, 7
    %v4228 = vsub.s32 %v4225, %v4227
    %v4229 = vrot.slane %v4215, %v4228
    %v4230 = vcombine.low %v4222, %v4229
    %v4232 = vadd.f32 %v3605, %v4230
    %v4233 = vxor.u32 %v4232, 2147483648
    %v4234 = vmul.f32 %v4233, 1.442695
    %v4235 = vpow.pop %v4234
    %v4236 = vadd.f32 %v4235, 1.0
    %v4237 = vrcp.pop %v4236
    %v4238 = vmul.f32 1.0, %v4237
    %v4240 = vrot.slane %v4232, 6
    %v4242 = vtanh.pop %v4240
    %v4244 = vrot.slane %v4238, 2
    %v4246 = vmul.f32 %v4244, %v4120
    %v4247 = vmul.f32 %v4238, %v4242
    %v4248 = vadd.f32 %v4246, %v4247
    %v4249 = vtanh.pop %v4248
    %v4250 = vrot.slane %v4238, 4
    %v4252 = vmul.f32 %v4250, %v4249
    %v4253 = vpack.c.bf16 %v4252, %v4252
    %s4254 = scalar_lea.vmem [#allocation4], 4
    %4255 = vst [vmem:[%s4254] sm:$0x1] %v4253
    %4256 = vmatprep.subr.bf16.mxu0 %v474
    %4257 = vmatpush1.bf16.msra.mxu0 %v473
    %4258 = vmatprep.subr.bf16.mxu0 %v478
    %4259 = vmatpush1.bf16.msra.mxu0 %v477
    %4260 = vmatprep.subr.bf16.mxu0 %v482
    %4261 = vmatpush1.bf16.msra.mxu0 %v481
    %4262 = vmatprep.subr.bf16.mxu0 %v486
    %4263 = vmatpush1.bf16.msra.mxu0 %v485
    %4264 = vmatprep.subr.bf16.mxu0 %v490
    %4265 = vmatpush1.bf16.msra.mxu0 %v489
    %4266 = vmatprep.subr.bf16.mxu0 %v494
    %4267 = vmatpush1.bf16.msra.mxu0 %v493
    %4268 = vmatprep.subr.bf16.mxu0 %v498
    %4269 = vmatpush1.bf16.msra.mxu0 %v497
    %4270 = vmatprep.subr.bf16.mxu0 %v502
    %4271 = vmatpush1.bf16.msra.mxu0 %v501
    %4272 = vmatprep.subr.bf16.mxu0 0
    %4273 = vmatpush1.bf16.msra.mxu0 0
    %4274 = vmatprep.subr.bf16.mxu0 0
    %4275 = vmatpush1.bf16.msra.mxu0 0
    %4276 = vmatprep.subr.bf16.mxu0 0
    %4277 = vmatpush1.bf16.msra.mxu0 0
    %4278 = vmatprep.subr.bf16.mxu0 0
    %4279 = vmatpush1.bf16.msra.mxu0 0
    %4280 = vmatprep.subr.bf16.mxu0 0
    %4281 = vmatpush1.bf16.msra.mxu0 0
    %4282 = vmatprep.subr.bf16.mxu0 0
    %4283 = vmatpush1.bf16.msra.mxu0 0
    %4284 = vmatprep.subr.bf16.mxu0 0
    %4285 = vmatpush1.bf16.msra.mxu0 0
    %4286 = vmatprep.subr.bf16.mxu0 0
    %4287 = vmatpush1.bf16.msra.mxu0 0
    %4288 = vmatprep.mubr.bf16.mxu0 0
    %4289 = vmatmul.mubr.bf16.gmra.mrb[0].mxu0 %v4253
    %v4290 = vpop.f32.mrb[0].mxu0
    %v4291 = vadd.f32 0.0, %v4290
    %v4292 = vpop.f32.mrb[0].mxu0
    %v4293 = vadd.f32 0.0, %v4292
    %v4294 = vpop.f32.mrb[0].mxu0
    %v4295 = vpop.f32.mrb[0].mxu0
    %4296 = vdwg.mxu0
    %4297 = vmatprep.subr.bf16.mxu0 %v476
    %4298 = vmatpush1.bf16.msra.mxu0 %v475
    %4299 = vmatprep.subr.bf16.mxu0 %v480
    %4300 = vmatpush1.bf16.msra.mxu0 %v479
    %4301 = vmatprep.subr.bf16.mxu0 %v484
    %4302 = vmatpush1.bf16.msra.mxu0 %v483
    %4303 = vmatprep.subr.bf16.mxu0 %v488
    %4304 = vmatpush1.bf16.msra.mxu0 %v487
    %4305 = vmatprep.subr.bf16.mxu0 %v492
    %4306 = vmatpush1.bf16.msra.mxu0 %v491
    %4307 = vmatprep.subr.bf16.mxu0 %v496
    %4308 = vmatpush1.bf16.msra.mxu0 %v495
    %4309 = vmatprep.subr.bf16.mxu0 %v500
    %4310 = vmatpush1.bf16.msra.mxu0 %v499
    %4311 = vmatprep.subr.bf16.mxu0 %v504
    %4312 = vmatpush1.bf16.msra.mxu0 %v503
    %4313 = vmatprep.subr.bf16.mxu0 0
    %4314 = vmatpush1.bf16.msra.mxu0 0
    %4315 = vmatprep.subr.bf16.mxu0 0
    %4316 = vmatpush1.bf16.msra.mxu0 0
    %4317 = vmatprep.subr.bf16.mxu0 0
    %4318 = vmatpush1.bf16.msra.mxu0 0
    %4319 = vmatprep.subr.bf16.mxu0 0
    %4320 = vmatpush1.bf16.msra.mxu0 0
    %4321 = vmatprep.subr.bf16.mxu0 0
    %4322 = vmatpush1.bf16.msra.mxu0 0
    %4323 = vmatprep.subr.bf16.mxu0 0
    %4324 = vmatpush1.bf16.msra.mxu0 0
    %4325 = vmatprep.subr.bf16.mxu0 0
    %4326 = vmatpush1.bf16.msra.mxu0 0
    %4327 = vmatprep.subr.bf16.mxu0 0
    %4328 = vmatpush1.bf16.msra.mxu0 0
    %4329 = vmatprep.mubr.bf16.mxu0 0
    %4330 = vmatmul.mubr.bf16.gmra.mrb[0].mxu0 %v4253
    %v4331 = vpop.f32.mrb[0].mxu0
    %v4332 = vadd.f32 0.0, %v4331
    %v4333 = vpop.f32.mrb[0].mxu0
    %v4334 = vadd.f32 0.0, %v4333
    %v4335 = vpop.f32.mrb[0].mxu0
    %v4336 = vpop.f32.mrb[0].mxu0
    %4337 = vdwg.mxu0
    %v4342 = vcombine.low %v4291, %v4293
    %v4343 = vcombine.low %v4332, %v4334
    %v4345 = vunpack.c.l.s4 1983009808
    %v4346 = vunpack.c.0.s8 %v4345
    %v4347 = vlaneseq
    %v4348 = vshrl.u32 %v4347, 7
    %v4349 = vsub.s32 %v4346, %v4348
    %v4350 = vrot.slane %v4342, %v4349
    %v4352 = vunpack.c.l.s4 1983009808
    %v4353 = vunpack.c.0.s8 %v4352
    %v4354 = vlaneseq
    %v4355 = vshrl.u32 %v4354, 7
    %v4356 = vsub.s32 %v4353, %v4355
    %v4357 = vrot.slane %v4343, %v4356
    %v4358 = vcombine.low %v4350, %v4357
    %v4360 = vadd.f32 %v3606, %v4358
    %v4361 = vxor.u32 %v4360, 2147483648
    %v4362 = vmul.f32 %v4361, 1.442695
    %v4363 = vpow.pop %v4362
    %v4364 = vadd.f32 %v4363, 1.0
    %v4365 = vrcp.pop %v4364
    %v4366 = vmul.f32 1.0, %v4365
    %v4368 = vrot.slane %v4360, 6
    %v4370 = vtanh.pop %v4368
    %v4372 = vrot.slane %v4366, 2
    %v4374 = vmul.f32 %v4372, %v4248
    %v4375 = vmul.f32 %v4366, %v4370
    %v4376 = vadd.f32 %v4374, %v4375
    %v4377 = vtanh.pop %v4376
    %v4378 = vrot.slane %v4366, 4
    %v4380 = vmul.f32 %v4378, %v4377
    %v4381 = vpack.c.bf16 %v4380, %v4380
    %s4382 = scalar_lea.vmem [#allocation4], 5
    %4383 = vst [vmem:[%s4382] sm:$0x1] %v4381
    %4384 = vmatprep.subr.bf16.mxu0 %v474
    %4385 = vmatpush1.bf16.msra.mxu0 %v473
    %4386 = vmatprep.subr.bf16.mxu0 %v478
    %4387 = vmatpush1.bf16.msra.mxu0 %v477
    %4388 = vmatprep.subr.bf16.mxu0 %v482
    %4389 = vmatpush1.bf16.msra.mxu0 %v481
    %4390 = vmatprep.subr.bf16.mxu0 %v486
    %4391 = vmatpush1.bf16.msra.mxu0 %v485
    %4392 = vmatprep.subr.bf16.mxu0 %v490
    %4393 = vmatpush1.bf16.msra.mxu0 %v489
    %4394 = vmatprep.subr.bf16.mxu0 %v494
    %4395 = vmatpush1.bf16.msra.mxu0 %v493
    %4396 = vmatprep.subr.bf16.mxu0 %v498
    %4397 = vmatpush1.bf16.msra.mxu0 %v497
    %4398 = vmatprep.subr.bf16.mxu0 %v502
    %4399 = vmatpush1.bf16.msra.mxu0 %v501
    %4400 = vmatprep.subr.bf16.mxu0 0
    %4401 = vmatpush1.bf16.msra.mxu0 0
    %4402 = vmatprep.subr.bf16.mxu0 0
    %4403 = vmatpush1.bf16.msra.mxu0 0
    %4404 = vmatprep.subr.bf16.mxu0 0
    %4405 = vmatpush1.bf16.msra.mxu0 0
    %4406 = vmatprep.subr.bf16.mxu0 0
    %4407 = vmatpush1.bf16.msra.mxu0 0
    %4408 = vmatprep.subr.bf16.mxu0 0
    %4409 = vmatpush1.bf16.msra.mxu0 0
    %4410 = vmatprep.subr.bf16.mxu0 0
    %4411 = vmatpush1.bf16.msra.mxu0 0
    %4412 = vmatprep.subr.bf16.mxu0 0
    %4413 = vmatpush1.bf16.msra.mxu0 0
    %4414 = vmatprep.subr.bf16.mxu0 0
    %4415 = vmatpush1.bf16.msra.mxu0 0
    %4416 = vmatprep.mubr.bf16.mxu0 0
    %4417 = vmatmul.mubr.bf16.gmra.mrb[0].mxu0 %v4381
    %v4418 = vpop.f32.mrb[0].mxu0
    %v4419 = vadd.f32 0.0, %v4418
    %v4420 = vpop.f32.mrb[0].mxu0
    %v4421 = vadd.f32 0.0, %v4420
    %v4422 = vpop.f32.mrb[0].mxu0
    %v4423 = vpop.f32.mrb[0].mxu0
    %4424 = vdwg.mxu0
    %4425 = vmatprep.subr.bf16.mxu0 %v476
    %4426 = vmatpush1.bf16.msra.mxu0 %v475
    %4427 = vmatprep.subr.bf16.mxu0 %v480
    %4428 = vmatpush1.bf16.msra.mxu0 %v479
    %4429 = vmatprep.subr.bf16.mxu0 %v484
    %4430 = vmatpush1.bf16.msra.mxu0 %v483
    %4431 = vmatprep.subr.bf16.mxu0 %v488
    %4432 = vmatpush1.bf16.msra.mxu0 %v487
    %4433 = vmatprep.subr.bf16.mxu0 %v492
    %4434 = vmatpush1.bf16.msra.mxu0 %v491
    %4435 = vmatprep.subr.bf16.mxu0 %v496
    %4436 = vmatpush1.bf16.msra.mxu0 %v495
    %4437 = vmatprep.subr.bf16.mxu0 %v500
    %4438 = vmatpush1.bf16.msra.mxu0 %v499
    %4439 = vmatprep.subr.bf16.mxu0 %v504
    %4440 = vmatpush1.bf16.msra.mxu0 %v503
    %4441 = vmatprep.subr.bf16.mxu0 0
    %4442 = vmatpush1.bf16.msra.mxu0 0
    %4443 = vmatprep.subr.bf16.mxu0 0
    %4444 = vmatpush1.bf16.msra.mxu0 0
    %4445 = vmatprep.subr.bf16.mxu0 0
    %4446 = vmatpush1.bf16.msra.mxu0 0
    %4447 = vmatprep.subr.bf16.mxu0 0
    %4448 = vmatpush1.bf16.msra.mxu0 0
    %4449 = vmatprep.subr.bf16.mxu0 0
    %4450 = vmatpush1.bf16.msra.mxu0 0
    %4451 = vmatprep.subr.bf16.mxu0 0
    %4452 = vmatpush1.bf16.msra.mxu0 0
    %4453 = vmatprep.subr.bf16.mxu0 0
    %4454 = vmatpush1.bf16.msra.mxu0 0
    %4455 = vmatprep.subr.bf16.mxu0 0
    %4456 = vmatpush1.bf16.msra.mxu0 0
    %4457 = vmatprep.mubr.bf16.mxu0 0
    %4458 = vmatmul.mubr.bf16.gmra.mrb[0].mxu0 %v4381
    %v4459 = vpop.f32.mrb[0].mxu0
    %v4460 = vadd.f32 0.0, %v4459
    %v4461 = vpop.f32.mrb[0].mxu0
    %v4462 = vadd.f32 0.0, %v4461
    %v4463 = vpop.f32.mrb[0].mxu0
    %v4464 = vpop.f32.mrb[0].mxu0
    %4465 = vdwg.mxu0
    %v4470 = vcombine.low %v4419, %v4421
    %v4471 = vcombine.low %v4460, %v4462
    %v4473 = vunpack.c.l.s4 1983009808
    %v4474 = vunpack.c.0.s8 %v4473
    %v4475 = vlaneseq
    %v4476 = vshrl.u32 %v4475, 7
    %v4477 = vsub.s32 %v4474, %v4476
    %v4478 = vrot.slane %v4470, %v4477
    %v4480 = vunpack.c.l.s4 1983009808
    %v4481 = vunpack.c.0.s8 %v4480
    %v4482 = vlaneseq
    %v4483 = vshrl.u32 %v4482, 7
    %v4484 = vsub.s32 %v4481, %v4483
    %v4485 = vrot.slane %v4471, %v4484
    %v4486 = vcombine.low %v4478, %v4485
    %v4488 = vadd.f32 %v3607, %v4486
    %v4489 = vxor.u32 %v4488, 2147483648
    %v4490 = vmul.f32 %v4489, 1.442695
    %v4491 = vpow.pop %v4490
    %v4492 = vadd.f32 %v4491, 1.0
    %v4493 = vrcp.pop %v4492
    %v4494 = vmul.f32 1.0, %v4493
    %v4496 = vrot.slane %v4488, 6
    %v4498 = vtanh.pop %v4496
    %v4500 = vrot.slane %v4494, 2
    %v4502 = vmul.f32 %v4500, %v4376
    %v4503 = vmul.f32 %v4494, %v4498
    %v4504 = vadd.f32 %v4502, %v4503
    %v4505 = vtanh.pop %v4504
    %v4506 = vrot.slane %v4494, 4
    %v4508 = vmul.f32 %v4506, %v4505
    %v4509 = vpack.c.bf16 %v4508, %v4508
    %s4510 = scalar_lea.vmem [#allocation4], 6
    %4511 = vst [vmem:[%s4510] sm:$0x1] %v4509
    %4512 = vmatprep.subr.bf16.mxu0 %v474
    %4513 = vmatpush1.bf16.msra.mxu0 %v473
    %4514 = vmatprep.subr.bf16.mxu0 %v478
    %4515 = vmatpush1.bf16.msra.mxu0 %v477
    %4516 = vmatprep.subr.bf16.mxu0 %v482
    %4517 = vmatpush1.bf16.msra.mxu0 %v481
    %4518 = vmatprep.subr.bf16.mxu0 %v486
    %4519 = vmatpush1.bf16.msra.mxu0 %v485
    %4520 = vmatprep.subr.bf16.mxu0 %v490
    %4521 = vmatpush1.bf16.msra.mxu0 %v489
    %4522 = vmatprep.subr.bf16.mxu0 %v494
    %4523 = vmatpush1.bf16.msra.mxu0 %v493
    %4524 = vmatprep.subr.bf16.mxu0 %v498
    %4525 = vmatpush1.bf16.msra.mxu0 %v497
    %4526 = vmatprep.subr.bf16.mxu0 %v502
    %4527 = vmatpush1.bf16.msra.mxu0 %v501
    %4528 = vmatprep.subr.bf16.mxu0 0
    %4529 = vmatpush1.bf16.msra.mxu0 0
    %4530 = vmatprep.subr.bf16.mxu0 0
    %4531 = vmatpush1.bf16.msra.mxu0 0
    %4532 = vmatprep.subr.bf16.mxu0 0
    %4533 = vmatpush1.bf16.msra.mxu0 0
    %4534 = vmatprep.subr.bf16.mxu0 0
    %4535 = vmatpush1.bf16.msra.mxu0 0
    %4536 = vmatprep.subr.bf16.mxu0 0
    %4537 = vmatpush1.bf16.msra.mxu0 0
    %4538 = vmatprep.subr.bf16.mxu0 0
    %4539 = vmatpush1.bf16.msra.mxu0 0
    %4540 = vmatprep.subr.bf16.mxu0 0
    %4541 = vmatpush1.bf16.msra.mxu0 0
    %4542 = vmatprep.subr.bf16.mxu0 0
    %4543 = vmatpush1.bf16.msra.mxu0 0
    %4544 = vmatprep.mubr.bf16.mxu0 0
    %4545 = vmatmul.mubr.bf16.gmra.mrb[0].mxu0 %v4509
    %v4546 = vpop.f32.mrb[0].mxu0
    %v4547 = vadd.f32 0.0, %v4546
    %v4548 = vpop.f32.mrb[0].mxu0
    %v4549 = vadd.f32 0.0, %v4548
    %v4550 = vpop.f32.mrb[0].mxu0
    %v4551 = vpop.f32.mrb[0].mxu0
    %4552 = vdwg.mxu0
    %4553 = vmatprep.subr.bf16.mxu0 %v476
    %4554 = vmatpush1.bf16.msra.mxu0 %v475
    %4555 = vmatprep.subr.bf16.mxu0 %v480
    %4556 = vmatpush1.bf16.msra.mxu0 %v479
    %4557 = vmatprep.subr.bf16.mxu0 %v484
    %4558 = vmatpush1.bf16.msra.mxu0 %v483
    %4559 = vmatprep.subr.bf16.mxu0 %v488
    %4560 = vmatpush1.bf16.msra.mxu0 %v487
    %4561 = vmatprep.subr.bf16.mxu0 %v492
    %4562 = vmatpush1.bf16.msra.mxu0 %v491
    %4563 = vmatprep.subr.bf16.mxu0 %v496
    %4564 = vmatpush1.bf16.msra.mxu0 %v495
    %4565 = vmatprep.subr.bf16.mxu0 %v500
    %4566 = vmatpush1.bf16.msra.mxu0 %v499
    %4567 = vmatprep.subr.bf16.mxu0 %v504
    %4568 = vmatpush1.bf16.msra.mxu0 %v503
    %4569 = vmatprep.subr.bf16.mxu0 0
    %4570 = vmatpush1.bf16.msra.mxu0 0
    %4571 = vmatprep.subr.bf16.mxu0 0
    %4572 = vmatpush1.bf16.msra.mxu0 0
    %4573 = vmatprep.subr.bf16.mxu0 0
    %4574 = vmatpush1.bf16.msra.mxu0 0
    %4575 = vmatprep.subr.bf16.mxu0 0
    %4576 = vmatpush1.bf16.msra.mxu0 0
    %4577 = vmatprep.subr.bf16.mxu0 0
    %4578 = vmatpush1.bf16.msra.mxu0 0
    %4579 = vmatprep.subr.bf16.mxu0 0
    %4580 = vmatpush1.bf16.msra.mxu0 0
    %4581 = vmatprep.subr.bf16.mxu0 0
    %4582 = vmatpush1.bf16.msra.mxu0 0
    %4583 = vmatprep.subr.bf16.mxu0 0
    %4584 = vmatpush1.bf16.msra.mxu0 0
    %4585 = vmatprep.mubr.bf16.mxu0 0
    %4586 = vmatmul.mubr.bf16.gmra.mrb[0].mxu0 %v4509
    %v4587 = vpop.f32.mrb[0].mxu0
    %v4588 = vadd.f32 0.0, %v4587
    %v4589 = vpop.f32.mrb[0].mxu0
    %v4590 = vadd.f32 0.0, %v4589
    %v4591 = vpop.f32.mrb[0].mxu0
    %v4592 = vpop.f32.mrb[0].mxu0
    %4593 = vdwg.mxu0
    %v4598 = vcombine.low %v4547, %v4549
    %v4599 = vcombine.low %v4588, %v4590
    %v4601 = vunpack.c.l.s4 1983009808
    %v4602 = vunpack.c.0.s8 %v4601
    %v4603 = vlaneseq
    %v4604 = vshrl.u32 %v4603, 7
    %v4605 = vsub.s32 %v4602, %v4604
    %v4606 = vrot.slane %v4598, %v4605
    %v4608 = vunpack.c.l.s4 1983009808
    %v4609 = vunpack.c.0.s8 %v4608
    %v4610 = vlaneseq
    %v4611 = vshrl.u32 %v4610, 7
    %v4612 = vsub.s32 %v4609, %v4611
    %v4613 = vrot.slane %v4599, %v4612
    %v4614 = vcombine.low %v4606, %v4613
    %v4616 = vadd.f32 %v3608, %v4614
    %v4617 = vxor.u32 %v4616, 2147483648
    %v4618 = vmul.f32 %v4617, 1.442695
    %v4619 = vpow.pop %v4618
    %v4620 = vadd.f32 %v4619, 1.0
    %v4621 = vrcp.pop %v4620
    %v4622 = vmul.f32 1.0, %v4621
    %v4624 = vrot.slane %v4616, 6
    %v4626 = vtanh.pop %v4624
    %v4628 = vrot.slane %v4622, 2
    %v4630 = vmul.f32 %v4628, %v4504
    %v4631 = vmul.f32 %v4622, %v4626
    %v4632 = vadd.f32 %v4630, %v4631
    %v4633 = vtanh.pop %v4632
    %v4634 = vrot.slane %v4622, 4
    %v4636 = vmul.f32 %v4634, %v4633
    %v4637 = vpack.c.bf16 %v4636, %v4636
    %s4638 = scalar_lea.vmem [#allocation4], 7
    %4639 = vst [vmem:[%s4638] sm:$0x1] %v4637
    %v4640 = vld [vmem:[#allocation4] sm:$0x1]
    %v4641 = vld [vmem:[#allocation4 + $0x1] sm:$0x1]
    %v4642 = vld [vmem:[#allocation4 + $0x2] sm:$0x1]
    %v4643 = vld [vmem:[#allocation4 + $0x3] sm:$0x1]
    %v4644 = vld [vmem:[#allocation4 + $0x4] sm:$0x1]
    %v4645 = vld [vmem:[#allocation4 + $0x5] sm:$0x1]
    %v4646 = vld [vmem:[#allocation4 + $0x6] sm:$0x1]
    %v4647 = vld [vmem:[#allocation4 + $0x7] sm:$0x1]
    %v4648 = vld [vmem:[%s14] sm:$0x1]
    %v4650 = vlaneseq
    %v4651 = vshrl.u32 %v4650, 7
    %v4652 = vsub.s32 0, %v4651
    %v4653 = vrot.slane %v4648, %v4652
    %v4663 = vcombine.low %v4640, %v4641
    %v4664 = vcombine.low %v4642, %v4643
    %v4665 = vcombine.low %v4644, %v4645
    %v4666 = vcombine.low %v4646, %v4647
    %v4668 = vunpack.c.l.s4 1966171168
    %v4669 = vunpack.c.0.s8 %v4668
    %v4670 = vlaneseq
    %v4671 = vshrl.u32 %v4670, 7
    %v4672 = vsub.s32 %v4669, %v4671
    %v4673 = vrot.slane %v4663, %v4672
    %v4675 = vunpack.c.l.s4 1966171168
    %v4676 = vunpack.c.0.s8 %v4675
    %v4677 = vlaneseq
    %v4678 = vshrl.u32 %v4677, 7
    %v4679 = vsub.s32 %v4676, %v4678
    %v4680 = vrot.slane %v4664, %v4679
    %v4682 = vunpack.c.l.s4 1966171168
    %v4683 = vunpack.c.0.s8 %v4682
    %v4684 = vlaneseq
    %v4685 = vshrl.u32 %v4684, 7
    %v4686 = vsub.s32 %v4683, %v4685
    %v4687 = vrot.slane %v4665, %v4686
    %v4689 = vunpack.c.l.s4 1966171168
    %v4690 = vunpack.c.0.s8 %v4689
    %v4691 = vlaneseq
    %v4692 = vshrl.u32 %v4691, 7
    %v4693 = vsub.s32 %v4690, %v4692
    %v4694 = vrot.slane %v4666, %v4693
    %v4695 = vcombine.low %v4673, %v4680
    %v4696 = vcombine.low %v4687, %v4694
    %v4698 = vunpack.c.l.s4 1966171168
    %v4699 = vunpack.c.0.s8 %v4698
    %v4700 = vlaneseq
    %v4701 = vshrl.u32 %v4700, 7
    %v4702 = vsub.s32 %v4699, %v4701
    %v4703 = vrot.slane %v4695, %v4702
    %v4705 = vunpack.c.l.s4 1966171168
    %v4706 = vunpack.c.0.s8 %v4705
    %v4707 = vlaneseq
    %v4708 = vshrl.u32 %v4707, 7
    %v4709 = vsub.s32 %v4706, %v4708
    %v4710 = vrot.slane %v4696, %v4709
    %v4711 = vcombine.low %v4703, %v4710
    %4713 = vmatprep.subr.bf16.mxu0 0
    %4714 = vmatpush1.bf16.msra.mxu0 %v521
    %4715 = vmatprep.subr.bf16.mxu0 0
    %4716 = vmatpush1.bf16.msra.mxu0 %v522
    %4717 = vmatprep.subr.bf16.mxu0 0
    %4718 = vmatpush1.bf16.msra.mxu0 %v523
    %4719 = vmatprep.subr.bf16.mxu0 0
    %4720 = vmatpush1.bf16.msra.mxu0 %v524
    %4721 = vmatprep.subr.bf16.mxu0 0
    %4722 = vmatpush1.bf16.msra.mxu0 %v525
    %4723 = vmatprep.subr.bf16.mxu0 0
    %4724 = vmatpush1.bf16.msra.mxu0 %v526
    %4725 = vmatprep.subr.bf16.mxu0 0
    %4726 = vmatpush1.bf16.msra.mxu0 %v527
    %4727 = vmatprep.subr.bf16.mxu0 0
    %4728 = vmatpush1.bf16.msra.mxu0 %v528
    %4729 = vmatprep.subr.bf16.mxu0 0
    %4730 = vmatpush1.bf16.msra.mxu0 0
    %4731 = vmatprep.subr.bf16.mxu0 0
    %4732 = vmatpush1.bf16.msra.mxu0 0
    %4733 = vmatprep.subr.bf16.mxu0 0
    %4734 = vmatpush1.bf16.msra.mxu0 0
    %4735 = vmatprep.subr.bf16.mxu0 0
    %4736 = vmatpush1.bf16.msra.mxu0 0
    %4737 = vmatprep.subr.bf16.mxu0 0
    %4738 = vmatpush1.bf16.msra.mxu0 0
    %4739 = vmatprep.subr.bf16.mxu0 0
    %4740 = vmatpush1.bf16.msra.mxu0 0
    %4741 = vmatprep.subr.bf16.mxu0 0
    %4742 = vmatpush1.bf16.msra.mxu0 0
    %4743 = vmatprep.subr.bf16.mxu0 0
    %4744 = vmatpush1.bf16.msra.mxu0 0
    %4745 = vmatprep.mubr.bf16.mxu0 0
    %4746 = vmatmul.mubr.bf16.gmra.mrb[0].mxu0 %v4711
    %v4747 = vpop.f32.mrb[0].mxu0
    %v4748 = vadd.f32 %v4653, %v4747
    %v4749 = vpop.f32.mrb[0].mxu0
    %v4750 = vpop.f32.mrb[0].mxu0
    %v4751 = vadd.f32 %v4653, %v4750
    %v4752 = vpop.f32.mrb[0].mxu0
    %4753 = vdwg.mxu0
    %v4756 = vcombine.high %v4748, %v4748
    %v4758 = vunpack.c.l.s4 1983009808
    %v4759 = vunpack.c.0.s8 %v4758
    %v4760 = vlaneseq
    %v4761 = vshrl.u32 %v4760, 7
    %v4762 = vsub.s32 %v4759, %v4761
    %v4763 = vrot.slane %v4748, %v4762
    %v4765 = vunpack.c.l.s4 1983009808
    %v4766 = vunpack.c.0.s8 %v4765
    %v4767 = vlaneseq
    %v4768 = vshrl.u32 %v4767, 7
    %v4769 = vsub.s32 %v4766, %v4768
    %v4770 = vrot.slane %v4756, %v4769
    %v4771 = vcombine.high %v4763, %v4763
    %v4772 = vcombine.high %v4770, %v4770
    %v4773 = vcombine.high %v4751, %v4751
    %v4775 = vunpack.c.l.s4 1983009808
    %v4776 = vunpack.c.0.s8 %v4775
    %v4777 = vlaneseq
    %v4778 = vshrl.u32 %v4777, 7
    %v4779 = vsub.s32 %v4776, %v4778
    %v4780 = vrot.slane %v4751, %v4779
    %v4782 = vunpack.c.l.s4 1983009808
    %v4783 = vunpack.c.0.s8 %v4782
    %v4784 = vlaneseq
    %v4785 = vshrl.u32 %v4784, 7
    %v4786 = vsub.s32 %v4783, %v4785
    %v4787 = vrot.slane %v4773, %v4786
    %v4788 = vcombine.high %v4780, %v4780
    %v4789 = vcombine.high %v4787, %v4787
    %vm4798 = vcmask 25600
    %4799 = vst.msk [vmem:[%s15] sm:$0x3] %vm4798, %v4763
    %4800 = vst.msk [vmem:[%s15 + $0x2] sm:$0x3] %vm4798, %v4771
    %4801 = vst.msk [vmem:[%s15 + $0x4] sm:$0x3] %vm4798, %v4770
    %4802 = vst.msk [vmem:[%s15 + $0x6] sm:$0x3] %vm4798, %v4772
    %4803 = vst.msk [vmem:[%s15 + $0x8] sm:$0x3] %vm4798, %v4780
    %4804 = vst.msk [vmem:[%s15 + $0xa] sm:$0x3] %vm4798, %v4788
    %4805 = vst.msk [vmem:[%s15 + $0xc] sm:$0x3] %vm4798, %v4787
    %4806 = vst.msk [vmem:[%s15 + $0xe] sm:$0x3] %vm4798, %v4789
    // Predicated region
    $region86: #{tpu_custom_call.1} parent=1 // pred_check
      _
    $region87: #{tpu_custom_call.1} parent=1 // pred_check_branch
      %4808 = sbr.rel (0) target = $region89
    $region88: #{tpu_custom_call.1} parent=1 // pred_region
      _
    $region89: #{tpu_custom_call.1} parent=1 // pred_fallthru
      _
    // Predicated region
    $region90: #{tpu_custom_call.1} parent=1 // pred_check
      _
    $region91: #{tpu_custom_call.1} parent=1 // pred_check_branch
      %4810 = sbr.rel (0) target = $region93
    $region92: #{tpu_custom_call.1} parent=1 // pred_region
      _
    $region93: #{tpu_custom_call.1} parent=1 // pred_fallthru
      _
    %4811 = vsyncpa [#allocation6], 1
    %4812 = vsyncpa [#allocation8], 1
    %4813 = vsyncpa [#allocation11], 1
    %4814 = vsyncpa [#allocation14], 1

</llo_original>
